<compile_context>
chip_gen: v7x
topology: tpu7x:2x2x1
jax: 0.10.0
libtpu: 0.0.40
codegen_flags: <defaults>
</compile_context>

<pallas_src>
import jax
import jax.numpy as jnp
from jax import lax
from jax.experimental import pallas as pl
from jax.experimental.pallas import tpu as pltpu


def _round_up(x, m):
    return (x + m - 1) // m * m


# ----------------------------------------------------------------------------
# Fused kernel: stacked LSTM layers + masked attention pooling, one batch tile.
# Gate order follows PyTorch: [i, f, g, o]; each gate owns a 128-aligned block
# of Hp lanes (gate-blocked padded weight layout, see prepare_params).
# ----------------------------------------------------------------------------
def _make_fused_kernel(num_layers, T, Tc, TB, Hp, unroll):
    n_in = 1 + 3 * num_layers + 4   # x, (w_ih, w_hh, b)*L, wa, ba, v, lens
    n_chunks = T // Tc

    def kernel(*refs):
        x_ref = refs[0]
        layer_refs = refs[1:1 + 3 * num_layers]
        wa_ref, ba_ref, v_ref, len_ref = refs[1 + 3 * num_layers:n_in]
        out_ref = refs[n_in]
        y_ref, gx_ref = refs[n_in + 1], refs[n_in + 2]

        # ---------------- stacked LSTM layers (resident in VMEM) ------------
        for l in range(num_layers):
            w_ih_ref = layer_refs[3 * l + 0]
            w_hh_ref = layer_refs[3 * l + 1]
            b_ref = layer_refs[3 * l + 2]
            # In-place update of the single y buffer for l >= 1: each chunk is
            # fully projected into gx before the timestep loop overwrites it.
            src_ref = x_ref if l == 0 else y_ref
            d_in = src_ref.shape[-1]

            w_ih = w_ih_ref[...]          # (d_in, 4Hp) bf16, loop-invariant
            w_hh = w_hh_ref[...]          # (Hp,  4Hp) bf16, loop-invariant
            b = b_ref[...]                # (1,   4Hp) f32, pre-added b_ih + b_hh

            def chunk_body(ci, carry, src_ref=src_ref, d_in=d_in,
                           w_ih=w_ih, w_hh=w_hh, b=b):
                h, c = carry              # (TB, Hp) f32 register-resident carries
                t0 = pl.multiple_of(ci * Tc, Tc)

                # Chunked, hoisted input projection (one MXU matmul per chunk).
                xs = src_ref[pl.ds(t0, Tc)].reshape(Tc * TB, d_in)      # bf16
                gx_ref[...] = (
                    jnp.dot(xs, w_ih, preferred_element_type=jnp.float32) + b
                ).astype(jnp.bfloat16).reshape(Tc, TB, 4 * Hp)

                def step(t, carry2):
                    h, c = carry2
                    gates = gx_ref[t] + jnp.dot(
                        h.astype(jnp.bfloat16), w_hh,
                        preferred_element_type=jnp.float32)             # (TB, 4Hp) f32
                    # 128-aligned gate blocks -> zero-cost vreg splits.
                    i_g = jax.nn.sigmoid(gates[:, 0 * Hp:1 * Hp])
                    f_g = jax.nn.sigmoid(gates[:, 1 * Hp:2 * Hp])
                    g_g = jnp.tanh(gates[:, 2 * Hp:3 * Hp])
                    o_g = jax.nn.sigmoid(gates[:, 3 * Hp:4 * Hp])
                    c = f_g * c + i_g * g_g                             # f32 cell state
                    h = o_g * jnp.tanh(c)
                    y_ref[t0 + t] = h.astype(jnp.bfloat16)              # lane-dense store
                    return (h, c)

                return lax.fori_loop(0, Tc, step, (h, c), unroll=unroll)

            zeros = jnp.zeros((TB, Hp), jnp.float32)
            lax.fori_loop(0, n_chunks, chunk_body, (zeros, zeros))

        # ---------------- attention pooling on resident y --------------------
        y = y_ref[...]                                              # (T, TB, Hp) bf16
        a = jnp.tanh(
            jnp.dot(y.reshape(T * TB, Hp), wa_ref[...],
                    preferred_element_type=jnp.float32) + ba_ref[...])
        s = jnp.sum(a * v_ref[...], axis=-1).reshape(T, TB)         # scores, f32

        t_idx = lax.broadcasted_iota(jnp.int32, (T, TB), 0)
        mask = t_idx < len_ref[...]                                 # (1, TB) broadcast
        s = jnp.where(mask, s, -jnp.inf)
        m = jnp.maximum(jnp.max(s, axis=0, keepdims=True), -1e30)   # guard len==0
        e = jnp.where(mask, jnp.exp(s - m), 0.0)
        denom = jnp.maximum(jnp.sum(e, axis=0, keepdims=True), 1e-20)
        w = e * pl.reciprocal(denom, approx=True)                   # softmax over T

        out_ref[...] = jnp.sum(y.astype(jnp.float32) * w[:, :, None], axis=0)

    return kernel


# ----------------------------------------------------------------------------
# One-time parameter preparation: transpose, pre-add biases, pad to the
# gate-blocked, 128-lane-aligned layout, cast matmul weights to bf16.
# Padding is exact: padded gate columns give i=f=o=0.5, g=0, so padded h/c
# lanes stay identically zero.
# ----------------------------------------------------------------------------
def prepare_params(lstm_params, attn_params):
    H = lstm_params[0][1].shape[1]            # w_hh: (4H, H)
    Hp = _round_up(H, 128)
    layers = []
    for li, (w_ih, w_hh, b_ih, b_hh) in enumerate(lstm_params):
        d_in = w_ih.shape[1]
        d_in_p = d_in if li == 0 else Hp
        w_ih_t = jnp.asarray(w_ih, jnp.float32).T            # (d_in, 4H)
        w_hh_t = jnp.asarray(w_hh, jnp.float32).T            # (H, 4H)
        b = jnp.asarray(b_ih + b_hh, jnp.float32)            # pre-added bias
        w_ih_p = jnp.zeros((d_in_p, 4 * Hp), jnp.float32)
        w_hh_p = jnp.zeros((Hp, 4 * Hp), jnp.float32)
        b_p = jnp.zeros((1, 4 * Hp), jnp.float32)
        for g in range(4):
            w_ih_p = w_ih_p.at[:d_in, g * Hp:g * Hp + H].set(w_ih_t[:, g * H:(g + 1) * H])
            w_hh_p = w_hh_p.at[:H, g * Hp:g * Hp + H].set(w_hh_t[:, g * H:(g + 1) * H])
            b_p = b_p.at[:, g * Hp:g * Hp + H].set(b[g * H:(g + 1) * H][None, :])
        layers.append((w_ih_p.astype(jnp.bfloat16),
                       w_hh_p.astype(jnp.bfloat16),
                       b_p))
    attn_w, attn_b, attn_v = attn_params
    wa_p = jnp.zeros((Hp, Hp), jnp.float32).at[:H, :H].set(
        jnp.asarray(attn_w, jnp.float32).T).astype(jnp.bfloat16)
    ba_p = jnp.zeros((1, Hp), jnp.float32).at[:, :H].set(
        jnp.asarray(attn_b, jnp.float32)[None, :])
    v_p = jnp.zeros((1, Hp), jnp.float32).at[:, :H].set(
        jnp.asarray(attn_v, jnp.float32)[None, :])
    return layers, (wa_p, ba_p, v_p), H, Hp


# ----------------------------------------------------------------------------
# Forward wrapper: time/batch padding, >=2 batch tiles on the parallel grid.
# ----------------------------------------------------------------------------
def attention_lstm_block(x, lengths, prepared_layers, prepared_attn, H, Hp):
    """x: (B, T, D) float32 batch-first (like the PyTorch module); lengths: (B,)."""
    B, T, D = x.shape
    wa_p, ba_p, v_p = prepared_attn
    L = len(prepared_layers)

    # Time chunking for the gx projection (VMEM relief, esp. v7x 64 MiB).
    Tc = min(T, 32)
    T_pad = _round_up(T, Tc)

    # Batch tiling: always >= 2 tiles when B <= 128 so the "parallel" grid axis
    # shards across both v7x TensorCores; >128 tiles in 128-row slabs.
    if B > 128:
        TB = 128
        B_pad = _round_up(B, TB)
    else:
        TB = max(8, _round_up(-(-B // 2), 8))
        B_pad = 2 * TB
    n_tiles = B_pad // TB
    grid = (n_tiles,)

    x_tm = jnp.transpose(x, (1, 0, 2)).astype(jnp.bfloat16)       # time-major, bf16 MXU operand
    x_tm = jnp.pad(x_tm, ((0, T_pad - T), (0, B_pad - B), (0, 0)))
    lens = jnp.pad(lengths.astype(jnp.int32), (0, B_pad - B), constant_values=1)
    lens_tiled = lens.reshape(n_tiles, 1, TB)                     # per-tile (1, TB) rows

    in_specs = [pl.BlockSpec((T_pad, TB, D), lambda i: (0, i, 0))]
    flat = [x_tm]
    for (w_ih_p, w_hh_p, b_p) in prepared_layers:
        in_specs += [
            pl.BlockSpec(w_ih_p.shape, lambda i: (0, 0)),
            pl.BlockSpec(w_hh_p.shape, lambda i: (0, 0)),
            pl.BlockSpec(b_p.shape, lambda i: (0, 0)),
        ]
        flat += [w_ih_p, w_hh_p, b_p]
    in_specs += [
        pl.BlockSpec((Hp, Hp), lambda i: (0, 0)),
        pl.BlockSpec((1, Hp), lambda i: (0, 0)),
        pl.BlockSpec((1, Hp), lambda i: (0, 0)),
        pl.BlockSpec((None, 1, TB), lambda i: (i, 0, 0)),   # lens: full-dim blocks only
    ]
    flat += [wa_p, ba_p, v_p, lens_tiled]

    # vreg-pressure-adaptive unroll: the recurrence is a dependent chain; only
    # unroll aggressively when each step is a handful of vregs.
    unroll = 8 if TB * Hp <= 4096 else 2
    unroll = min(unroll, Tc)

    kernel = _make_fused_kernel(L, T_pad, Tc, TB, Hp, unroll)

    # Per-generation VMEM budget: ~48 MiB on v7x (64 MiB physical), ~96 MiB on v5e/v6e.
    try:
        vmem_cap = int(getattr(pltpu.get_tpu_info(), "vmem_capacity_bytes", 0)) or (128 << 20)
    except Exception:
        vmem_cap = 128 << 20
    vmem_limit = int(min((vmem_cap * 3) // 4, 112 << 20))

    out = pl.pallas_call(
        kernel,
        out_shape=jax.ShapeDtypeStruct((B_pad, Hp), jnp.float32),
        grid=grid,
        in_specs=in_specs,
        out_specs=pl.BlockSpec((TB, Hp), lambda i: (i, 0)),
        scratch_shapes=[
            pltpu.VMEM((T_pad, TB, Hp), jnp.bfloat16),       # resident y (updated in place per layer)
            pltpu.VMEM((Tc, TB, 4 * Hp), jnp.bfloat16),      # chunked x @ W_ih gate buffer
        ],
        compiler_params=pltpu.CompilerParams(
            dimension_semantics=("parallel",),               # batch tiles -> megacore / v7x 2 TCs
            vmem_limit_bytes=vmem_limit,
        ),
    )(*flat)

    return out[:B, :H]


# ----------------------------------------------------------------------------
# Deterministic PyTorch-style parameter init + pure-JAX f32 reference.
# ----------------------------------------------------------------------------
def init_params(key, lstm_input_dim, hidden_size, num_layers):
    bound = 1.0 / (hidden_size ** 0.5)
    keys = jax.random.split(key, 4 * num_layers + 3)
    idx = 0
    lstm_params = []
    for layer in range(num_layers):
        in_d = lstm_input_dim if layer == 0 else hidden_size
        w_ih = jax.random.uniform(keys[idx], (4 * hidden_size, in_d),
                                  minval=-bound, maxval=bound, dtype=jnp.float32); idx += 1
        w_hh = jax.random.uniform(keys[idx], (4 * hidden_size, hidden_size),
                                  minval=-bound, maxval=bound, dtype=jnp.float32); idx += 1
        b_ih = jax.random.uniform(keys[idx], (4 * hidden_size,),
                                  minval=-bound, maxval=bound, dtype=jnp.float32); idx += 1
        b_hh = jax.random.uniform(keys[idx], (4 * hidden_size,),
                                  minval=-bound, maxval=bound, dtype=jnp.float32); idx += 1
        lstm_params.append((w_ih, w_hh, b_ih, b_hh))
    attn_w = jax.random.uniform(keys[idx], (hidden_size, hidden_size),
                                minval=-bound, maxval=bound, dtype=jnp.float32); idx += 1
    attn_b = jax.random.uniform(keys[idx], (hidden_size,),
                                minval=-bound, maxval=bound, dtype=jnp.float32); idx += 1
    attn_v = jax.random.normal(keys[idx], (hidden_size,), dtype=jnp.float32)
    return lstm_params, (attn_w, attn_b, attn_v)


def reference_forward(x, lengths, lstm_params, attn_params):
    B, T, D = x.shape
    seq = x.astype(jnp.float32)
    for (w_ih, w_hh, b_ih, b_hh) in lstm_params:
        H = w_hh.shape[1]

        def cell(carry, x_t):
            h, c = carry
            gates = x_t @ w_ih.T + b_ih + h @ w_hh.T + b_hh
            i = jax.nn.sigmoid(gates[:, 0 * H:1 * H])
            f = jax.nn.sigmoid(gates[:, 1 * H:2 * H])
            g = jnp.tanh(gates[:, 2 * H:3 * H])
            o = jax.nn.sigmoid(gates[:, 3 * H:4 * H])
            c = f * c + i * g
            h = o * jnp.tanh(c)
            return (h, c), h

        init = (jnp.zeros((B, H), jnp.float32), jnp.zeros((B, H), jnp.float32))
        _, ys = lax.scan(cell, init, jnp.transpose(seq, (1, 0, 2)))
        seq = jnp.transpose(ys, (1, 0, 2))
    attn_w, attn_b, attn_v = attn_params
    a = jnp.tanh(seq @ attn_w.T + attn_b)
    s = a @ attn_v
    mask = jnp.arange(T)[None, :] < lengths[:, None]
    s = jnp.where(mask, s, -jnp.inf)
    w = jax.nn.softmax(s, axis=1)
    return jnp.sum(seq * w[:, :, None], axis=1)


if __name__ == "__main__":
    B, T, D, H, NUM_LAYERS = 4, 8, 8, 32, 2
    key = jax.random.PRNGKey(0)
    k_x, k_p = jax.random.split(key)

    x = jax.random.normal(k_x, (B, T, D), dtype=jnp.float32)
    lengths = jnp.array([8, 5, 3, 6], dtype=jnp.int32)

    lstm_params, attn_params = init_params(k_p, D, H, NUM_LAYERS)
    prepared_layers, prepared_attn, H_real, Hp = prepare_params(lstm_params, attn_params)

    out = attention_lstm_block(x, lengths, prepared_layers, prepared_attn, H_real, Hp)
    out = jax.block_until_ready(out)

    assert out.shape == (B, H)
    assert bool(jnp.all(jnp.isfinite(out)))

    ref = reference_forward(x, lengths, lstm_params, attn_params)
    err = float(jnp.max(jnp.abs(out - ref)))
    assert err < 5e-2, f"max abs error vs reference: {err}"
    print("KERNEL_OK")
</pallas_src>

<mosaic_0001>
module attributes {stable_mosaic.version = 11 : i64} {
  func.func @kernel(%arg0: i32, %arg1: memref<8x8x8xbf16, #tpu.memory_space<vmem>>, %arg2: memref<8x512xbf16, #tpu.memory_space<vmem>>, %arg3: memref<128x512xbf16, #tpu.memory_space<vmem>>, %arg4: memref<1x512xf32, #tpu.memory_space<vmem>>, %arg5: memref<128x512xbf16, #tpu.memory_space<vmem>>, %arg6: memref<128x512xbf16, #tpu.memory_space<vmem>>, %arg7: memref<1x512xf32, #tpu.memory_space<vmem>>, %arg8: memref<128x128xbf16, #tpu.memory_space<vmem>>, %arg9: memref<1x128xf32, #tpu.memory_space<vmem>>, %arg10: memref<1x128xf32, #tpu.memory_space<vmem>>, %arg11: memref<1x1x8xi32, #tpu.memory_space<vmem>>, %arg12: memref<8x128xf32, #tpu.memory_space<vmem>>, %arg13: memref<8x8x128xbf16, #tpu.memory_space<vmem>>, %arg14: memref<8x8x512xbf16, #tpu.memory_space<vmem>>) attributes {dimension_semantics = [#tpu.dimension_semantics<parallel>], iteration_bounds = array<i64: 2>, scalar_prefetch = 0 : i64, scratch_operands = 2 : i64, tpu.core_type = #tpu.core_type<tc>, window_params = [{transform_indices = @transform_0, window_bounds = array<i64: 8, 8, 8>}, {pipeline_mode = #tpu.pipeline_mode<synchronous>, transform_indices = @transform_1, window_bounds = array<i64: 8, 512>}, {pipeline_mode = #tpu.pipeline_mode<synchronous>, transform_indices = @transform_2, window_bounds = array<i64: 128, 512>}, {pipeline_mode = #tpu.pipeline_mode<synchronous>, transform_indices = @transform_3, window_bounds = array<i64: 1, 512>}, {pipeline_mode = #tpu.pipeline_mode<synchronous>, transform_indices = @transform_4, window_bounds = array<i64: 128, 512>}, {pipeline_mode = #tpu.pipeline_mode<synchronous>, transform_indices = @transform_5, window_bounds = array<i64: 128, 512>}, {pipeline_mode = #tpu.pipeline_mode<synchronous>, transform_indices = @transform_6, window_bounds = array<i64: 1, 512>}, {pipeline_mode = #tpu.pipeline_mode<synchronous>, transform_indices = @transform_7, window_bounds = array<i64: 128, 128>}, {pipeline_mode = #tpu.pipeline_mode<synchronous>, transform_indices = @transform_8, window_bounds = array<i64: 1, 128>}, {pipeline_mode = #tpu.pipeline_mode<synchronous>, transform_indices = @transform_9, window_bounds = array<i64: 1, 128>}, {transform_indices = @transform_10, window_bounds = array<i64: 1, 1, 8>}, {transform_indices = @transform_11, window_bounds = array<i64: 8, 128>}]} {
    %c0 = arith.constant 0 : index
    %c0_0 = arith.constant 0 : index
    %0 = vector.load %arg2[%c0, %c0_0] : memref<8x512xbf16, #tpu.memory_space<vmem>>, vector<8x512xbf16>
    %c0_1 = arith.constant 0 : index
    %c0_2 = arith.constant 0 : index
    %1 = vector.load %arg3[%c0_1, %c0_2] : memref<128x512xbf16, #tpu.memory_space<vmem>>, vector<128x512xbf16>
    %c0_3 = arith.constant 0 : index
    %c0_4 = arith.constant 0 : index
    %2 = vector.load %arg4[%c0_3, %c0_4] : memref<1x512xf32, #tpu.memory_space<vmem>>, vector<1x512xf32>
    %cst = arith.constant 0.000000e+00 : f32
    %3 = vector.broadcast %cst : f32 to vector<8x128xf32>
    %c0_i32 = arith.constant 0 : i32
    %c8_i32 = arith.constant 8 : i32
    %4 = arith.muli %c0_i32, %c8_i32 : i32
    %5 = tpu.assume_multiple %4, 8 : i32
    %6 = arith.index_cast %5 : i32 to index
    %c0_5 = arith.constant 0 : index
    %c0_6 = arith.constant 0 : index
    %7 = vector.load %arg1[%6, %c0_5, %c0_6] : memref<8x8x8xbf16, #tpu.memory_space<vmem>>, vector<8x8x8xbf16>
    %8 = vector.shape_cast %7 : vector<8x8x8xbf16> to vector<64x8xbf16>
    %cst_7 = arith.constant dense<0.000000e+00> : vector<64x512xf32>
    %9 = tpu.matmul %8, %0, %cst_7 {dimension_numbers = #tpu.dot_dimension_numbers<[1], [0], [0], [1], [0, 0, 1, 1], [], []>} : vector<64x8xbf16>, vector<8x512xbf16>, vector<64x512xf32> -> vector<64x512xf32>
    %10 = vector.broadcast %2 : vector<1x512xf32> to vector<64x512xf32>
    %11 = arith.addf %9, %10 : vector<64x512xf32>
    %12 = arith.truncf %11 : vector<64x512xf32> to vector<64x512xbf16>
    %13 = vector.shape_cast %12 : vector<64x512xbf16> to vector<8x8x512xbf16>
    %c0_8 = arith.constant 0 : index
    %c0_9 = arith.constant 0 : index
    %c0_10 = arith.constant 0 : index
    %14 = vector.load %arg14[%c0_8, %c0_9, %c0_10] : memref<8x8x512xbf16, #tpu.memory_space<vmem>>, vector<8x8x512xbf16>
    tpu.vector_store %arg14[%c0_8, %c0_9, %c0_10], %13 {strides = array<i32>} : memref<8x8x512xbf16, #tpu.memory_space<vmem>>, vector<8x8x512xbf16>,
    %c0_i32_11 = arith.constant 0 : i32
    %15 = arith.index_cast %c0_i32_11 : i32 to index
    %c0_12 = arith.constant 0 : index
    %c0_13 = arith.constant 0 : index
    %16 = vector.load %arg14[%15, %c0_12, %c0_13] : memref<8x8x512xbf16, #tpu.memory_space<vmem>>, vector<1x8x512xbf16>
    %17 = vector.shape_cast %16 : vector<1x8x512xbf16> to vector<8x512xbf16>
    %18 = arith.truncf %3 : vector<8x128xf32> to vector<8x128xbf16>
    %cst_14 = arith.constant dense<0.000000e+00> : vector<8x512xf32>
    %19 = tpu.matmul %18, %1, %cst_14 {dimension_numbers = #tpu.dot_dimension_numbers<[1], [0], [0], [1], [0, 0, 1, 1], [], []>} : vector<8x128xbf16>, vector<128x512xbf16>, vector<8x512xf32> -> vector<8x512xf32>
    %20 = arith.extf %17 : vector<8x512xbf16> to vector<8x512xf32>
    %21 = arith.addf %20, %19 : vector<8x512xf32>
    %22 = vector.extract_strided_slice %21 {offsets = [0, 0], sizes = [8, 128], strides = [1, 1]} : vector<8x512xf32> to vector<8x128xf32>
    %23 = arith.negf %22 : vector<8x128xf32>
    %24 = math.exp %23 : vector<8x128xf32>
    %cst_15 = arith.constant 1.000000e+00 : f32
    %25 = vector.broadcast %cst_15 : f32 to vector<8x128xf32>
    %26 = arith.addf %25, %24 : vector<8x128xf32>
    %27 = arith.divf %25, %26 : vector<8x128xf32>
    %28 = vector.extract_strided_slice %21 {offsets = [0, 128], sizes = [8, 128], strides = [1, 1]} : vector<8x512xf32> to vector<8x128xf32>
    %29 = arith.negf %28 : vector<8x128xf32>
    %30 = math.exp %29 : vector<8x128xf32>
    %cst_16 = arith.constant 1.000000e+00 : f32
    %31 = vector.broadcast %cst_16 : f32 to vector<8x128xf32>
    %32 = arith.addf %31, %30 : vector<8x128xf32>
    %33 = arith.divf %31, %32 : vector<8x128xf32>
    %34 = vector.extract_strided_slice %21 {offsets = [0, 256], sizes = [8, 128], strides = [1, 1]} : vector<8x512xf32> to vector<8x128xf32>
    %35 = math.tanh %34 : vector<8x128xf32>
    %36 = vector.extract_strided_slice %21 {offsets = [0, 384], sizes = [8, 128], strides = [1, 1]} : vector<8x512xf32> to vector<8x128xf32>
    %37 = arith.negf %36 : vector<8x128xf32>
    %38 = math.exp %37 : vector<8x128xf32>
    %cst_17 = arith.constant 1.000000e+00 : f32
    %39 = vector.broadcast %cst_17 : f32 to vector<8x128xf32>
    %40 = arith.addf %39, %38 : vector<8x128xf32>
    %41 = arith.divf %39, %40 : vector<8x128xf32>
    %42 = arith.mulf %33, %3 : vector<8x128xf32>
    %43 = arith.mulf %27, %35 : vector<8x128xf32>
    %44 = arith.addf %42, %43 : vector<8x128xf32>
    %45 = math.tanh %44 : vector<8x128xf32>
    %46 = arith.mulf %41, %45 : vector<8x128xf32>
    %47 = arith.truncf %46 : vector<8x128xf32> to vector<8x128xbf16>
    %48 = arith.addi %5, %c0_i32_11 : i32
    %49 = arith.index_cast %48 : i32 to index
    %c0_18 = arith.constant 0 : index
    %c0_19 = arith.constant 0 : index
    %50 = vector.load %arg13[%49, %c0_18, %c0_19] : memref<8x8x128xbf16, #tpu.memory_space<vmem>>, vector<1x8x128xbf16>
    %51 = vector.shape_cast %50 : vector<1x8x128xbf16> to vector<8x128xbf16>
    %52 = vector.shape_cast %47 : vector<8x128xbf16> to vector<1x8x128xbf16>
    tpu.vector_store %arg13[%49, %c0_18, %c0_19], %52 {strides = array<i32>} : memref<8x8x128xbf16, #tpu.memory_space<vmem>>, vector<1x8x128xbf16>,
    %c1_i32 = arith.constant 1 : i32
    %53 = arith.index_cast %c1_i32 : i32 to index
    %c0_20 = arith.constant 0 : index
    %c0_21 = arith.constant 0 : index
    %54 = vector.load %arg14[%53, %c0_20, %c0_21] : memref<8x8x512xbf16, #tpu.memory_space<vmem>>, vector<1x8x512xbf16>
    %55 = vector.shape_cast %54 : vector<1x8x512xbf16> to vector<8x512xbf16>
    %56 = arith.truncf %46 : vector<8x128xf32> to vector<8x128xbf16>
    %cst_22 = arith.constant dense<0.000000e+00> : vector<8x512xf32>
    %57 = tpu.matmul %56, %1, %cst_22 {dimension_numbers = #tpu.dot_dimension_numbers<[1], [0], [0], [1], [0, 0, 1, 1], [], []>} : vector<8x128xbf16>, vector<128x512xbf16>, vector<8x512xf32> -> vector<8x512xf32>
    %58 = arith.extf %55 : vector<8x512xbf16> to vector<8x512xf32>
    %59 = arith.addf %58, %57 : vector<8x512xf32>
    %60 = vector.extract_strided_slice %59 {offsets = [0, 0], sizes = [8, 128], strides = [1, 1]} : vector<8x512xf32> to vector<8x128xf32>
    %61 = arith.negf %60 : vector<8x128xf32>
    %62 = math.exp %61 : vector<8x128xf32>
    %cst_23 = arith.constant 1.000000e+00 : f32
    %63 = vector.broadcast %cst_23 : f32 to vector<8x128xf32>
    %64 = arith.addf %63, %62 : vector<8x128xf32>
    %65 = arith.divf %63, %64 : vector<8x128xf32>
    %66 = vector.extract_strided_slice %59 {offsets = [0, 128], sizes = [8, 128], strides = [1, 1]} : vector<8x512xf32> to vector<8x128xf32>
    %67 = arith.negf %66 : vector<8x128xf32>
    %68 = math.exp %67 : vector<8x128xf32>
    %cst_24 = arith.constant 1.000000e+00 : f32
    %69 = vector.broadcast %cst_24 : f32 to vector<8x128xf32>
    %70 = arith.addf %69, %68 : vector<8x128xf32>
    %71 = arith.divf %69, %70 : vector<8x128xf32>
    %72 = vector.extract_strided_slice %59 {offsets = [0, 256], sizes = [8, 128], strides = [1, 1]} : vector<8x512xf32> to vector<8x128xf32>
    %73 = math.tanh %72 : vector<8x128xf32>
    %74 = vector.extract_strided_slice %59 {offsets = [0, 384], sizes = [8, 128], strides = [1, 1]} : vector<8x512xf32> to vector<8x128xf32>
    %75 = arith.negf %74 : vector<8x128xf32>
    %76 = math.exp %75 : vector<8x128xf32>
    %cst_25 = arith.constant 1.000000e+00 : f32
    %77 = vector.broadcast %cst_25 : f32 to vector<8x128xf32>
    %78 = arith.addf %77, %76 : vector<8x128xf32>
    %79 = arith.divf %77, %78 : vector<8x128xf32>
    %80 = arith.mulf %71, %44 : vector<8x128xf32>
    %81 = arith.mulf %65, %73 : vector<8x128xf32>
    %82 = arith.addf %80, %81 : vector<8x128xf32>
    %83 = math.tanh %82 : vector<8x128xf32>
    %84 = arith.mulf %79, %83 : vector<8x128xf32>
    %85 = arith.truncf %84 : vector<8x128xf32> to vector<8x128xbf16>
    %86 = arith.addi %5, %c1_i32 : i32
    %87 = arith.index_cast %86 : i32 to index
    %c0_26 = arith.constant 0 : index
    %c0_27 = arith.constant 0 : index
    %88 = vector.load %arg13[%87, %c0_26, %c0_27] : memref<8x8x128xbf16, #tpu.memory_space<vmem>>, vector<1x8x128xbf16>
    %89 = vector.shape_cast %88 : vector<1x8x128xbf16> to vector<8x128xbf16>
    %90 = vector.shape_cast %85 : vector<8x128xbf16> to vector<1x8x128xbf16>
    tpu.vector_store %arg13[%87, %c0_26, %c0_27], %90 {strides = array<i32>} : memref<8x8x128xbf16, #tpu.memory_space<vmem>>, vector<1x8x128xbf16>,
    %c2_i32 = arith.constant 2 : i32
    %91 = arith.index_cast %c2_i32 : i32 to index
    %c0_28 = arith.constant 0 : index
    %c0_29 = arith.constant 0 : index
    %92 = vector.load %arg14[%91, %c0_28, %c0_29] : memref<8x8x512xbf16, #tpu.memory_space<vmem>>, vector<1x8x512xbf16>
    %93 = vector.shape_cast %92 : vector<1x8x512xbf16> to vector<8x512xbf16>
    %94 = arith.truncf %84 : vector<8x128xf32> to vector<8x128xbf16>
    %cst_30 = arith.constant dense<0.000000e+00> : vector<8x512xf32>
    %95 = tpu.matmul %94, %1, %cst_30 {dimension_numbers = #tpu.dot_dimension_numbers<[1], [0], [0], [1], [0, 0, 1, 1], [], []>} : vector<8x128xbf16>, vector<128x512xbf16>, vector<8x512xf32> -> vector<8x512xf32>
    %96 = arith.extf %93 : vector<8x512xbf16> to vector<8x512xf32>
    %97 = arith.addf %96, %95 : vector<8x512xf32>
    %98 = vector.extract_strided_slice %97 {offsets = [0, 0], sizes = [8, 128], strides = [1, 1]} : vector<8x512xf32> to vector<8x128xf32>
    %99 = arith.negf %98 : vector<8x128xf32>
    %100 = math.exp %99 : vector<8x128xf32>
    %cst_31 = arith.constant 1.000000e+00 : f32
    %101 = vector.broadcast %cst_31 : f32 to vector<8x128xf32>
    %102 = arith.addf %101, %100 : vector<8x128xf32>
    %103 = arith.divf %101, %102 : vector<8x128xf32>
    %104 = vector.extract_strided_slice %97 {offsets = [0, 128], sizes = [8, 128], strides = [1, 1]} : vector<8x512xf32> to vector<8x128xf32>
    %105 = arith.negf %104 : vector<8x128xf32>
    %106 = math.exp %105 : vector<8x128xf32>
    %cst_32 = arith.constant 1.000000e+00 : f32
    %107 = vector.broadcast %cst_32 : f32 to vector<8x128xf32>
    %108 = arith.addf %107, %106 : vector<8x128xf32>
    %109 = arith.divf %107, %108 : vector<8x128xf32>
    %110 = vector.extract_strided_slice %97 {offsets = [0, 256], sizes = [8, 128], strides = [1, 1]} : vector<8x512xf32> to vector<8x128xf32>
    %111 = math.tanh %110 : vector<8x128xf32>
    %112 = vector.extract_strided_slice %97 {offsets = [0, 384], sizes = [8, 128], strides = [1, 1]} : vector<8x512xf32> to vector<8x128xf32>
    %113 = arith.negf %112 : vector<8x128xf32>
    %114 = math.exp %113 : vector<8x128xf32>
    %cst_33 = arith.constant 1.000000e+00 : f32
    %115 = vector.broadcast %cst_33 : f32 to vector<8x128xf32>
    %116 = arith.addf %115, %114 : vector<8x128xf32>
    %117 = arith.divf %115, %116 : vector<8x128xf32>
    %118 = arith.mulf %109, %82 : vector<8x128xf32>
    %119 = arith.mulf %103, %111 : vector<8x128xf32>
    %120 = arith.addf %118, %119 : vector<8x128xf32>
    %121 = math.tanh %120 : vector<8x128xf32>
    %122 = arith.mulf %117, %121 : vector<8x128xf32>
    %123 = arith.truncf %122 : vector<8x128xf32> to vector<8x128xbf16>
    %124 = arith.addi %5, %c2_i32 : i32
    %125 = arith.index_cast %124 : i32 to index
    %c0_34 = arith.constant 0 : index
    %c0_35 = arith.constant 0 : index
    %126 = vector.load %arg13[%125, %c0_34, %c0_35] : memref<8x8x128xbf16, #tpu.memory_space<vmem>>, vector<1x8x128xbf16>
    %127 = vector.shape_cast %126 : vector<1x8x128xbf16> to vector<8x128xbf16>
    %128 = vector.shape_cast %123 : vector<8x128xbf16> to vector<1x8x128xbf16>
    tpu.vector_store %arg13[%125, %c0_34, %c0_35], %128 {strides = array<i32>} : memref<8x8x128xbf16, #tpu.memory_space<vmem>>, vector<1x8x128xbf16>,
    %c3_i32 = arith.constant 3 : i32
    %129 = arith.index_cast %c3_i32 : i32 to index
    %c0_36 = arith.constant 0 : index
    %c0_37 = arith.constant 0 : index
    %130 = vector.load %arg14[%129, %c0_36, %c0_37] : memref<8x8x512xbf16, #tpu.memory_space<vmem>>, vector<1x8x512xbf16>
    %131 = vector.shape_cast %130 : vector<1x8x512xbf16> to vector<8x512xbf16>
    %132 = arith.truncf %122 : vector<8x128xf32> to vector<8x128xbf16>
    %cst_38 = arith.constant dense<0.000000e+00> : vector<8x512xf32>
    %133 = tpu.matmul %132, %1, %cst_38 {dimension_numbers = #tpu.dot_dimension_numbers<[1], [0], [0], [1], [0, 0, 1, 1], [], []>} : vector<8x128xbf16>, vector<128x512xbf16>, vector<8x512xf32> -> vector<8x512xf32>
    %134 = arith.extf %131 : vector<8x512xbf16> to vector<8x512xf32>
    %135 = arith.addf %134, %133 : vector<8x512xf32>
    %136 = vector.extract_strided_slice %135 {offsets = [0, 0], sizes = [8, 128], strides = [1, 1]} : vector<8x512xf32> to vector<8x128xf32>
    %137 = arith.negf %136 : vector<8x128xf32>
    %138 = math.exp %137 : vector<8x128xf32>
    %cst_39 = arith.constant 1.000000e+00 : f32
    %139 = vector.broadcast %cst_39 : f32 to vector<8x128xf32>
    %140 = arith.addf %139, %138 : vector<8x128xf32>
    %141 = arith.divf %139, %140 : vector<8x128xf32>
    %142 = vector.extract_strided_slice %135 {offsets = [0, 128], sizes = [8, 128], strides = [1, 1]} : vector<8x512xf32> to vector<8x128xf32>
    %143 = arith.negf %142 : vector<8x128xf32>
    %144 = math.exp %143 : vector<8x128xf32>
    %cst_40 = arith.constant 1.000000e+00 : f32
    %145 = vector.broadcast %cst_40 : f32 to vector<8x128xf32>
    %146 = arith.addf %145, %144 : vector<8x128xf32>
    %147 = arith.divf %145, %146 : vector<8x128xf32>
    %148 = vector.extract_strided_slice %135 {offsets = [0, 256], sizes = [8, 128], strides = [1, 1]} : vector<8x512xf32> to vector<8x128xf32>
    %149 = math.tanh %148 : vector<8x128xf32>
    %150 = vector.extract_strided_slice %135 {offsets = [0, 384], sizes = [8, 128], strides = [1, 1]} : vector<8x512xf32> to vector<8x128xf32>
    %151 = arith.negf %150 : vector<8x128xf32>
    %152 = math.exp %151 : vector<8x128xf32>
    %cst_41 = arith.constant 1.000000e+00 : f32
    %153 = vector.broadcast %cst_41 : f32 to vector<8x128xf32>
    %154 = arith.addf %153, %152 : vector<8x128xf32>
    %155 = arith.divf %153, %154 : vector<8x128xf32>
    %156 = arith.mulf %147, %120 : vector<8x128xf32>
    %157 = arith.mulf %141, %149 : vector<8x128xf32>
    %158 = arith.addf %156, %157 : vector<8x128xf32>
    %159 = math.tanh %158 : vector<8x128xf32>
    %160 = arith.mulf %155, %159 : vector<8x128xf32>
    %161 = arith.truncf %160 : vector<8x128xf32> to vector<8x128xbf16>
    %162 = arith.addi %5, %c3_i32 : i32
    %163 = arith.index_cast %162 : i32 to index
    %c0_42 = arith.constant 0 : index
    %c0_43 = arith.constant 0 : index
    %164 = vector.load %arg13[%163, %c0_42, %c0_43] : memref<8x8x128xbf16, #tpu.memory_space<vmem>>, vector<1x8x128xbf16>
    %165 = vector.shape_cast %164 : vector<1x8x128xbf16> to vector<8x128xbf16>
    %166 = vector.shape_cast %161 : vector<8x128xbf16> to vector<1x8x128xbf16>
    tpu.vector_store %arg13[%163, %c0_42, %c0_43], %166 {strides = array<i32>} : memref<8x8x128xbf16, #tpu.memory_space<vmem>>, vector<1x8x128xbf16>,
    %c4_i32 = arith.constant 4 : i32
    %167 = arith.index_cast %c4_i32 : i32 to index
    %c0_44 = arith.constant 0 : index
    %c0_45 = arith.constant 0 : index
    %168 = vector.load %arg14[%167, %c0_44, %c0_45] : memref<8x8x512xbf16, #tpu.memory_space<vmem>>, vector<1x8x512xbf16>
    %169 = vector.shape_cast %168 : vector<1x8x512xbf16> to vector<8x512xbf16>
    %170 = arith.truncf %160 : vector<8x128xf32> to vector<8x128xbf16>
    %cst_46 = arith.constant dense<0.000000e+00> : vector<8x512xf32>
    %171 = tpu.matmul %170, %1, %cst_46 {dimension_numbers = #tpu.dot_dimension_numbers<[1], [0], [0], [1], [0, 0, 1, 1], [], []>} : vector<8x128xbf16>, vector<128x512xbf16>, vector<8x512xf32> -> vector<8x512xf32>
    %172 = arith.extf %169 : vector<8x512xbf16> to vector<8x512xf32>
    %173 = arith.addf %172, %171 : vector<8x512xf32>
    %174 = vector.extract_strided_slice %173 {offsets = [0, 0], sizes = [8, 128], strides = [1, 1]} : vector<8x512xf32> to vector<8x128xf32>
    %175 = arith.negf %174 : vector<8x128xf32>
    %176 = math.exp %175 : vector<8x128xf32>
    %cst_47 = arith.constant 1.000000e+00 : f32
    %177 = vector.broadcast %cst_47 : f32 to vector<8x128xf32>
    %178 = arith.addf %177, %176 : vector<8x128xf32>
    %179 = arith.divf %177, %178 : vector<8x128xf32>
    %180 = vector.extract_strided_slice %173 {offsets = [0, 128], sizes = [8, 128], strides = [1, 1]} : vector<8x512xf32> to vector<8x128xf32>
    %181 = arith.negf %180 : vector<8x128xf32>
    %182 = math.exp %181 : vector<8x128xf32>
    %cst_48 = arith.constant 1.000000e+00 : f32
    %183 = vector.broadcast %cst_48 : f32 to vector<8x128xf32>
    %184 = arith.addf %183, %182 : vector<8x128xf32>
    %185 = arith.divf %183, %184 : vector<8x128xf32>
    %186 = vector.extract_strided_slice %173 {offsets = [0, 256], sizes = [8, 128], strides = [1, 1]} : vector<8x512xf32> to vector<8x128xf32>
    %187 = math.tanh %186 : vector<8x128xf32>
    %188 = vector.extract_strided_slice %173 {offsets = [0, 384], sizes = [8, 128], strides = [1, 1]} : vector<8x512xf32> to vector<8x128xf32>
    %189 = arith.negf %188 : vector<8x128xf32>
    %190 = math.exp %189 : vector<8x128xf32>
    %cst_49 = arith.constant 1.000000e+00 : f32
    %191 = vector.broadcast %cst_49 : f32 to vector<8x128xf32>
    %192 = arith.addf %191, %190 : vector<8x128xf32>
    %193 = arith.divf %191, %192 : vector<8x128xf32>
    %194 = arith.mulf %185, %158 : vector<8x128xf32>
    %195 = arith.mulf %179, %187 : vector<8x128xf32>
    %196 = arith.addf %194, %195 : vector<8x128xf32>
    %197 = math.tanh %196 : vector<8x128xf32>
    %198 = arith.mulf %193, %197 : vector<8x128xf32>
    %199 = arith.truncf %198 : vector<8x128xf32> to vector<8x128xbf16>
    %200 = arith.addi %5, %c4_i32 : i32
    %201 = arith.index_cast %200 : i32 to index
    %c0_50 = arith.constant 0 : index
    %c0_51 = arith.constant 0 : index
    %202 = vector.load %arg13[%201, %c0_50, %c0_51] : memref<8x8x128xbf16, #tpu.memory_space<vmem>>, vector<1x8x128xbf16>
    %203 = vector.shape_cast %202 : vector<1x8x128xbf16> to vector<8x128xbf16>
    %204 = vector.shape_cast %199 : vector<8x128xbf16> to vector<1x8x128xbf16>
    tpu.vector_store %arg13[%201, %c0_50, %c0_51], %204 {strides = array<i32>} : memref<8x8x128xbf16, #tpu.memory_space<vmem>>, vector<1x8x128xbf16>,
    %c5_i32 = arith.constant 5 : i32
    %205 = arith.index_cast %c5_i32 : i32 to index
    %c0_52 = arith.constant 0 : index
    %c0_53 = arith.constant 0 : index
    %206 = vector.load %arg14[%205, %c0_52, %c0_53] : memref<8x8x512xbf16, #tpu.memory_space<vmem>>, vector<1x8x512xbf16>
    %207 = vector.shape_cast %206 : vector<1x8x512xbf16> to vector<8x512xbf16>
    %208 = arith.truncf %198 : vector<8x128xf32> to vector<8x128xbf16>
    %cst_54 = arith.constant dense<0.000000e+00> : vector<8x512xf32>
    %209 = tpu.matmul %208, %1, %cst_54 {dimension_numbers = #tpu.dot_dimension_numbers<[1], [0], [0], [1], [0, 0, 1, 1], [], []>} : vector<8x128xbf16>, vector<128x512xbf16>, vector<8x512xf32> -> vector<8x512xf32>
    %210 = arith.extf %207 : vector<8x512xbf16> to vector<8x512xf32>
    %211 = arith.addf %210, %209 : vector<8x512xf32>
    %212 = vector.extract_strided_slice %211 {offsets = [0, 0], sizes = [8, 128], strides = [1, 1]} : vector<8x512xf32> to vector<8x128xf32>
    %213 = arith.negf %212 : vector<8x128xf32>
    %214 = math.exp %213 : vector<8x128xf32>
    %cst_55 = arith.constant 1.000000e+00 : f32
    %215 = vector.broadcast %cst_55 : f32 to vector<8x128xf32>
    %216 = arith.addf %215, %214 : vector<8x128xf32>
    %217 = arith.divf %215, %216 : vector<8x128xf32>
    %218 = vector.extract_strided_slice %211 {offsets = [0, 128], sizes = [8, 128], strides = [1, 1]} : vector<8x512xf32> to vector<8x128xf32>
    %219 = arith.negf %218 : vector<8x128xf32>
    %220 = math.exp %219 : vector<8x128xf32>
    %cst_56 = arith.constant 1.000000e+00 : f32
    %221 = vector.broadcast %cst_56 : f32 to vector<8x128xf32>
    %222 = arith.addf %221, %220 : vector<8x128xf32>
    %223 = arith.divf %221, %222 : vector<8x128xf32>
    %224 = vector.extract_strided_slice %211 {offsets = [0, 256], sizes = [8, 128], strides = [1, 1]} : vector<8x512xf32> to vector<8x128xf32>
    %225 = math.tanh %224 : vector<8x128xf32>
    %226 = vector.extract_strided_slice %211 {offsets = [0, 384], sizes = [8, 128], strides = [1, 1]} : vector<8x512xf32> to vector<8x128xf32>
    %227 = arith.negf %226 : vector<8x128xf32>
    %228 = math.exp %227 : vector<8x128xf32>
    %cst_57 = arith.constant 1.000000e+00 : f32
    %229 = vector.broadcast %cst_57 : f32 to vector<8x128xf32>
    %230 = arith.addf %229, %228 : vector<8x128xf32>
    %231 = arith.divf %229, %230 : vector<8x128xf32>
    %232 = arith.mulf %223, %196 : vector<8x128xf32>
    %233 = arith.mulf %217, %225 : vector<8x128xf32>
    %234 = arith.addf %232, %233 : vector<8x128xf32>
    %235 = math.tanh %234 : vector<8x128xf32>
    %236 = arith.mulf %231, %235 : vector<8x128xf32>
    %237 = arith.truncf %236 : vector<8x128xf32> to vector<8x128xbf16>
    %238 = arith.addi %5, %c5_i32 : i32
    %239 = arith.index_cast %238 : i32 to index
    %c0_58 = arith.constant 0 : index
    %c0_59 = arith.constant 0 : index
    %240 = vector.load %arg13[%239, %c0_58, %c0_59] : memref<8x8x128xbf16, #tpu.memory_space<vmem>>, vector<1x8x128xbf16>
    %241 = vector.shape_cast %240 : vector<1x8x128xbf16> to vector<8x128xbf16>
    %242 = vector.shape_cast %237 : vector<8x128xbf16> to vector<1x8x128xbf16>
    tpu.vector_store %arg13[%239, %c0_58, %c0_59], %242 {strides = array<i32>} : memref<8x8x128xbf16, #tpu.memory_space<vmem>>, vector<1x8x128xbf16>,
    %c6_i32 = arith.constant 6 : i32
    %243 = arith.index_cast %c6_i32 : i32 to index
    %c0_60 = arith.constant 0 : index
    %c0_61 = arith.constant 0 : index
    %244 = vector.load %arg14[%243, %c0_60, %c0_61] : memref<8x8x512xbf16, #tpu.memory_space<vmem>>, vector<1x8x512xbf16>
    %245 = vector.shape_cast %244 : vector<1x8x512xbf16> to vector<8x512xbf16>
    %246 = arith.truncf %236 : vector<8x128xf32> to vector<8x128xbf16>
    %cst_62 = arith.constant dense<0.000000e+00> : vector<8x512xf32>
    %247 = tpu.matmul %246, %1, %cst_62 {dimension_numbers = #tpu.dot_dimension_numbers<[1], [0], [0], [1], [0, 0, 1, 1], [], []>} : vector<8x128xbf16>, vector<128x512xbf16>, vector<8x512xf32> -> vector<8x512xf32>
    %248 = arith.extf %245 : vector<8x512xbf16> to vector<8x512xf32>
    %249 = arith.addf %248, %247 : vector<8x512xf32>
    %250 = vector.extract_strided_slice %249 {offsets = [0, 0], sizes = [8, 128], strides = [1, 1]} : vector<8x512xf32> to vector<8x128xf32>
    %251 = arith.negf %250 : vector<8x128xf32>
    %252 = math.exp %251 : vector<8x128xf32>
    %cst_63 = arith.constant 1.000000e+00 : f32
    %253 = vector.broadcast %cst_63 : f32 to vector<8x128xf32>
    %254 = arith.addf %253, %252 : vector<8x128xf32>
    %255 = arith.divf %253, %254 : vector<8x128xf32>
    %256 = vector.extract_strided_slice %249 {offsets = [0, 128], sizes = [8, 128], strides = [1, 1]} : vector<8x512xf32> to vector<8x128xf32>
    %257 = arith.negf %256 : vector<8x128xf32>
    %258 = math.exp %257 : vector<8x128xf32>
    %cst_64 = arith.constant 1.000000e+00 : f32
    %259 = vector.broadcast %cst_64 : f32 to vector<8x128xf32>
    %260 = arith.addf %259, %258 : vector<8x128xf32>
    %261 = arith.divf %259, %260 : vector<8x128xf32>
    %262 = vector.extract_strided_slice %249 {offsets = [0, 256], sizes = [8, 128], strides = [1, 1]} : vector<8x512xf32> to vector<8x128xf32>
    %263 = math.tanh %262 : vector<8x128xf32>
    %264 = vector.extract_strided_slice %249 {offsets = [0, 384], sizes = [8, 128], strides = [1, 1]} : vector<8x512xf32> to vector<8x128xf32>
    %265 = arith.negf %264 : vector<8x128xf32>
    %266 = math.exp %265 : vector<8x128xf32>
    %cst_65 = arith.constant 1.000000e+00 : f32
    %267 = vector.broadcast %cst_65 : f32 to vector<8x128xf32>
    %268 = arith.addf %267, %266 : vector<8x128xf32>
    %269 = arith.divf %267, %268 : vector<8x128xf32>
    %270 = arith.mulf %261, %234 : vector<8x128xf32>
    %271 = arith.mulf %255, %263 : vector<8x128xf32>
    %272 = arith.addf %270, %271 : vector<8x128xf32>
    %273 = math.tanh %272 : vector<8x128xf32>
    %274 = arith.mulf %269, %273 : vector<8x128xf32>
    %275 = arith.truncf %274 : vector<8x128xf32> to vector<8x128xbf16>
    %276 = arith.addi %5, %c6_i32 : i32
    %277 = arith.index_cast %276 : i32 to index
    %c0_66 = arith.constant 0 : index
    %c0_67 = arith.constant 0 : index
    %278 = vector.load %arg13[%277, %c0_66, %c0_67] : memref<8x8x128xbf16, #tpu.memory_space<vmem>>, vector<1x8x128xbf16>
    %279 = vector.shape_cast %278 : vector<1x8x128xbf16> to vector<8x128xbf16>
    %280 = vector.shape_cast %275 : vector<8x128xbf16> to vector<1x8x128xbf16>
    tpu.vector_store %arg13[%277, %c0_66, %c0_67], %280 {strides = array<i32>} : memref<8x8x128xbf16, #tpu.memory_space<vmem>>, vector<1x8x128xbf16>,
    %c7_i32 = arith.constant 7 : i32
    %281 = arith.index_cast %c7_i32 : i32 to index
    %c0_68 = arith.constant 0 : index
    %c0_69 = arith.constant 0 : index
    %282 = vector.load %arg14[%281, %c0_68, %c0_69] : memref<8x8x512xbf16, #tpu.memory_space<vmem>>, vector<1x8x512xbf16>
    %283 = vector.shape_cast %282 : vector<1x8x512xbf16> to vector<8x512xbf16>
    %284 = arith.truncf %274 : vector<8x128xf32> to vector<8x128xbf16>
    %cst_70 = arith.constant dense<0.000000e+00> : vector<8x512xf32>
    %285 = tpu.matmul %284, %1, %cst_70 {dimension_numbers = #tpu.dot_dimension_numbers<[1], [0], [0], [1], [0, 0, 1, 1], [], []>} : vector<8x128xbf16>, vector<128x512xbf16>, vector<8x512xf32> -> vector<8x512xf32>
    %286 = arith.extf %283 : vector<8x512xbf16> to vector<8x512xf32>
    %287 = arith.addf %286, %285 : vector<8x512xf32>
    %288 = vector.extract_strided_slice %287 {offsets = [0, 0], sizes = [8, 128], strides = [1, 1]} : vector<8x512xf32> to vector<8x128xf32>
    %289 = arith.negf %288 : vector<8x128xf32>
    %290 = math.exp %289 : vector<8x128xf32>
    %cst_71 = arith.constant 1.000000e+00 : f32
    %291 = vector.broadcast %cst_71 : f32 to vector<8x128xf32>
    %292 = arith.addf %291, %290 : vector<8x128xf32>
    %293 = arith.divf %291, %292 : vector<8x128xf32>
    %294 = vector.extract_strided_slice %287 {offsets = [0, 128], sizes = [8, 128], strides = [1, 1]} : vector<8x512xf32> to vector<8x128xf32>
    %295 = arith.negf %294 : vector<8x128xf32>
    %296 = math.exp %295 : vector<8x128xf32>
    %cst_72 = arith.constant 1.000000e+00 : f32
    %297 = vector.broadcast %cst_72 : f32 to vector<8x128xf32>
    %298 = arith.addf %297, %296 : vector<8x128xf32>
    %299 = arith.divf %297, %298 : vector<8x128xf32>
    %300 = vector.extract_strided_slice %287 {offsets = [0, 256], sizes = [8, 128], strides = [1, 1]} : vector<8x512xf32> to vector<8x128xf32>
    %301 = math.tanh %300 : vector<8x128xf32>
    %302 = vector.extract_strided_slice %287 {offsets = [0, 384], sizes = [8, 128], strides = [1, 1]} : vector<8x512xf32> to vector<8x128xf32>
    %303 = arith.negf %302 : vector<8x128xf32>
    %304 = math.exp %303 : vector<8x128xf32>
    %cst_73 = arith.constant 1.000000e+00 : f32
    %305 = vector.broadcast %cst_73 : f32 to vector<8x128xf32>
    %306 = arith.addf %305, %304 : vector<8x128xf32>
    %307 = arith.divf %305, %306 : vector<8x128xf32>
    %308 = arith.mulf %299, %272 : vector<8x128xf32>
    %309 = arith.mulf %293, %301 : vector<8x128xf32>
    %310 = arith.addf %308, %309 : vector<8x128xf32>
    %311 = math.tanh %310 : vector<8x128xf32>
    %312 = arith.mulf %307, %311 : vector<8x128xf32>
    %313 = arith.truncf %312 : vector<8x128xf32> to vector<8x128xbf16>
    %314 = arith.addi %5, %c7_i32 : i32
    %315 = arith.index_cast %314 : i32 to index
    %c0_74 = arith.constant 0 : index
    %c0_75 = arith.constant 0 : index
    %316 = vector.load %arg13[%315, %c0_74, %c0_75] : memref<8x8x128xbf16, #tpu.memory_space<vmem>>, vector<1x8x128xbf16>
    %317 = vector.shape_cast %316 : vector<1x8x128xbf16> to vector<8x128xbf16>
    %318 = vector.shape_cast %313 : vector<8x128xbf16> to vector<1x8x128xbf16>
    tpu.vector_store %arg13[%315, %c0_74, %c0_75], %318 {strides = array<i32>} : memref<8x8x128xbf16, #tpu.memory_space<vmem>>, vector<1x8x128xbf16>,
    %c8_i32_76 = arith.constant 8 : i32
    %c1_i32_77 = arith.constant 1 : i32
    %c0_78 = arith.constant 0 : index
    %c0_79 = arith.constant 0 : index
    %319 = vector.load %arg5[%c0_78, %c0_79] : memref<128x512xbf16, #tpu.memory_space<vmem>>, vector<128x512xbf16>
    %c0_80 = arith.constant 0 : index
    %c0_81 = arith.constant 0 : index
    %320 = vector.load %arg6[%c0_80, %c0_81] : memref<128x512xbf16, #tpu.memory_space<vmem>>, vector<128x512xbf16>
    %c0_82 = arith.constant 0 : index
    %c0_83 = arith.constant 0 : index
    %321 = vector.load %arg7[%c0_82, %c0_83] : memref<1x512xf32, #tpu.memory_space<vmem>>, vector<1x512xf32>
    %cst_84 = arith.constant 0.000000e+00 : f32
    %322 = vector.broadcast %cst_84 : f32 to vector<8x128xf32>
    %c0_i32_85 = arith.constant 0 : i32
    %c8_i32_86 = arith.constant 8 : i32
    %323 = arith.muli %c0_i32_85, %c8_i32_86 : i32
    %324 = tpu.assume_multiple %323, 8 : i32
    %325 = arith.index_cast %324 : i32 to index
    %c0_87 = arith.constant 0 : index
    %c0_88 = arith.constant 0 : index
    %326 = vector.load %arg13[%325, %c0_87, %c0_88] : memref<8x8x128xbf16, #tpu.memory_space<vmem>>, vector<8x8x128xbf16>
    %327 = vector.shape_cast %326 : vector<8x8x128xbf16> to vector<64x128xbf16>
    %cst_89 = arith.constant dense<0.000000e+00> : vector<64x512xf32>
    %328 = tpu.matmul %327, %319, %cst_89 {dimension_numbers = #tpu.dot_dimension_numbers<[1], [0], [0], [1], [0, 0, 1, 1], [], []>} : vector<64x128xbf16>, vector<128x512xbf16>, vector<64x512xf32> -> vector<64x512xf32>
    %329 = vector.broadcast %321 : vector<1x512xf32> to vector<64x512xf32>
    %330 = arith.addf %328, %329 : vector<64x512xf32>
    %331 = arith.truncf %330 : vector<64x512xf32> to vector<64x512xbf16>
    %332 = vector.shape_cast %331 : vector<64x512xbf16> to vector<8x8x512xbf16>
    %c0_90 = arith.constant 0 : index
    %c0_91 = arith.constant 0 : index
    %c0_92 = arith.constant 0 : index
    %333 = vector.load %arg14[%c0_90, %c0_91, %c0_92] : memref<8x8x512xbf16, #tpu.memory_space<vmem>>, vector<8x8x512xbf16>
    tpu.vector_store %arg14[%c0_90, %c0_91, %c0_92], %332 {strides = array<i32>} : memref<8x8x512xbf16, #tpu.memory_space<vmem>>, vector<8x8x512xbf16>,
    %c0_i32_93 = arith.constant 0 : i32
    %334 = arith.index_cast %c0_i32_93 : i32 to index
    %c0_94 = arith.constant 0 : index
    %c0_95 = arith.constant 0 : index
    %335 = vector.load %arg14[%334, %c0_94, %c0_95] : memref<8x8x512xbf16, #tpu.memory_space<vmem>>, vector<1x8x512xbf16>
    %336 = vector.shape_cast %335 : vector<1x8x512xbf16> to vector<8x512xbf16>
    %337 = arith.truncf %322 : vector<8x128xf32> to vector<8x128xbf16>
    %cst_96 = arith.constant dense<0.000000e+00> : vector<8x512xf32>
    %338 = tpu.matmul %337, %320, %cst_96 {dimension_numbers = #tpu.dot_dimension_numbers<[1], [0], [0], [1], [0, 0, 1, 1], [], []>} : vector<8x128xbf16>, vector<128x512xbf16>, vector<8x512xf32> -> vector<8x512xf32>
    %339 = arith.extf %336 : vector<8x512xbf16> to vector<8x512xf32>
    %340 = arith.addf %339, %338 : vector<8x512xf32>
    %341 = vector.extract_strided_slice %340 {offsets = [0, 0], sizes = [8, 128], strides = [1, 1]} : vector<8x512xf32> to vector<8x128xf32>
    %342 = arith.negf %341 : vector<8x128xf32>
    %343 = math.exp %342 : vector<8x128xf32>
    %cst_97 = arith.constant 1.000000e+00 : f32
    %344 = vector.broadcast %cst_97 : f32 to vector<8x128xf32>
    %345 = arith.addf %344, %343 : vector<8x128xf32>
    %346 = arith.divf %344, %345 : vector<8x128xf32>
    %347 = vector.extract_strided_slice %340 {offsets = [0, 128], sizes = [8, 128], strides = [1, 1]} : vector<8x512xf32> to vector<8x128xf32>
    %348 = arith.negf %347 : vector<8x128xf32>
    %349 = math.exp %348 : vector<8x128xf32>
    %cst_98 = arith.constant 1.000000e+00 : f32
    %350 = vector.broadcast %cst_98 : f32 to vector<8x128xf32>
    %351 = arith.addf %350, %349 : vector<8x128xf32>
    %352 = arith.divf %350, %351 : vector<8x128xf32>
    %353 = vector.extract_strided_slice %340 {offsets = [0, 256], sizes = [8, 128], strides = [1, 1]} : vector<8x512xf32> to vector<8x128xf32>
    %354 = math.tanh %353 : vector<8x128xf32>
    %355 = vector.extract_strided_slice %340 {offsets = [0, 384], sizes = [8, 128], strides = [1, 1]} : vector<8x512xf32> to vector<8x128xf32>
    %356 = arith.negf %355 : vector<8x128xf32>
    %357 = math.exp %356 : vector<8x128xf32>
    %cst_99 = arith.constant 1.000000e+00 : f32
    %358 = vector.broadcast %cst_99 : f32 to vector<8x128xf32>
    %359 = arith.addf %358, %357 : vector<8x128xf32>
    %360 = arith.divf %358, %359 : vector<8x128xf32>
    %361 = arith.mulf %352, %322 : vector<8x128xf32>
    %362 = arith.mulf %346, %354 : vector<8x128xf32>
    %363 = arith.addf %361, %362 : vector<8x128xf32>
    %364 = math.tanh %363 : vector<8x128xf32>
    %365 = arith.mulf %360, %364 : vector<8x128xf32>
    %366 = arith.truncf %365 : vector<8x128xf32> to vector<8x128xbf16>
    %367 = arith.addi %324, %c0_i32_93 : i32
    %368 = arith.index_cast %367 : i32 to index
    %c0_100 = arith.constant 0 : index
    %c0_101 = arith.constant 0 : index
    %369 = vector.load %arg13[%368, %c0_100, %c0_101] : memref<8x8x128xbf16, #tpu.memory_space<vmem>>, vector<1x8x128xbf16>
    %370 = vector.shape_cast %369 : vector<1x8x128xbf16> to vector<8x128xbf16>
    %371 = vector.shape_cast %366 : vector<8x128xbf16> to vector<1x8x128xbf16>
    tpu.vector_store %arg13[%368, %c0_100, %c0_101], %371 {strides = array<i32>} : memref<8x8x128xbf16, #tpu.memory_space<vmem>>, vector<1x8x128xbf16>,
    %c1_i32_102 = arith.constant 1 : i32
    %372 = arith.index_cast %c1_i32_102 : i32 to index
    %c0_103 = arith.constant 0 : index
    %c0_104 = arith.constant 0 : index
    %373 = vector.load %arg14[%372, %c0_103, %c0_104] : memref<8x8x512xbf16, #tpu.memory_space<vmem>>, vector<1x8x512xbf16>
    %374 = vector.shape_cast %373 : vector<1x8x512xbf16> to vector<8x512xbf16>
    %375 = arith.truncf %365 : vector<8x128xf32> to vector<8x128xbf16>
    %cst_105 = arith.constant dense<0.000000e+00> : vector<8x512xf32>
    %376 = tpu.matmul %375, %320, %cst_105 {dimension_numbers = #tpu.dot_dimension_numbers<[1], [0], [0], [1], [0, 0, 1, 1], [], []>} : vector<8x128xbf16>, vector<128x512xbf16>, vector<8x512xf32> -> vector<8x512xf32>
    %377 = arith.extf %374 : vector<8x512xbf16> to vector<8x512xf32>
    %378 = arith.addf %377, %376 : vector<8x512xf32>
    %379 = vector.extract_strided_slice %378 {offsets = [0, 0], sizes = [8, 128], strides = [1, 1]} : vector<8x512xf32> to vector<8x128xf32>
    %380 = arith.negf %379 : vector<8x128xf32>
    %381 = math.exp %380 : vector<8x128xf32>
    %cst_106 = arith.constant 1.000000e+00 : f32
    %382 = vector.broadcast %cst_106 : f32 to vector<8x128xf32>
    %383 = arith.addf %382, %381 : vector<8x128xf32>
    %384 = arith.divf %382, %383 : vector<8x128xf32>
    %385 = vector.extract_strided_slice %378 {offsets = [0, 128], sizes = [8, 128], strides = [1, 1]} : vector<8x512xf32> to vector<8x128xf32>
    %386 = arith.negf %385 : vector<8x128xf32>
    %387 = math.exp %386 : vector<8x128xf32>
    %cst_107 = arith.constant 1.000000e+00 : f32
    %388 = vector.broadcast %cst_107 : f32 to vector<8x128xf32>
    %389 = arith.addf %388, %387 : vector<8x128xf32>
    %390 = arith.divf %388, %389 : vector<8x128xf32>
    %391 = vector.extract_strided_slice %378 {offsets = [0, 256], sizes = [8, 128], strides = [1, 1]} : vector<8x512xf32> to vector<8x128xf32>
    %392 = math.tanh %391 : vector<8x128xf32>
    %393 = vector.extract_strided_slice %378 {offsets = [0, 384], sizes = [8, 128], strides = [1, 1]} : vector<8x512xf32> to vector<8x128xf32>
    %394 = arith.negf %393 : vector<8x128xf32>
    %395 = math.exp %394 : vector<8x128xf32>
    %cst_108 = arith.constant 1.000000e+00 : f32
    %396 = vector.broadcast %cst_108 : f32 to vector<8x128xf32>
    %397 = arith.addf %396, %395 : vector<8x128xf32>
    %398 = arith.divf %396, %397 : vector<8x128xf32>
    %399 = arith.mulf %390, %363 : vector<8x128xf32>
    %400 = arith.mulf %384, %392 : vector<8x128xf32>
    %401 = arith.addf %399, %400 : vector<8x128xf32>
    %402 = math.tanh %401 : vector<8x128xf32>
    %403 = arith.mulf %398, %402 : vector<8x128xf32>
    %404 = arith.truncf %403 : vector<8x128xf32> to vector<8x128xbf16>
    %405 = arith.addi %324, %c1_i32_102 : i32
    %406 = arith.index_cast %405 : i32 to index
    %c0_109 = arith.constant 0 : index
    %c0_110 = arith.constant 0 : index
    %407 = vector.load %arg13[%406, %c0_109, %c0_110] : memref<8x8x128xbf16, #tpu.memory_space<vmem>>, vector<1x8x128xbf16>
    %408 = vector.shape_cast %407 : vector<1x8x128xbf16> to vector<8x128xbf16>
    %409 = vector.shape_cast %404 : vector<8x128xbf16> to vector<1x8x128xbf16>
    tpu.vector_store %arg13[%406, %c0_109, %c0_110], %409 {strides = array<i32>} : memref<8x8x128xbf16, #tpu.memory_space<vmem>>, vector<1x8x128xbf16>,
    %c2_i32_111 = arith.constant 2 : i32
    %410 = arith.index_cast %c2_i32_111 : i32 to index
    %c0_112 = arith.constant 0 : index
    %c0_113 = arith.constant 0 : index
    %411 = vector.load %arg14[%410, %c0_112, %c0_113] : memref<8x8x512xbf16, #tpu.memory_space<vmem>>, vector<1x8x512xbf16>
    %412 = vector.shape_cast %411 : vector<1x8x512xbf16> to vector<8x512xbf16>
    %413 = arith.truncf %403 : vector<8x128xf32> to vector<8x128xbf16>
    %cst_114 = arith.constant dense<0.000000e+00> : vector<8x512xf32>
    %414 = tpu.matmul %413, %320, %cst_114 {dimension_numbers = #tpu.dot_dimension_numbers<[1], [0], [0], [1], [0, 0, 1, 1], [], []>} : vector<8x128xbf16>, vector<128x512xbf16>, vector<8x512xf32> -> vector<8x512xf32>
    %415 = arith.extf %412 : vector<8x512xbf16> to vector<8x512xf32>
    %416 = arith.addf %415, %414 : vector<8x512xf32>
    %417 = vector.extract_strided_slice %416 {offsets = [0, 0], sizes = [8, 128], strides = [1, 1]} : vector<8x512xf32> to vector<8x128xf32>
    %418 = arith.negf %417 : vector<8x128xf32>
    %419 = math.exp %418 : vector<8x128xf32>
    %cst_115 = arith.constant 1.000000e+00 : f32
    %420 = vector.broadcast %cst_115 : f32 to vector<8x128xf32>
    %421 = arith.addf %420, %419 : vector<8x128xf32>
    %422 = arith.divf %420, %421 : vector<8x128xf32>
    %423 = vector.extract_strided_slice %416 {offsets = [0, 128], sizes = [8, 128], strides = [1, 1]} : vector<8x512xf32> to vector<8x128xf32>
    %424 = arith.negf %423 : vector<8x128xf32>
    %425 = math.exp %424 : vector<8x128xf32>
    %cst_116 = arith.constant 1.000000e+00 : f32
    %426 = vector.broadcast %cst_116 : f32 to vector<8x128xf32>
    %427 = arith.addf %426, %425 : vector<8x128xf32>
    %428 = arith.divf %426, %427 : vector<8x128xf32>
    %429 = vector.extract_strided_slice %416 {offsets = [0, 256], sizes = [8, 128], strides = [1, 1]} : vector<8x512xf32> to vector<8x128xf32>
    %430 = math.tanh %429 : vector<8x128xf32>
    %431 = vector.extract_strided_slice %416 {offsets = [0, 384], sizes = [8, 128], strides = [1, 1]} : vector<8x512xf32> to vector<8x128xf32>
    %432 = arith.negf %431 : vector<8x128xf32>
    %433 = math.exp %432 : vector<8x128xf32>
    %cst_117 = arith.constant 1.000000e+00 : f32
    %434 = vector.broadcast %cst_117 : f32 to vector<8x128xf32>
    %435 = arith.addf %434, %433 : vector<8x128xf32>
    %436 = arith.divf %434, %435 : vector<8x128xf32>
    %437 = arith.mulf %428, %401 : vector<8x128xf32>
    %438 = arith.mulf %422, %430 : vector<8x128xf32>
    %439 = arith.addf %437, %438 : vector<8x128xf32>
    %440 = math.tanh %439 : vector<8x128xf32>
    %441 = arith.mulf %436, %440 : vector<8x128xf32>
    %442 = arith.truncf %441 : vector<8x128xf32> to vector<8x128xbf16>
    %443 = arith.addi %324, %c2_i32_111 : i32
    %444 = arith.index_cast %443 : i32 to index
    %c0_118 = arith.constant 0 : index
    %c0_119 = arith.constant 0 : index
    %445 = vector.load %arg13[%444, %c0_118, %c0_119] : memref<8x8x128xbf16, #tpu.memory_space<vmem>>, vector<1x8x128xbf16>
    %446 = vector.shape_cast %445 : vector<1x8x128xbf16> to vector<8x128xbf16>
    %447 = vector.shape_cast %442 : vector<8x128xbf16> to vector<1x8x128xbf16>
    tpu.vector_store %arg13[%444, %c0_118, %c0_119], %447 {strides = array<i32>} : memref<8x8x128xbf16, #tpu.memory_space<vmem>>, vector<1x8x128xbf16>,
    %c3_i32_120 = arith.constant 3 : i32
    %448 = arith.index_cast %c3_i32_120 : i32 to index
    %c0_121 = arith.constant 0 : index
    %c0_122 = arith.constant 0 : index
    %449 = vector.load %arg14[%448, %c0_121, %c0_122] : memref<8x8x512xbf16, #tpu.memory_space<vmem>>, vector<1x8x512xbf16>
    %450 = vector.shape_cast %449 : vector<1x8x512xbf16> to vector<8x512xbf16>
    %451 = arith.truncf %441 : vector<8x128xf32> to vector<8x128xbf16>
    %cst_123 = arith.constant dense<0.000000e+00> : vector<8x512xf32>
    %452 = tpu.matmul %451, %320, %cst_123 {dimension_numbers = #tpu.dot_dimension_numbers<[1], [0], [0], [1], [0, 0, 1, 1], [], []>} : vector<8x128xbf16>, vector<128x512xbf16>, vector<8x512xf32> -> vector<8x512xf32>
    %453 = arith.extf %450 : vector<8x512xbf16> to vector<8x512xf32>
    %454 = arith.addf %453, %452 : vector<8x512xf32>
    %455 = vector.extract_strided_slice %454 {offsets = [0, 0], sizes = [8, 128], strides = [1, 1]} : vector<8x512xf32> to vector<8x128xf32>
    %456 = arith.negf %455 : vector<8x128xf32>
    %457 = math.exp %456 : vector<8x128xf32>
    %cst_124 = arith.constant 1.000000e+00 : f32
    %458 = vector.broadcast %cst_124 : f32 to vector<8x128xf32>
    %459 = arith.addf %458, %457 : vector<8x128xf32>
    %460 = arith.divf %458, %459 : vector<8x128xf32>
    %461 = vector.extract_strided_slice %454 {offsets = [0, 128], sizes = [8, 128], strides = [1, 1]} : vector<8x512xf32> to vector<8x128xf32>
    %462 = arith.negf %461 : vector<8x128xf32>
    %463 = math.exp %462 : vector<8x128xf32>
    %cst_125 = arith.constant 1.000000e+00 : f32
    %464 = vector.broadcast %cst_125 : f32 to vector<8x128xf32>
    %465 = arith.addf %464, %463 : vector<8x128xf32>
    %466 = arith.divf %464, %465 : vector<8x128xf32>
    %467 = vector.extract_strided_slice %454 {offsets = [0, 256], sizes = [8, 128], strides = [1, 1]} : vector<8x512xf32> to vector<8x128xf32>
    %468 = math.tanh %467 : vector<8x128xf32>
    %469 = vector.extract_strided_slice %454 {offsets = [0, 384], sizes = [8, 128], strides = [1, 1]} : vector<8x512xf32> to vector<8x128xf32>
    %470 = arith.negf %469 : vector<8x128xf32>
    %471 = math.exp %470 : vector<8x128xf32>
    %cst_126 = arith.constant 1.000000e+00 : f32
    %472 = vector.broadcast %cst_126 : f32 to vector<8x128xf32>
    %473 = arith.addf %472, %471 : vector<8x128xf32>
    %474 = arith.divf %472, %473 : vector<8x128xf32>
    %475 = arith.mulf %466, %439 : vector<8x128xf32>
    %476 = arith.mulf %460, %468 : vector<8x128xf32>
    %477 = arith.addf %475, %476 : vector<8x128xf32>
    %478 = math.tanh %477 : vector<8x128xf32>
    %479 = arith.mulf %474, %478 : vector<8x128xf32>
    %480 = arith.truncf %479 : vector<8x128xf32> to vector<8x128xbf16>
    %481 = arith.addi %324, %c3_i32_120 : i32
    %482 = arith.index_cast %481 : i32 to index
    %c0_127 = arith.constant 0 : index
    %c0_128 = arith.constant 0 : index
    %483 = vector.load %arg13[%482, %c0_127, %c0_128] : memref<8x8x128xbf16, #tpu.memory_space<vmem>>, vector<1x8x128xbf16>
    %484 = vector.shape_cast %483 : vector<1x8x128xbf16> to vector<8x128xbf16>
    %485 = vector.shape_cast %480 : vector<8x128xbf16> to vector<1x8x128xbf16>
    tpu.vector_store %arg13[%482, %c0_127, %c0_128], %485 {strides = array<i32>} : memref<8x8x128xbf16, #tpu.memory_space<vmem>>, vector<1x8x128xbf16>,
    %c4_i32_129 = arith.constant 4 : i32
    %486 = arith.index_cast %c4_i32_129 : i32 to index
    %c0_130 = arith.constant 0 : index
    %c0_131 = arith.constant 0 : index
    %487 = vector.load %arg14[%486, %c0_130, %c0_131] : memref<8x8x512xbf16, #tpu.memory_space<vmem>>, vector<1x8x512xbf16>
    %488 = vector.shape_cast %487 : vector<1x8x512xbf16> to vector<8x512xbf16>
    %489 = arith.truncf %479 : vector<8x128xf32> to vector<8x128xbf16>
    %cst_132 = arith.constant dense<0.000000e+00> : vector<8x512xf32>
    %490 = tpu.matmul %489, %320, %cst_132 {dimension_numbers = #tpu.dot_dimension_numbers<[1], [0], [0], [1], [0, 0, 1, 1], [], []>} : vector<8x128xbf16>, vector<128x512xbf16>, vector<8x512xf32> -> vector<8x512xf32>
    %491 = arith.extf %488 : vector<8x512xbf16> to vector<8x512xf32>
    %492 = arith.addf %491, %490 : vector<8x512xf32>
    %493 = vector.extract_strided_slice %492 {offsets = [0, 0], sizes = [8, 128], strides = [1, 1]} : vector<8x512xf32> to vector<8x128xf32>
    %494 = arith.negf %493 : vector<8x128xf32>
    %495 = math.exp %494 : vector<8x128xf32>
    %cst_133 = arith.constant 1.000000e+00 : f32
    %496 = vector.broadcast %cst_133 : f32 to vector<8x128xf32>
    %497 = arith.addf %496, %495 : vector<8x128xf32>
    %498 = arith.divf %496, %497 : vector<8x128xf32>
    %499 = vector.extract_strided_slice %492 {offsets = [0, 128], sizes = [8, 128], strides = [1, 1]} : vector<8x512xf32> to vector<8x128xf32>
    %500 = arith.negf %499 : vector<8x128xf32>
    %501 = math.exp %500 : vector<8x128xf32>
    %cst_134 = arith.constant 1.000000e+00 : f32
    %502 = vector.broadcast %cst_134 : f32 to vector<8x128xf32>
    %503 = arith.addf %502, %501 : vector<8x128xf32>
    %504 = arith.divf %502, %503 : vector<8x128xf32>
    %505 = vector.extract_strided_slice %492 {offsets = [0, 256], sizes = [8, 128], strides = [1, 1]} : vector<8x512xf32> to vector<8x128xf32>
    %506 = math.tanh %505 : vector<8x128xf32>
    %507 = vector.extract_strided_slice %492 {offsets = [0, 384], sizes = [8, 128], strides = [1, 1]} : vector<8x512xf32> to vector<8x128xf32>
    %508 = arith.negf %507 : vector<8x128xf32>
    %509 = math.exp %508 : vector<8x128xf32>
    %cst_135 = arith.constant 1.000000e+00 : f32
    %510 = vector.broadcast %cst_135 : f32 to vector<8x128xf32>
    %511 = arith.addf %510, %509 : vector<8x128xf32>
    %512 = arith.divf %510, %511 : vector<8x128xf32>
    %513 = arith.mulf %504, %477 : vector<8x128xf32>
    %514 = arith.mulf %498, %506 : vector<8x128xf32>
    %515 = arith.addf %513, %514 : vector<8x128xf32>
    %516 = math.tanh %515 : vector<8x128xf32>
    %517 = arith.mulf %512, %516 : vector<8x128xf32>
    %518 = arith.truncf %517 : vector<8x128xf32> to vector<8x128xbf16>
    %519 = arith.addi %324, %c4_i32_129 : i32
    %520 = arith.index_cast %519 : i32 to index
    %c0_136 = arith.constant 0 : index
    %c0_137 = arith.constant 0 : index
    %521 = vector.load %arg13[%520, %c0_136, %c0_137] : memref<8x8x128xbf16, #tpu.memory_space<vmem>>, vector<1x8x128xbf16>
    %522 = vector.shape_cast %521 : vector<1x8x128xbf16> to vector<8x128xbf16>
    %523 = vector.shape_cast %518 : vector<8x128xbf16> to vector<1x8x128xbf16>
    tpu.vector_store %arg13[%520, %c0_136, %c0_137], %523 {strides = array<i32>} : memref<8x8x128xbf16, #tpu.memory_space<vmem>>, vector<1x8x128xbf16>,
    %c5_i32_138 = arith.constant 5 : i32
    %524 = arith.index_cast %c5_i32_138 : i32 to index
    %c0_139 = arith.constant 0 : index
    %c0_140 = arith.constant 0 : index
    %525 = vector.load %arg14[%524, %c0_139, %c0_140] : memref<8x8x512xbf16, #tpu.memory_space<vmem>>, vector<1x8x512xbf16>
    %526 = vector.shape_cast %525 : vector<1x8x512xbf16> to vector<8x512xbf16>
    %527 = arith.truncf %517 : vector<8x128xf32> to vector<8x128xbf16>
    %cst_141 = arith.constant dense<0.000000e+00> : vector<8x512xf32>
    %528 = tpu.matmul %527, %320, %cst_141 {dimension_numbers = #tpu.dot_dimension_numbers<[1], [0], [0], [1], [0, 0, 1, 1], [], []>} : vector<8x128xbf16>, vector<128x512xbf16>, vector<8x512xf32> -> vector<8x512xf32>
    %529 = arith.extf %526 : vector<8x512xbf16> to vector<8x512xf32>
    %530 = arith.addf %529, %528 : vector<8x512xf32>
    %531 = vector.extract_strided_slice %530 {offsets = [0, 0], sizes = [8, 128], strides = [1, 1]} : vector<8x512xf32> to vector<8x128xf32>
    %532 = arith.negf %531 : vector<8x128xf32>
    %533 = math.exp %532 : vector<8x128xf32>
    %cst_142 = arith.constant 1.000000e+00 : f32
    %534 = vector.broadcast %cst_142 : f32 to vector<8x128xf32>
    %535 = arith.addf %534, %533 : vector<8x128xf32>
    %536 = arith.divf %534, %535 : vector<8x128xf32>
    %537 = vector.extract_strided_slice %530 {offsets = [0, 128], sizes = [8, 128], strides = [1, 1]} : vector<8x512xf32> to vector<8x128xf32>
    %538 = arith.negf %537 : vector<8x128xf32>
    %539 = math.exp %538 : vector<8x128xf32>
    %cst_143 = arith.constant 1.000000e+00 : f32
    %540 = vector.broadcast %cst_143 : f32 to vector<8x128xf32>
    %541 = arith.addf %540, %539 : vector<8x128xf32>
    %542 = arith.divf %540, %541 : vector<8x128xf32>
    %543 = vector.extract_strided_slice %530 {offsets = [0, 256], sizes = [8, 128], strides = [1, 1]} : vector<8x512xf32> to vector<8x128xf32>
    %544 = math.tanh %543 : vector<8x128xf32>
    %545 = vector.extract_strided_slice %530 {offsets = [0, 384], sizes = [8, 128], strides = [1, 1]} : vector<8x512xf32> to vector<8x128xf32>
    %546 = arith.negf %545 : vector<8x128xf32>
    %547 = math.exp %546 : vector<8x128xf32>
    %cst_144 = arith.constant 1.000000e+00 : f32
    %548 = vector.broadcast %cst_144 : f32 to vector<8x128xf32>
    %549 = arith.addf %548, %547 : vector<8x128xf32>
    %550 = arith.divf %548, %549 : vector<8x128xf32>
    %551 = arith.mulf %542, %515 : vector<8x128xf32>
    %552 = arith.mulf %536, %544 : vector<8x128xf32>
    %553 = arith.addf %551, %552 : vector<8x128xf32>
    %554 = math.tanh %553 : vector<8x128xf32>
    %555 = arith.mulf %550, %554 : vector<8x128xf32>
    %556 = arith.truncf %555 : vector<8x128xf32> to vector<8x128xbf16>
    %557 = arith.addi %324, %c5_i32_138 : i32
    %558 = arith.index_cast %557 : i32 to index
    %c0_145 = arith.constant 0 : index
    %c0_146 = arith.constant 0 : index
    %559 = vector.load %arg13[%558, %c0_145, %c0_146] : memref<8x8x128xbf16, #tpu.memory_space<vmem>>, vector<1x8x128xbf16>
    %560 = vector.shape_cast %559 : vector<1x8x128xbf16> to vector<8x128xbf16>
    %561 = vector.shape_cast %556 : vector<8x128xbf16> to vector<1x8x128xbf16>
    tpu.vector_store %arg13[%558, %c0_145, %c0_146], %561 {strides = array<i32>} : memref<8x8x128xbf16, #tpu.memory_space<vmem>>, vector<1x8x128xbf16>,
    %c6_i32_147 = arith.constant 6 : i32
    %562 = arith.index_cast %c6_i32_147 : i32 to index
    %c0_148 = arith.constant 0 : index
    %c0_149 = arith.constant 0 : index
    %563 = vector.load %arg14[%562, %c0_148, %c0_149] : memref<8x8x512xbf16, #tpu.memory_space<vmem>>, vector<1x8x512xbf16>
    %564 = vector.shape_cast %563 : vector<1x8x512xbf16> to vector<8x512xbf16>
    %565 = arith.truncf %555 : vector<8x128xf32> to vector<8x128xbf16>
    %cst_150 = arith.constant dense<0.000000e+00> : vector<8x512xf32>
    %566 = tpu.matmul %565, %320, %cst_150 {dimension_numbers = #tpu.dot_dimension_numbers<[1], [0], [0], [1], [0, 0, 1, 1], [], []>} : vector<8x128xbf16>, vector<128x512xbf16>, vector<8x512xf32> -> vector<8x512xf32>
    %567 = arith.extf %564 : vector<8x512xbf16> to vector<8x512xf32>
    %568 = arith.addf %567, %566 : vector<8x512xf32>
    %569 = vector.extract_strided_slice %568 {offsets = [0, 0], sizes = [8, 128], strides = [1, 1]} : vector<8x512xf32> to vector<8x128xf32>
    %570 = arith.negf %569 : vector<8x128xf32>
    %571 = math.exp %570 : vector<8x128xf32>
    %cst_151 = arith.constant 1.000000e+00 : f32
    %572 = vector.broadcast %cst_151 : f32 to vector<8x128xf32>
    %573 = arith.addf %572, %571 : vector<8x128xf32>
    %574 = arith.divf %572, %573 : vector<8x128xf32>
    %575 = vector.extract_strided_slice %568 {offsets = [0, 128], sizes = [8, 128], strides = [1, 1]} : vector<8x512xf32> to vector<8x128xf32>
    %576 = arith.negf %575 : vector<8x128xf32>
    %577 = math.exp %576 : vector<8x128xf32>
    %cst_152 = arith.constant 1.000000e+00 : f32
    %578 = vector.broadcast %cst_152 : f32 to vector<8x128xf32>
    %579 = arith.addf %578, %577 : vector<8x128xf32>
    %580 = arith.divf %578, %579 : vector<8x128xf32>
    %581 = vector.extract_strided_slice %568 {offsets = [0, 256], sizes = [8, 128], strides = [1, 1]} : vector<8x512xf32> to vector<8x128xf32>
    %582 = math.tanh %581 : vector<8x128xf32>
    %583 = vector.extract_strided_slice %568 {offsets = [0, 384], sizes = [8, 128], strides = [1, 1]} : vector<8x512xf32> to vector<8x128xf32>
    %584 = arith.negf %583 : vector<8x128xf32>
    %585 = math.exp %584 : vector<8x128xf32>
    %cst_153 = arith.constant 1.000000e+00 : f32
    %586 = vector.broadcast %cst_153 : f32 to vector<8x128xf32>
    %587 = arith.addf %586, %585 : vector<8x128xf32>
    %588 = arith.divf %586, %587 : vector<8x128xf32>
    %589 = arith.mulf %580, %553 : vector<8x128xf32>
    %590 = arith.mulf %574, %582 : vector<8x128xf32>
    %591 = arith.addf %589, %590 : vector<8x128xf32>
    %592 = math.tanh %591 : vector<8x128xf32>
    %593 = arith.mulf %588, %592 : vector<8x128xf32>
    %594 = arith.truncf %593 : vector<8x128xf32> to vector<8x128xbf16>
    %595 = arith.addi %324, %c6_i32_147 : i32
    %596 = arith.index_cast %595 : i32 to index
    %c0_154 = arith.constant 0 : index
    %c0_155 = arith.constant 0 : index
    %597 = vector.load %arg13[%596, %c0_154, %c0_155] : memref<8x8x128xbf16, #tpu.memory_space<vmem>>, vector<1x8x128xbf16>
    %598 = vector.shape_cast %597 : vector<1x8x128xbf16> to vector<8x128xbf16>
    %599 = vector.shape_cast %594 : vector<8x128xbf16> to vector<1x8x128xbf16>
    tpu.vector_store %arg13[%596, %c0_154, %c0_155], %599 {strides = array<i32>} : memref<8x8x128xbf16, #tpu.memory_space<vmem>>, vector<1x8x128xbf16>,
    %c7_i32_156 = arith.constant 7 : i32
    %600 = arith.index_cast %c7_i32_156 : i32 to index
    %c0_157 = arith.constant 0 : index
    %c0_158 = arith.constant 0 : index
    %601 = vector.load %arg14[%600, %c0_157, %c0_158] : memref<8x8x512xbf16, #tpu.memory_space<vmem>>, vector<1x8x512xbf16>
    %602 = vector.shape_cast %601 : vector<1x8x512xbf16> to vector<8x512xbf16>
    %603 = arith.truncf %593 : vector<8x128xf32> to vector<8x128xbf16>
    %cst_159 = arith.constant dense<0.000000e+00> : vector<8x512xf32>
    %604 = tpu.matmul %603, %320, %cst_159 {dimension_numbers = #tpu.dot_dimension_numbers<[1], [0], [0], [1], [0, 0, 1, 1], [], []>} : vector<8x128xbf16>, vector<128x512xbf16>, vector<8x512xf32> -> vector<8x512xf32>
    %605 = arith.extf %602 : vector<8x512xbf16> to vector<8x512xf32>
    %606 = arith.addf %605, %604 : vector<8x512xf32>
    %607 = vector.extract_strided_slice %606 {offsets = [0, 0], sizes = [8, 128], strides = [1, 1]} : vector<8x512xf32> to vector<8x128xf32>
    %608 = arith.negf %607 : vector<8x128xf32>
    %609 = math.exp %608 : vector<8x128xf32>
    %cst_160 = arith.constant 1.000000e+00 : f32
    %610 = vector.broadcast %cst_160 : f32 to vector<8x128xf32>
    %611 = arith.addf %610, %609 : vector<8x128xf32>
    %612 = arith.divf %610, %611 : vector<8x128xf32>
    %613 = vector.extract_strided_slice %606 {offsets = [0, 128], sizes = [8, 128], strides = [1, 1]} : vector<8x512xf32> to vector<8x128xf32>
    %614 = arith.negf %613 : vector<8x128xf32>
    %615 = math.exp %614 : vector<8x128xf32>
    %cst_161 = arith.constant 1.000000e+00 : f32
    %616 = vector.broadcast %cst_161 : f32 to vector<8x128xf32>
    %617 = arith.addf %616, %615 : vector<8x128xf32>
    %618 = arith.divf %616, %617 : vector<8x128xf32>
    %619 = vector.extract_strided_slice %606 {offsets = [0, 256], sizes = [8, 128], strides = [1, 1]} : vector<8x512xf32> to vector<8x128xf32>
    %620 = math.tanh %619 : vector<8x128xf32>
    %621 = vector.extract_strided_slice %606 {offsets = [0, 384], sizes = [8, 128], strides = [1, 1]} : vector<8x512xf32> to vector<8x128xf32>
    %622 = arith.negf %621 : vector<8x128xf32>
    %623 = math.exp %622 : vector<8x128xf32>
    %cst_162 = arith.constant 1.000000e+00 : f32
    %624 = vector.broadcast %cst_162 : f32 to vector<8x128xf32>
    %625 = arith.addf %624, %623 : vector<8x128xf32>
    %626 = arith.divf %624, %625 : vector<8x128xf32>
    %627 = arith.mulf %618, %591 : vector<8x128xf32>
    %628 = arith.mulf %612, %620 : vector<8x128xf32>
    %629 = arith.addf %627, %628 : vector<8x128xf32>
    %630 = math.tanh %629 : vector<8x128xf32>
    %631 = arith.mulf %626, %630 : vector<8x128xf32>
    %632 = arith.truncf %631 : vector<8x128xf32> to vector<8x128xbf16>
    %633 = arith.addi %324, %c7_i32_156 : i32
    %634 = arith.index_cast %633 : i32 to index
    %c0_163 = arith.constant 0 : index
    %c0_164 = arith.constant 0 : index
    %635 = vector.load %arg13[%634, %c0_163, %c0_164] : memref<8x8x128xbf16, #tpu.memory_space<vmem>>, vector<1x8x128xbf16>
    %636 = vector.shape_cast %635 : vector<1x8x128xbf16> to vector<8x128xbf16>
    %637 = vector.shape_cast %632 : vector<8x128xbf16> to vector<1x8x128xbf16>
    tpu.vector_store %arg13[%634, %c0_163, %c0_164], %637 {strides = array<i32>} : memref<8x8x128xbf16, #tpu.memory_space<vmem>>, vector<1x8x128xbf16>,
    %c8_i32_165 = arith.constant 8 : i32
    %c1_i32_166 = arith.constant 1 : i32
    %c0_167 = arith.constant 0 : index
    %c0_168 = arith.constant 0 : index
    %c0_169 = arith.constant 0 : index
    %638 = vector.load %arg13[%c0_167, %c0_168, %c0_169] : memref<8x8x128xbf16, #tpu.memory_space<vmem>>, vector<8x8x128xbf16>
    %639 = vector.shape_cast %638 : vector<8x8x128xbf16> to vector<64x128xbf16>
    %c0_170 = arith.constant 0 : index
    %c0_171 = arith.constant 0 : index
    %640 = vector.load %arg8[%c0_170, %c0_171] : memref<128x128xbf16, #tpu.memory_space<vmem>>, vector<128x128xbf16>
    %cst_172 = arith.constant dense<0.000000e+00> : vector<64x128xf32>
    %641 = tpu.matmul %639, %640, %cst_172 {dimension_numbers = #tpu.dot_dimension_numbers<[1], [0], [0], [1], [0, 0, 1, 1], [], []>} : vector<64x128xbf16>, vector<128x128xbf16>, vector<64x128xf32> -> vector<64x128xf32>
    %c0_173 = arith.constant 0 : index
    %c0_174 = arith.constant 0 : index
    %642 = vector.load %arg9[%c0_173, %c0_174] : memref<1x128xf32, #tpu.memory_space<vmem>>, vector<1x128xf32>
    %643 = vector.broadcast %642 : vector<1x128xf32> to vector<64x128xf32>
    %644 = arith.addf %641, %643 : vector<64x128xf32>
    %645 = math.tanh %644 : vector<64x128xf32>
    %c0_175 = arith.constant 0 : index
    %c0_176 = arith.constant 0 : index
    %646 = vector.load %arg10[%c0_175, %c0_176] : memref<1x128xf32, #tpu.memory_space<vmem>>, vector<1x128xf32>
    %647 = vector.broadcast %646 : vector<1x128xf32> to vector<64x128xf32>
    %648 = arith.mulf %645, %647 : vector<64x128xf32>
    %cst_177 = arith.constant dense<0.000000e+00> : vector<64xf32>
    %649 = vector.multi_reduction <add>, %648, %cst_177 [1] : vector<64x128xf32> to vector<64xf32>
    %650 = vector.shape_cast %649 : vector<64xf32> to vector<8x8xf32>
    %651 = tpu.iota {dimensions = array<i32: 0>} : vector<8x8xi32>
    %c0_178 = arith.constant 0 : index
    %c0_179 = arith.constant 0 : index
    %c0_180 = arith.constant 0 : index
    %652 = vector.load %arg11[%c0_178, %c0_179, %c0_180] : memref<1x1x8xi32, #tpu.memory_space<vmem>>, vector<1x1x8xi32>
    %653 = vector.shape_cast %652 : vector<1x1x8xi32> to vector<1x8xi32>
    %654 = vector.broadcast %653 : vector<1x8xi32> to vector<8x8xi32>
    %655 = arith.cmpi slt, %651, %654 : vector<8x8xi32>
    %cst_181 = arith.constant 0xFF800000 : f32
    %656 = vector.broadcast %cst_181 : f32 to vector<8x8xf32>
    %657 = arith.select %655, %650, %656 : vector<8x8xi1>, vector<8x8xf32>
    %cst_182 = arith.constant dense<0xFF800000> : vector<8xf32>
    %658 = vector.multi_reduction <maximumf>, %657, %cst_182 [0] : vector<8x8xf32> to vector<8xf32>
    %659 = vector.shape_cast %658 : vector<8xf32> to vector<1x8xf32>
    %cst_183 = arith.constant -1.000000e+30 : f32
    %660 = vector.broadcast %cst_183 : f32 to vector<1x8xf32>
    %661 = arith.maximumf %659, %660 : vector<1x8xf32>
    %662 = vector.broadcast %661 : vector<1x8xf32> to vector<8x8xf32>
    %663 = arith.subf %657, %662 : vector<8x8xf32>
    %664 = math.exp %663 : vector<8x8xf32>
    %cst_184 = arith.constant 0.000000e+00 : f32
    %665 = vector.broadcast %cst_184 : f32 to vector<8x8xf32>
    %666 = arith.select %655, %664, %665 : vector<8x8xi1>, vector<8x8xf32>
    %cst_185 = arith.constant dense<0.000000e+00> : vector<8xf32>
    %667 = vector.multi_reduction <add>, %666, %cst_185 [0] : vector<8x8xf32> to vector<8xf32>
    %668 = vector.shape_cast %667 : vector<8xf32> to vector<1x8xf32>
    %cst_186 = arith.constant 9.99999968E-21 : f32
    %669 = vector.broadcast %cst_186 : f32 to vector<1x8xf32>
    %670 = arith.maximumf %668, %669 : vector<1x8xf32>
    %671 = tpu.reciprocal %670 {approx = true} : vector<1x8xf32> -> vector<1x8xf32>
    %672 = vector.broadcast %671 : vector<1x8xf32> to vector<8x8xf32>
    %673 = arith.mulf %666, %672 : vector<8x8xf32>
    %674 = arith.extf %638 : vector<8x8x128xbf16> to vector<8x8x128xf32>
    %675 = vector.shape_cast %673 : vector<8x8xf32> to vector<8x8x1xf32>
    %676 = vector.broadcast %675 : vector<8x8x1xf32> to vector<8x8x128xf32>
    %677 = arith.mulf %674, %676 : vector<8x8x128xf32>
    %cst_187 = arith.constant dense<0.000000e+00> : vector<8x128xf32>
    %678 = vector.multi_reduction <add>, %677, %cst_187 [0] : vector<8x8x128xf32> to vector<8x128xf32>
    %c0_188 = arith.constant 0 : index
    %c0_189 = arith.constant 0 : index
    %679 = vector.load %arg12[%c0_188, %c0_189] : memref<8x128xf32, #tpu.memory_space<vmem>>, vector<8x128xf32>
    tpu.vector_store %arg12[%c0_188, %c0_189], %678 {strides = array<i32>} : memref<8x128xf32, #tpu.memory_space<vmem>>, vector<8x128xf32>,
    return
  }
  func.func @transform_0(%arg0: i32) -> (i32, i32, i32) {
    %c0_i32 = arith.constant 0 : i32
    %c0_i32_0 = arith.constant 0 : i32
    %c0_i32_1 = arith.constant 0 : i32
    return %c0_i32, %arg0, %c0_i32_0 : i32, i32, i32
  }
  func.func @transform_1(%arg0: i32) -> (i32, i32) {
    %c0_i32 = arith.constant 0 : i32
    %c0_i32_0 = arith.constant 0 : i32
    %c0_i32_1 = arith.constant 0 : i32
    return %c0_i32, %c0_i32_0 : i32, i32
  }
  func.func @transform_2(%arg0: i32) -> (i32, i32) {
    %c0_i32 = arith.constant 0 : i32
    %c0_i32_0 = arith.constant 0 : i32
    %c0_i32_1 = arith.constant 0 : i32
    return %c0_i32, %c0_i32_0 : i32, i32
  }
  func.func @transform_3(%arg0: i32) -> (i32, i32) {
    %c0_i32 = arith.constant 0 : i32
    %c0_i32_0 = arith.constant 0 : i32
    %c0_i32_1 = arith.constant 0 : i32
    return %c0_i32, %c0_i32_0 : i32, i32
  }
  func.func @transform_4(%arg0: i32) -> (i32, i32) {
    %c0_i32 = arith.constant 0 : i32
    %c0_i32_0 = arith.constant 0 : i32
    %c0_i32_1 = arith.constant 0 : i32
    return %c0_i32, %c0_i32_0 : i32, i32
  }
  func.func @transform_5(%arg0: i32) -> (i32, i32) {
    %c0_i32 = arith.constant 0 : i32
    %c0_i32_0 = arith.constant 0 : i32
    %c0_i32_1 = arith.constant 0 : i32
    return %c0_i32, %c0_i32_0 : i32, i32
  }
  func.func @transform_6(%arg0: i32) -> (i32, i32) {
    %c0_i32 = arith.constant 0 : i32
    %c0_i32_0 = arith.constant 0 : i32
    %c0_i32_1 = arith.constant 0 : i32
    return %c0_i32, %c0_i32_0 : i32, i32
  }
  func.func @transform_7(%arg0: i32) -> (i32, i32) {
    %c0_i32 = arith.constant 0 : i32
    %c0_i32_0 = arith.constant 0 : i32
    %c0_i32_1 = arith.constant 0 : i32
    return %c0_i32, %c0_i32_0 : i32, i32
  }
  func.func @transform_8(%arg0: i32) -> (i32, i32) {
    %c0_i32 = arith.constant 0 : i32
    %c0_i32_0 = arith.constant 0 : i32
    %c0_i32_1 = arith.constant 0 : i32
    return %c0_i32, %c0_i32_0 : i32, i32
  }
  func.func @transform_9(%arg0: i32) -> (i32, i32) {
    %c0_i32 = arith.constant 0 : i32
    %c0_i32_0 = arith.constant 0 : i32
    %c0_i32_1 = arith.constant 0 : i32
    return %c0_i32, %c0_i32_0 : i32, i32
  }
  func.func @transform_10(%arg0: i32) -> (i32, i32, i32) {
    %c0_i32 = arith.constant 0 : i32
    %c0_i32_0 = arith.constant 0 : i32
    %c0_i32_1 = arith.constant 0 : i32
    return %arg0, %c0_i32, %c0_i32_0 : i32, i32, i32
  }
  func.func @transform_11(%arg0: i32) -> (i32, i32) {
    %c0_i32 = arith.constant 0 : i32
    %c0_i32_0 = arith.constant 0 : i32
    return %arg0, %c0_i32 : i32, i32
  }
}

</mosaic_0001>

<llo_original>
// kernel: tpu_custom_call.1
$region0: #{tpu_custom_call.1}
  #allocation0 [shape = 'u32[]', space=smem, size = 0x4, offset = 0x4, fixed_abs, tag = 'smem constant byte address 0x4 - core index']
  #allocation1 [shape = 'u32[144,128]{1,0:T(1,128)}', space=vmem, size = 0x12000, scoped, tag = 'internal scratch']
  #allocation2 [shape = 'bf16[8,8,128]{2,1,0:T(8,128)(2,1)}', space=vmem, size = 0x4000, scoped, tag = 'scratch operand']
  #allocation3 [shape = 'bf16[8,8,512]{2,1,0:T(8,128)(2,1)}', space=vmem, size = 0x10000, scoped, tag = 'scratch operand']
  %s0 = inlined_call_operand.hbm [shape: bf16[8,16,8], index: 0, kind: input, shape index: {}]
  %s1 = inlined_call_operand.hbm [shape: bf16[8,512], index: 1, kind: input, shape index: {}]
  %s2 = inlined_call_operand.hbm [shape: bf16[128,512], index: 2, kind: input, shape index: {}]
  %s3 = inlined_call_operand.hbm [shape: f32[1,512], index: 3, kind: input, shape index: {}]
  %s4 = inlined_call_operand.hbm [shape: bf16[128,512], index: 4, kind: input, shape index: {}]
  %s5 = inlined_call_operand.hbm [shape: bf16[128,512], index: 5, kind: input, shape index: {}]
  %s6 = inlined_call_operand.hbm [shape: f32[1,512], index: 6, kind: input, shape index: {}]
  %s7 = inlined_call_operand.hbm [shape: bf16[128,128], index: 7, kind: input, shape index: {}]
  %s8 = inlined_call_operand.hbm [shape: f32[1,128], index: 8, kind: input, shape index: {}]
  %s9 = inlined_call_operand.hbm [shape: f32[1,128], index: 9, kind: input, shape index: {}]
  %s10 = inlined_call_operand.hbm [shape: s32[2,1,8], index: 10, kind: input, shape index: {}]
  %s11 = inlined_call_operand.hbm [shape: f32[16,128], index: 11, kind: output, shape index: {}]
  %s12 = sld [smem:[#allocation0]]
  $region121: #{tpu_custom_call.1} parent=0
    _
  %s14 = ssub.s32 1, %s12
  %s15 = scalar_select 0, %s14, %s12
  $region1: #{tpu_custom_call.1} parent=0
    #allocation4 [shape = 'u8[32768]{0}', space=vmem, size = 0x8000, scoped, tag = 'input window, operand 0']
    #allocation5 [shape = 's32[2]{0}', space=sflag, size = 0x8, scoped, tag = 'scoped memory for tpu_custom_call.1']
    #allocation6 [shape = 's32[2]{0}', space=sflag, size = 0x8, scoped, tag = 'scoped memory for tpu_custom_call.1']
    #allocation7 [shape = 'u8[8192]{0}', space=vmem, size = 0x2000, scoped, tag = 'input window, operand 1, single buffered']
    #allocation8 [shape = 's32[1]{0}', space=sflag, size = 0x4, scoped, tag = 'scoped memory for tpu_custom_call.1']
    #allocation9 [shape = 'u8[131072]{0}', space=vmem, size = 0x20000, scoped, tag = 'input window, operand 2, single buffered']
    #allocation10 [shape = 'u8[2048]{0}', space=vmem, size = 0x800, scoped, tag = 'input window, operand 3, single buffered']
    #allocation11 [shape = 's32[1]{0}', space=sflag, size = 0x4, scoped, tag = 'scoped memory for tpu_custom_call.1']
    #allocation12 [shape = 'u8[131072]{0}', space=vmem, size = 0x20000, scoped, tag = 'input window, operand 4, single buffered']
    #allocation13 [shape = 'u8[131072]{0}', space=vmem, size = 0x20000, scoped, tag = 'input window, operand 5, single buffered']
    #allocation14 [shape = 's32[1]{0}', space=sflag, size = 0x4, scoped, tag = 'scoped memory for tpu_custom_call.1']
    #allocation15 [shape = 'u8[2048]{0}', space=vmem, size = 0x800, scoped, tag = 'input window, operand 6, single buffered']
    #allocation16 [shape = 'u8[32768]{0}', space=vmem, size = 0x8000, scoped, tag = 'input window, operand 7, single buffered']
    #allocation17 [shape = 's32[1]{0}', space=sflag, size = 0x4, scoped, tag = 'scoped memory for tpu_custom_call.1']
    #allocation18 [shape = 'u8[512]{0}', space=vmem, size = 0x400, scoped, tag = 'input window, operand 8, single buffered']
    #allocation19 [shape = 'u8[512]{0}', space=vmem, size = 0x400, scoped, tag = 'input window, operand 9, single buffered']
    #allocation20 [shape = 's32[1]{0}', space=sflag, size = 0x4, scoped, tag = 'scoped memory for tpu_custom_call.1']
    #allocation21 [shape = 'u8[1024]{0}', space=vmem, size = 0x400, scoped, tag = 'input window, operand 10']
    #allocation22 [shape = 'u8[8192]{0}', space=vmem, size = 0x2000, scoped, tag = 'output window, operand 0']
    %16 = vsyncpa [#allocation5], 0
    %s17 = scalar_lea.sflag [#allocation5], 1
    %18 = vsyncpa %s17, 0
    %19 = vsyncpa [#allocation8], 0
    %20 = vsyncpa [#allocation11], 0
    %21 = vsyncpa [#allocation14], 0
    %22 = vsyncpa [#allocation17], 0
    %23 = vsyncpa [#allocation20], 0
    %24 = vsyncpa [#allocation6], 0
    %s25 = scalar_lea.sflag [#allocation6], 1
    %26 = vsyncpa %s25, 0
    loop: start=0, step=1, limit=4
    $region2: #{tpu_custom_call.1} parent=1 // loop_pre_header
      _
    $region3: #{tpu_custom_call.1} parent=1 // loop_header
      %s28 = sphi 0, %s32
      %p29 = scmp.ge.s32.totalorder %s28, 4
      %s38 = sphi 0, %s40
      %s41 = sphi 0, %s38
      %s42 = sphi 0, %s41
      %s58 = sphi 0, %s42
      %s62 = sphi 0, %s62
      %s64 = sphi 0, %s62
      %s65 = sphi 0, %s64
      %s79 = sphi 0, %s65
      %s83 = sphi 0, %s83
      %s85 = sphi 0, %s83
      %s86 = sphi 0, %s85
      %s100 = sphi 0, %s86
      %s104 = sphi 0, %s104
      %s106 = sphi 0, %s104
      %s107 = sphi 0, %s106
      %s121 = sphi 0, %s107
      %s125 = sphi 0, %s125
      %s127 = sphi 0, %s125
      %s128 = sphi 0, %s127
      %s142 = sphi 0, %s128
      %s146 = sphi 0, %s146
      %s148 = sphi 0, %s146
      %s149 = sphi 0, %s148
      %s163 = sphi 0, %s149
      %s167 = sphi 0, %s167
      %s169 = sphi 0, %s167
      %s170 = sphi 0, %s169
      %s184 = sphi 0, %s170
      %s188 = sphi 0, %s188
      %s190 = sphi 0, %s188
      %s191 = sphi 0, %s190
      %s205 = sphi 0, %s191
      %s209 = sphi 0, %s209
      %s211 = sphi 0, %s209
      %s212 = sphi 0, %s211
      %s226 = sphi 0, %s212
      %s230 = sphi 0, %s230
      %s232 = sphi 0, %s230
      %s233 = sphi 0, %s232
      %s247 = sphi 0, %s233
      %s253 = sphi 0, %s255
      %s256 = sphi 0, %s253
      %s257 = sphi 0, %s256
      %s273 = sphi 0, %s257
      %s279 = sphi 0, %s281
      %s282 = sphi 0, %s279
      %s283 = sphi 0, %s282
      %s299 = sphi 0, %s283
    $region4: #{tpu_custom_call.1} parent=1 // loop_header_branch
      %31 = sbr.rel (%p29) target = $region8
    $region5: #{tpu_custom_call.1} parent=1 // loop_body
      %s33 = ssub.s32 %s28, 1
      %s34 = ssub.s32 %s28, 2
      %s35 = sadd.s32 %s28, 1
      %s36 = ssub.s32 %s28, %s35
      %p37 = scmp.eq.s32.totalorder %s36, 0
      %s39 = sadd.s32 %s38, 1
      %s40 = scalar_select %p37, %s38, %s39
      %p43 = pneg %p37
      %p44 = scmp.eq.s32.totalorder %s28, 1
      %p45 = por %p43, %p44
      %p46 = scmp.ne.s32.totalorder %s38, %s41
      %p47 = scmp.eq.s32.totalorder %s28, 0
      %p48 = por %p46, %p47
      %p49 = scmp.ne.s32.totalorder %s38, %s41
      %p50 = scmp.eq.s32.totalorder %s33, 1
      %p51 = por %p49, %p50
      %p52 = scmp.ne.s32.totalorder %s41, %s42
      %p53 = scmp.eq.s32.totalorder %s33, 0
      %p54 = por %p52, %p53
      %p55 = scmp.ne.s32.totalorder %s41, %s42
      %p56 = scmp.eq.s32.totalorder %s34, 1
      %p57 = por %p55, %p56
      %p59 = scmp.ne.s32.totalorder %s42, %s58
      %p60 = scmp.eq.s32.totalorder %s34, 0
      %p61 = por %p59, %p60
      %s63 = sadd.s32 %s62, 1
      %p66 = scmp.eq.s32.totalorder %s28, 1
      %p67 = scmp.ne.s32.totalorder %s62, %s64
      %p68 = scmp.eq.s32.totalorder %s28, 0
      %p69 = por %p67, %p68
      %p70 = scmp.ne.s32.totalorder %s62, %s64
      %p71 = scmp.eq.s32.totalorder %s33, 1
      %p72 = por %p70, %p71
      %p73 = scmp.ne.s32.totalorder %s64, %s65
      %p74 = scmp.eq.s32.totalorder %s33, 0
      %p75 = por %p73, %p74
      %p76 = scmp.ne.s32.totalorder %s64, %s65
      %p77 = scmp.eq.s32.totalorder %s34, 1
      %p78 = por %p76, %p77
      %p80 = scmp.ne.s32.totalorder %s65, %s79
      %p81 = scmp.eq.s32.totalorder %s34, 0
      %p82 = por %p80, %p81
      %s84 = sadd.s32 %s83, 1
      %p87 = scmp.eq.s32.totalorder %s28, 1
      %p88 = scmp.ne.s32.totalorder %s83, %s85
      %p89 = scmp.eq.s32.totalorder %s28, 0
      %p90 = por %p88, %p89
      %p91 = scmp.ne.s32.totalorder %s83, %s85
      %p92 = scmp.eq.s32.totalorder %s33, 1
      %p93 = por %p91, %p92
      %p94 = scmp.ne.s32.totalorder %s85, %s86
      %p95 = scmp.eq.s32.totalorder %s33, 0
      %p96 = por %p94, %p95
      %p97 = scmp.ne.s32.totalorder %s85, %s86
      %p98 = scmp.eq.s32.totalorder %s34, 1
      %p99 = por %p97, %p98
      %p101 = scmp.ne.s32.totalorder %s86, %s100
      %p102 = scmp.eq.s32.totalorder %s34, 0
      %p103 = por %p101, %p102
      %s105 = sadd.s32 %s104, 1
      %p108 = scmp.eq.s32.totalorder %s28, 1
      %p109 = scmp.ne.s32.totalorder %s104, %s106
      %p110 = scmp.eq.s32.totalorder %s28, 0
      %p111 = por %p109, %p110
      %p112 = scmp.ne.s32.totalorder %s104, %s106
      %p113 = scmp.eq.s32.totalorder %s33, 1
      %p114 = por %p112, %p113
      %p115 = scmp.ne.s32.totalorder %s106, %s107
      %p116 = scmp.eq.s32.totalorder %s33, 0
      %p117 = por %p115, %p116
      %p118 = scmp.ne.s32.totalorder %s106, %s107
      %p119 = scmp.eq.s32.totalorder %s34, 1
      %p120 = por %p118, %p119
      %p122 = scmp.ne.s32.totalorder %s107, %s121
      %p123 = scmp.eq.s32.totalorder %s34, 0
      %p124 = por %p122, %p123
      %s126 = sadd.s32 %s125, 1
      %p129 = scmp.eq.s32.totalorder %s28, 1
      %p130 = scmp.ne.s32.totalorder %s125, %s127
      %p131 = scmp.eq.s32.totalorder %s28, 0
      %p132 = por %p130, %p131
      %p133 = scmp.ne.s32.totalorder %s125, %s127
      %p134 = scmp.eq.s32.totalorder %s33, 1
      %p135 = por %p133, %p134
      %p136 = scmp.ne.s32.totalorder %s127, %s128
      %p137 = scmp.eq.s32.totalorder %s33, 0
      %p138 = por %p136, %p137
      %p139 = scmp.ne.s32.totalorder %s127, %s128
      %p140 = scmp.eq.s32.totalorder %s34, 1
      %p141 = por %p139, %p140
      %p143 = scmp.ne.s32.totalorder %s128, %s142
      %p144 = scmp.eq.s32.totalorder %s34, 0
      %p145 = por %p143, %p144
      %s147 = sadd.s32 %s146, 1
      %p150 = scmp.eq.s32.totalorder %s28, 1
      %p151 = scmp.ne.s32.totalorder %s146, %s148
      %p152 = scmp.eq.s32.totalorder %s28, 0
      %p153 = por %p151, %p152
      %p154 = scmp.ne.s32.totalorder %s146, %s148
      %p155 = scmp.eq.s32.totalorder %s33, 1
      %p156 = por %p154, %p155
      %p157 = scmp.ne.s32.totalorder %s148, %s149
      %p158 = scmp.eq.s32.totalorder %s33, 0
      %p159 = por %p157, %p158
      %p160 = scmp.ne.s32.totalorder %s148, %s149
      %p161 = scmp.eq.s32.totalorder %s34, 1
      %p162 = por %p160, %p161
      %p164 = scmp.ne.s32.totalorder %s149, %s163
      %p165 = scmp.eq.s32.totalorder %s34, 0
      %p166 = por %p164, %p165
      %s168 = sadd.s32 %s167, 1
      %p171 = scmp.eq.s32.totalorder %s28, 1
      %p172 = scmp.ne.s32.totalorder %s167, %s169
      %p173 = scmp.eq.s32.totalorder %s28, 0
      %p174 = por %p172, %p173
      %p175 = scmp.ne.s32.totalorder %s167, %s169
      %p176 = scmp.eq.s32.totalorder %s33, 1
      %p177 = por %p175, %p176
      %p178 = scmp.ne.s32.totalorder %s169, %s170
      %p179 = scmp.eq.s32.totalorder %s33, 0
      %p180 = por %p178, %p179
      %p181 = scmp.ne.s32.totalorder %s169, %s170
      %p182 = scmp.eq.s32.totalorder %s34, 1
      %p183 = por %p181, %p182
      %p185 = scmp.ne.s32.totalorder %s170, %s184
      %p186 = scmp.eq.s32.totalorder %s34, 0
      %p187 = por %p185, %p186
      %s189 = sadd.s32 %s188, 1
      %p192 = scmp.eq.s32.totalorder %s28, 1
      %p193 = scmp.ne.s32.totalorder %s188, %s190
      %p194 = scmp.eq.s32.totalorder %s28, 0
      %p195 = por %p193, %p194
      %p196 = scmp.ne.s32.totalorder %s188, %s190
      %p197 = scmp.eq.s32.totalorder %s33, 1
      %p198 = por %p196, %p197
      %p199 = scmp.ne.s32.totalorder %s190, %s191
      %p200 = scmp.eq.s32.totalorder %s33, 0
      %p201 = por %p199, %p200
      %p202 = scmp.ne.s32.totalorder %s190, %s191
      %p203 = scmp.eq.s32.totalorder %s34, 1
      %p204 = por %p202, %p203
      %p206 = scmp.ne.s32.totalorder %s191, %s205
      %p207 = scmp.eq.s32.totalorder %s34, 0
      %p208 = por %p206, %p207
      %s210 = sadd.s32 %s209, 1
      %p213 = scmp.eq.s32.totalorder %s28, 1
      %p214 = scmp.ne.s32.totalorder %s209, %s211
      %p215 = scmp.eq.s32.totalorder %s28, 0
      %p216 = por %p214, %p215
      %p217 = scmp.ne.s32.totalorder %s209, %s211
      %p218 = scmp.eq.s32.totalorder %s33, 1
      %p219 = por %p217, %p218
      %p220 = scmp.ne.s32.totalorder %s211, %s212
      %p221 = scmp.eq.s32.totalorder %s33, 0
      %p222 = por %p220, %p221
      %p223 = scmp.ne.s32.totalorder %s211, %s212
      %p224 = scmp.eq.s32.totalorder %s34, 1
      %p225 = por %p223, %p224
      %p227 = scmp.ne.s32.totalorder %s212, %s226
      %p228 = scmp.eq.s32.totalorder %s34, 0
      %p229 = por %p227, %p228
      %s231 = sadd.s32 %s230, 1
      %p234 = scmp.eq.s32.totalorder %s28, 1
      %p235 = scmp.ne.s32.totalorder %s230, %s232
      %p236 = scmp.eq.s32.totalorder %s28, 0
      %p237 = por %p235, %p236
      %p238 = scmp.ne.s32.totalorder %s230, %s232
      %p239 = scmp.eq.s32.totalorder %s33, 1
      %p240 = por %p238, %p239
      %p241 = scmp.ne.s32.totalorder %s232, %s233
      %p242 = scmp.eq.s32.totalorder %s33, 0
      %p243 = por %p241, %p242
      %p244 = scmp.ne.s32.totalorder %s232, %s233
      %p245 = scmp.eq.s32.totalorder %s34, 1
      %p246 = por %p244, %p245
      %p248 = scmp.ne.s32.totalorder %s233, %s247
      %p249 = scmp.eq.s32.totalorder %s34, 0
      %p250 = por %p248, %p249
      %s251 = ssub.s32 %s28, %s35
      %p252 = scmp.eq.s32.totalorder %s251, 0
      %s254 = sadd.s32 %s253, 1
      %s255 = scalar_select %p252, %s253, %s254
      %p258 = pneg %p252
      %p259 = scmp.eq.s32.totalorder %s28, 1
      %p260 = por %p258, %p259
      %p261 = scmp.ne.s32.totalorder %s253, %s256
      %p262 = scmp.eq.s32.totalorder %s28, 0
      %p263 = por %p261, %p262
      %p264 = scmp.ne.s32.totalorder %s253, %s256
      %p265 = scmp.eq.s32.totalorder %s33, 1
      %p266 = por %p264, %p265
      %p267 = scmp.ne.s32.totalorder %s256, %s257
      %p268 = scmp.eq.s32.totalorder %s33, 0
      %p269 = por %p267, %p268
      %p270 = scmp.ne.s32.totalorder %s256, %s257
      %p271 = scmp.eq.s32.totalorder %s34, 1
      %p272 = por %p270, %p271
      %p274 = scmp.ne.s32.totalorder %s257, %s273
      %p275 = scmp.eq.s32.totalorder %s34, 0
      %p276 = por %p274, %p275
      %s277 = ssub.s32 %s28, %s35
      %p278 = scmp.eq.s32.totalorder %s277, 0
      %s280 = sadd.s32 %s279, 1
      %s281 = scalar_select %p278, %s279, %s280
      %p284 = pneg %p278
      %p285 = scmp.eq.s32.totalorder %s28, 1
      %p286 = por %p284, %p285
      %p287 = scmp.ne.s32.totalorder %s279, %s282
      %p288 = scmp.eq.s32.totalorder %s28, 0
      %p289 = por %p287, %p288
      %p290 = scmp.ne.s32.totalorder %s279, %s282
      %p291 = scmp.eq.s32.totalorder %s33, 1
      %p292 = por %p290, %p291
      %p293 = scmp.ne.s32.totalorder %s282, %s283
      %p294 = scmp.eq.s32.totalorder %s33, 0
      %p295 = por %p293, %p294
      %p296 = scmp.ne.s32.totalorder %s282, %s283
      %p297 = scmp.eq.s32.totalorder %s34, 1
      %p298 = por %p296, %p297
      %p300 = scmp.ne.s32.totalorder %s283, %s299
      %p301 = scmp.eq.s32.totalorder %s34, 0
      %p302 = por %p300, %p301
      %p303 = scmp.le.s32.totalorder 1, %s28
      %p304 = scmp.lt.s32.totalorder %s28, 3
      %p305 = pnand %p303, %p304
      %p306 = pneg %p305
      // Predicated region
      $region9: #{tpu_custom_call.1} parent=5 // pred_check
        _
      $region10: #{tpu_custom_call.1} parent=5 // pred_check_branch
        %308 = sbr.rel (%p305) target = $region12
      $region11: #{tpu_custom_call.1} parent=5 // pred_region
        %s309 = ssub.s32 %s28, 1
        // Predicated region
        $region13: #{tpu_custom_call.1} parent=11 // pred_check
          %p310 = pneg %p75
        $region14: #{tpu_custom_call.1} parent=11 // pred_check_branch
          %312 = sbr.rel (%p310) target = $region16
        $region15: #{tpu_custom_call.1} parent=11 // pred_region
          %s314 = ssub.s32 256, 256
          %315 = vsyncadd [#allocation8], %s314
          %s317 = sshll.u32 [#allocation7], 4
          %s318 = int_to_ptr.vmem [resolvable:$true] %s317
          %320 = dma.hbm_to_vmem [thread:$0]  %s1, 256, %s318, [#allocation8]
        $region16: #{tpu_custom_call.1} parent=11 // pred_fallthru
          _
        // Predicated region
        $region17: #{tpu_custom_call.1} parent=11 // pred_check
          %p321 = pneg %p96
        $region18: #{tpu_custom_call.1} parent=11 // pred_check_branch
          %323 = sbr.rel (%p321) target = $region20
        $region19: #{tpu_custom_call.1} parent=11 // pred_region
          %s325 = ssub.s32 4096, 4096
          %326 = vsyncadd [#allocation8], %s325
          %s327 = sshll.u32 [#allocation9], 4
          %s328 = int_to_ptr.vmem [resolvable:$true] %s327
          %333 = dma.hbm_to_vmem [thread:$0]  %s2, 4096, %s328, [#allocation8], 256, 256, 16
        $region20: #{tpu_custom_call.1} parent=11 // pred_fallthru
          _
        // Predicated region
        $region21: #{tpu_custom_call.1} parent=11 // pred_check
          %p334 = pneg %p117
        $region22: #{tpu_custom_call.1} parent=11 // pred_check_branch
          %336 = sbr.rel (%p334) target = $region24
        $region23: #{tpu_custom_call.1} parent=11 // pred_region
          %s338 = ssub.s32 64, 64
          %339 = vsyncadd [#allocation11], %s338
          %s341 = sshll.u32 [#allocation10], 4
          %s342 = int_to_ptr.vmem [resolvable:$true] %s341
          %344 = dma.hbm_to_vmem [thread:$0]  %s3, 64, %s342, [#allocation11]
        $region24: #{tpu_custom_call.1} parent=11 // pred_fallthru
          _
        // Predicated region
        $region25: #{tpu_custom_call.1} parent=11 // pred_check
          %p345 = pneg %p138
        $region26: #{tpu_custom_call.1} parent=11 // pred_check_branch
          %347 = sbr.rel (%p345) target = $region28
        $region27: #{tpu_custom_call.1} parent=11 // pred_region
          %s349 = ssub.s32 4096, 4096
          %350 = vsyncadd [#allocation11], %s349
          %s351 = sshll.u32 [#allocation12], 4
          %s352 = int_to_ptr.vmem [resolvable:$true] %s351
          %357 = dma.hbm_to_vmem [thread:$0]  %s4, 4096, %s352, [#allocation11], 256, 256, 16
        $region28: #{tpu_custom_call.1} parent=11 // pred_fallthru
          _
        // Predicated region
        $region29: #{tpu_custom_call.1} parent=11 // pred_check
          %p358 = pneg %p159
        $region30: #{tpu_custom_call.1} parent=11 // pred_check_branch
          %360 = sbr.rel (%p358) target = $region32
        $region31: #{tpu_custom_call.1} parent=11 // pred_region
          %s362 = ssub.s32 4096, 4096
          %363 = vsyncadd [#allocation14], %s362
          %s364 = sshll.u32 [#allocation13], 4
          %s365 = int_to_ptr.vmem [resolvable:$true] %s364
          %370 = dma.hbm_to_vmem [thread:$0]  %s5, 4096, %s365, [#allocation14], 256, 256, 16
        $region32: #{tpu_custom_call.1} parent=11 // pred_fallthru
          _
        // Predicated region
        $region33: #{tpu_custom_call.1} parent=11 // pred_check
          %p371 = pneg %p180
        $region34: #{tpu_custom_call.1} parent=11 // pred_check_branch
          %373 = sbr.rel (%p371) target = $region36
        $region35: #{tpu_custom_call.1} parent=11 // pred_region
          %s375 = ssub.s32 64, 64
          %376 = vsyncadd [#allocation14], %s375
          %s378 = sshll.u32 [#allocation15], 4
          %s379 = int_to_ptr.vmem [resolvable:$true] %s378
          %381 = dma.hbm_to_vmem [thread:$0]  %s6, 64, %s379, [#allocation14]
        $region36: #{tpu_custom_call.1} parent=11 // pred_fallthru
          _
        // Predicated region
        $region37: #{tpu_custom_call.1} parent=11 // pred_check
          %p382 = pneg %p201
        $region38: #{tpu_custom_call.1} parent=11 // pred_check_branch
          %384 = sbr.rel (%p382) target = $region40
        $region39: #{tpu_custom_call.1} parent=11 // pred_region
          %s386 = ssub.s32 1024, 1024
          %387 = vsyncadd [#allocation17], %s386
          %s388 = sshll.u32 [#allocation16], 4
          %s389 = int_to_ptr.vmem [resolvable:$true] %s388
          %394 = dma.hbm_to_vmem [thread:$0]  %s7, 1024, %s389, [#allocation17], 64, 64, 4
        $region40: #{tpu_custom_call.1} parent=11 // pred_fallthru
          _
        // Predicated region
        $region41: #{tpu_custom_call.1} parent=11 // pred_check
          %p395 = pneg %p222
        $region42: #{tpu_custom_call.1} parent=11 // pred_check_branch
          %397 = sbr.rel (%p395) target = $region44
        $region43: #{tpu_custom_call.1} parent=11 // pred_region
          %s399 = ssub.s32 16, 16
          %400 = vsyncadd [#allocation17], %s399
          %s402 = sshll.u32 [#allocation18], 4
          %s403 = int_to_ptr.vmem [resolvable:$true] %s402
          %405 = dma.hbm_to_vmem [thread:$0]  %s8, 16, %s403, [#allocation17]
        $region44: #{tpu_custom_call.1} parent=11 // pred_fallthru
          _
        // Predicated region
        $region45: #{tpu_custom_call.1} parent=11 // pred_check
          %p406 = pneg %p243
        $region46: #{tpu_custom_call.1} parent=11 // pred_check_branch
          %408 = sbr.rel (%p406) target = $region48
        $region47: #{tpu_custom_call.1} parent=11 // pred_region
          %s410 = ssub.s32 16, 16
          %411 = vsyncadd [#allocation20], %s410
          %s413 = sshll.u32 [#allocation19], 4
          %s414 = int_to_ptr.vmem [resolvable:$true] %s413
          %416 = dma.hbm_to_vmem [thread:$0]  %s9, 16, %s414, [#allocation20]
        $region48: #{tpu_custom_call.1} parent=11 // pred_fallthru
          _
      $region12: #{tpu_custom_call.1} parent=5 // pred_fallthru
        _
      %p417 = scmp.lt.s32.totalorder %s28, 2
      // Predicated region
      $region49: #{tpu_custom_call.1} parent=5 // pred_check
        %p418 = pneg %p417
      $region50: #{tpu_custom_call.1} parent=5 // pred_check_branch
        %420 = sbr.rel (%p418) target = $region52
      $region51: #{tpu_custom_call.1} parent=5 // pred_region
        // Predicated region
        $region53: #{tpu_custom_call.1} parent=51 // pred_check
          %p421 = pneg %p48
        $region54: #{tpu_custom_call.1} parent=51 // pred_check_branch
          %423 = sbr.rel (%p421) target = $region56
        $region55: #{tpu_custom_call.1} parent=51 // pred_region
          %s424 = sand.u32 %s28, 1
          %s425 = scalar_lea.sflag [#allocation5], %s424
          %s426 = sand.u32 %s38, 1
          %s427 = smul.addr %s426, 32
          %s428 = scalar_lea.vmem [#allocation4], %s427
          %s430 = ssub.s32 512, 512
          %431 = vsyncadd %s425, %s430
          %s432 = smul.addr %s28, 64
          %s433 = scalar_lea.hbm %s0, %s432
          %s434 = sshll.u32 %s428, 4
          %s435 = int_to_ptr.vmem [resolvable:$true] %s434
          %440 = dma.hbm_to_vmem [thread:$0]  %s433, 512, %s435, %s425, 128, 64, 4
        $region56: #{tpu_custom_call.1} parent=51 // pred_fallthru
          _
        // Predicated region
        $region57: #{tpu_custom_call.1} parent=51 // pred_check
          %p441 = pneg %p263
        $region58: #{tpu_custom_call.1} parent=51 // pred_check_branch
          %443 = sbr.rel (%p441) target = $region60
        $region59: #{tpu_custom_call.1} parent=51 // pred_region
          %s444 = sand.u32 %s28, 1
          %s445 = scalar_lea.sflag [#allocation5], %s444
          %s446 = sand.u32 %s253, 1
          %s447 = scalar_lea.vmem [#allocation21], %s446
          %s449 = ssub.s32 16, 16
          %450 = vsyncadd %s445, %s449
          %s451 = smul.addr %s28, 16
          %s452 = scalar_lea.hbm %s10, %s451
          %s454 = sshll.u32 %s447, 4
          %s455 = int_to_ptr.vmem [resolvable:$true] %s454
          %457 = dma.hbm_to_vmem [thread:$0]  %s452, 16, %s455, %s445
        $region60: #{tpu_custom_call.1} parent=51 // pred_fallthru
          _
      $region52: #{tpu_custom_call.1} parent=5 // pred_fallthru
        _
      %p458 = scmp.le.s32.totalorder 1, %s28
      %p459 = scmp.lt.s32.totalorder %s28, 3
      %p460 = pnand %p458, %p459
      %p461 = pneg %p460
      // Predicated region
      $region61: #{tpu_custom_call.1} parent=5 // pred_check
        _
      $region62: #{tpu_custom_call.1} parent=5 // pred_check_branch
        %463 = sbr.rel (%p460) target = $region64
      $region63: #{tpu_custom_call.1} parent=5 // pred_region
        %s464 = ssub.s32 %s28, 1
        %s465 = sand.u32 %s33, 1
        %s466 = scalar_lea.sflag [#allocation5], %s465
        %s467 = sand.u32 %s41, 1
        %s468 = smul.addr %s467, 32
        %s469 = scalar_lea.vmem [#allocation4], %s468
        // Predicated region
        $region65: #{tpu_custom_call.1} parent=63 // pred_check
          %p470 = pneg %p54
        $region66: #{tpu_custom_call.1} parent=63 // pred_check_branch
          %472 = sbr.rel (%p470) target = $region68
        $region67: #{tpu_custom_call.1} parent=63 // pred_region
          %473 = dma.done %s466, 512
        $region68: #{tpu_custom_call.1} parent=63 // pred_fallthru
          _
        // Predicated region
        $region69: #{tpu_custom_call.1} parent=63 // pred_check
          %p474 = pneg %p75
        $region70: #{tpu_custom_call.1} parent=63 // pred_check_branch
          %476 = sbr.rel (%p474) target = $region72
        $region71: #{tpu_custom_call.1} parent=63 // pred_region
          %477 = dma.done [#allocation8], 256
        $region72: #{tpu_custom_call.1} parent=63 // pred_fallthru
          _
        // Predicated region
        $region73: #{tpu_custom_call.1} parent=63 // pred_check
          %p478 = pneg %p96
        $region74: #{tpu_custom_call.1} parent=63 // pred_check_branch
          %480 = sbr.rel (%p478) target = $region76
        $region75: #{tpu_custom_call.1} parent=63 // pred_region
          %481 = dma.done [#allocation8], 4096
        $region76: #{tpu_custom_call.1} parent=63 // pred_fallthru
          _
        // Predicated region
        $region77: #{tpu_custom_call.1} parent=63 // pred_check
          %p482 = pneg %p117
        $region78: #{tpu_custom_call.1} parent=63 // pred_check_branch
          %484 = sbr.rel (%p482) target = $region80
        $region79: #{tpu_custom_call.1} parent=63 // pred_region
          %485 = dma.done [#allocation11], 64
        $region80: #{tpu_custom_call.1} parent=63 // pred_fallthru
          _
        // Predicated region
        $region81: #{tpu_custom_call.1} parent=63 // pred_check
          %p486 = pneg %p138
        $region82: #{tpu_custom_call.1} parent=63 // pred_check_branch
          %488 = sbr.rel (%p486) target = $region84
        $region83: #{tpu_custom_call.1} parent=63 // pred_region
          %489 = dma.done [#allocation11], 4096
        $region84: #{tpu_custom_call.1} parent=63 // pred_fallthru
          _
        // Predicated region
        $region85: #{tpu_custom_call.1} parent=63 // pred_check
          %p490 = pneg %p159
        $region86: #{tpu_custom_call.1} parent=63 // pred_check_branch
          %492 = sbr.rel (%p490) target = $region88
        $region87: #{tpu_custom_call.1} parent=63 // pred_region
          %493 = dma.done [#allocation14], 4096
        $region88: #{tpu_custom_call.1} parent=63 // pred_fallthru
          _
        // Predicated region
        $region89: #{tpu_custom_call.1} parent=63 // pred_check
          %p494 = pneg %p180
        $region90: #{tpu_custom_call.1} parent=63 // pred_check_branch
          %496 = sbr.rel (%p494) target = $region92
        $region91: #{tpu_custom_call.1} parent=63 // pred_region
          %497 = dma.done [#allocation14], 64
        $region92: #{tpu_custom_call.1} parent=63 // pred_fallthru
          _
        // Predicated region
        $region93: #{tpu_custom_call.1} parent=63 // pred_check
          %p498 = pneg %p201
        $region94: #{tpu_custom_call.1} parent=63 // pred_check_branch
          %500 = sbr.rel (%p498) target = $region96
        $region95: #{tpu_custom_call.1} parent=63 // pred_region
          %501 = dma.done [#allocation17], 1024
        $region96: #{tpu_custom_call.1} parent=63 // pred_fallthru
          _
        // Predicated region
        $region97: #{tpu_custom_call.1} parent=63 // pred_check
          %p502 = pneg %p222
        $region98: #{tpu_custom_call.1} parent=63 // pred_check_branch
          %504 = sbr.rel (%p502) target = $region100
        $region99: #{tpu_custom_call.1} parent=63 // pred_region
          %505 = dma.done [#allocation17], 16
        $region100: #{tpu_custom_call.1} parent=63 // pred_fallthru
          _
        // Predicated region
        $region101: #{tpu_custom_call.1} parent=63 // pred_check
          %p506 = pneg %p243
        $region102: #{tpu_custom_call.1} parent=63 // pred_check_branch
          %508 = sbr.rel (%p506) target = $region104
        $region103: #{tpu_custom_call.1} parent=63 // pred_region
          %509 = dma.done [#allocation20], 16
        $region104: #{tpu_custom_call.1} parent=63 // pred_fallthru
          _
        %s510 = sand.u32 %s33, 1
        %s511 = scalar_lea.sflag [#allocation5], %s510
        %s512 = sand.u32 %s256, 1
        %s513 = scalar_lea.vmem [#allocation21], %s512
        // Predicated region
        $region105: #{tpu_custom_call.1} parent=63 // pred_check
          %p514 = pneg %p269
        $region106: #{tpu_custom_call.1} parent=63 // pred_check_branch
          %516 = sbr.rel (%p514) target = $region108
        $region107: #{tpu_custom_call.1} parent=63 // pred_region
          %517 = dma.done %s511, 16
        $region108: #{tpu_custom_call.1} parent=63 // pred_fallthru
          _
        %s518 = sand.u32 %s33, 1
        %s519 = scalar_lea.sflag [#allocation5], %s518
        %s520 = sand.u32 %s41, 1
        %s521 = smul.addr %s520, 32
        %s522 = scalar_lea.vmem [#allocation4], %s521
        %p523 = pneg %p54
        %p524 = pneg %p51
        %p525 = pneg %p75
        %p526 = pneg %p72
        %p527 = pneg %p96
        %p528 = pneg %p93
        %p529 = pneg %p117
        %p530 = pneg %p114
        %p531 = pneg %p138
        %p532 = pneg %p135
        %p533 = pneg %p159
        %p534 = pneg %p156
        %p535 = pneg %p180
        %p536 = pneg %p177
        %p537 = pneg %p201
        %p538 = pneg %p198
        %p539 = pneg %p222
        %p540 = pneg %p219
        %p541 = pneg %p243
        %p542 = pneg %p240
        %s543 = sand.u32 %s33, 1
        %s544 = scalar_lea.sflag [#allocation5], %s543
        %s545 = sand.u32 %s256, 1
        %s546 = scalar_lea.vmem [#allocation21], %s545
        %p547 = pneg %p269
        %p548 = pneg %p266
        %p549 = pneg %p295
        %p550 = pneg %p292
        %s551 = sand.u32 %s282, 1
        %s552 = scalar_lea.sflag [#allocation6], %s551
        %s553 = sand.u32 %s282, 1
        %s554 = smul.addr %s553, 8
        %s555 = scalar_lea.vmem [#allocation22], %s554
        %v557 = vld [vmem:[#allocation7] sm:$0xff]
        %v558 = vld [vmem:[#allocation7 + $0x8] sm:$0xff]
        %v559 = vld [vmem:[#allocation9] sm:$0xff]
        %v560 = vld [vmem:[#allocation9 + $0x8] sm:$0xff]
        %v561 = vld [vmem:[#allocation9 + $0x10] sm:$0xff]
        %v562 = vld [vmem:[#allocation9 + $0x18] sm:$0xff]
        %v563 = vld [vmem:[#allocation9 + $0x20] sm:$0xff]
        %v564 = vld [vmem:[#allocation9 + $0x28] sm:$0xff]
        %v565 = vld [vmem:[#allocation9 + $0x30] sm:$0xff]
        %v566 = vld [vmem:[#allocation9 + $0x38] sm:$0xff]
        %v567 = vld [vmem:[#allocation9 + $0x40] sm:$0xff]
        %v568 = vld [vmem:[#allocation9 + $0x48] sm:$0xff]
        %v569 = vld [vmem:[#allocation9 + $0x50] sm:$0xff]
        %v570 = vld [vmem:[#allocation9 + $0x58] sm:$0xff]
        %v571 = vld [vmem:[#allocation9 + $0x60] sm:$0xff]
        %v572 = vld [vmem:[#allocation9 + $0x68] sm:$0xff]
        %v573 = vld [vmem:[#allocation9 + $0x70] sm:$0xff]
        %v574 = vld [vmem:[#allocation9 + $0x78] sm:$0xff]
        %v575 = vld [vmem:[#allocation9 + $0x80] sm:$0xff]
        %v576 = vld [vmem:[#allocation9 + $0x88] sm:$0xff]
        %v577 = vld [vmem:[#allocation9 + $0x90] sm:$0xff]
        %v578 = vld [vmem:[#allocation9 + $0x98] sm:$0xff]
        %v579 = vld [vmem:[#allocation9 + $0xa0] sm:$0xff]
        %v580 = vld [vmem:[#allocation9 + $0xa8] sm:$0xff]
        %v581 = vld [vmem:[#allocation9 + $0xb0] sm:$0xff]
        %v582 = vld [vmem:[#allocation9 + $0xb8] sm:$0xff]
        %v583 = vld [vmem:[#allocation9 + $0xc0] sm:$0xff]
        %v584 = vld [vmem:[#allocation9 + $0xc8] sm:$0xff]
        %v585 = vld [vmem:[#allocation9 + $0xd0] sm:$0xff]
        %v586 = vld [vmem:[#allocation9 + $0xd8] sm:$0xff]
        %v587 = vld [vmem:[#allocation9 + $0xe0] sm:$0xff]
        %v588 = vld [vmem:[#allocation9 + $0xe8] sm:$0xff]
        %v589 = vld [vmem:[#allocation9 + $0xf0] sm:$0xff]
        %v590 = vld [vmem:[#allocation9 + $0xf8] sm:$0xff]
        %v591 = vld [vmem:[#allocation10] sm:$0xf]
        %v592 = vld [vmem:[%s469] sm:$0xf]
        %v593 = vld [vmem:[%s469 + $0x4] sm:$0xf]
        %v594 = vld [vmem:[%s469 + $0x8] sm:$0xf]
        %v595 = vld [vmem:[%s469 + $0xc] sm:$0xf]
        %v596 = vld [vmem:[%s469 + $0x10] sm:$0xf]
        %v597 = vld [vmem:[%s469 + $0x14] sm:$0xf]
        %v598 = vld [vmem:[%s469 + $0x18] sm:$0xf]
        %v599 = vld [vmem:[%s469 + $0x1c] sm:$0xf]
        %v601 = vlaneseq
        %v602 = vshrl.u32 %v601, 7
        %v603 = vsub.s32 0, %v602
        %v604 = vrot.slane %v591, %v603
        %v605 = vlaneseq
        %v606 = vshrl.u32 %v605, 7
        %v607 = vsub.s32 1, %v606
        %v608 = vrot.slane %v591, %v607
        %v609 = vlaneseq
        %v610 = vshrl.u32 %v609, 7
        %v611 = vsub.s32 2, %v610
        %v612 = vrot.slane %v591, %v611
        %v613 = vlaneseq
        %v614 = vshrl.u32 %v613, 7
        %v615 = vsub.s32 3, %v614
        %v616 = vrot.slane %v591, %v615
        %v629 = vunpack.c.l.b16 %v592
        %v630 = vunpack.c.l.b16 %v593
        %v631 = vunpack.c.l.b16 %v594
        %v632 = vunpack.c.l.b16 %v595
        %v633 = vunpack.c.l.b16 %v596
        %v634 = vunpack.c.l.b16 %v597
        %v635 = vunpack.c.l.b16 %v598
        %v636 = vunpack.c.l.b16 %v599
        %v637 = vpack.c.b16 %v630, %v629
        %v638 = vpack.c.b16 %v632, %v631
        %v639 = vpack.c.b16 %v634, %v633
        %v640 = vpack.c.b16 %v636, %v635
        %v643 = vunpack.c.l.b16 %v557
        %v644 = vunpack.c.h.b16 %v557
        %v645 = vunpack.c.l.b16 %v558
        %v646 = vunpack.c.h.b16 %v558
        %v647 = vpack.c.b16 %v643, %v643
        %v648 = vpack.c.b16 %v644, %v644
        %v649 = vpack.c.b16 %v645, %v645
        %v650 = vpack.c.b16 %v646, %v646
        %vm651 = vcmask 64512
        %v653 = vsel %vm651, %v637, 0
        %v656 = vsel %vm651, %v638, 0
        %v659 = vsel %vm651, %v639, 0
        %v662 = vsel %vm651, %v640, 0
        %vm664 = vcmask 1043456
        %v666 = vsel %vm664, %v647, 0
        %v669 = vsel %vm664, %v648, 0
        %v672 = vsel %vm664, %v649, 0
        %v675 = vsel %vm664, %v650, 0
        %677 = vmatprep.subr.bf16.mxu0 %v669
        %678 = vmatpush1.bf16.msra.mxu0 %v666
        %679 = vmatprep.subr.bf16.mxu0 0
        %680 = vmatpush1.bf16.msra.mxu0 0
        %681 = vmatprep.subr.bf16.mxu0 0
        %682 = vmatpush1.bf16.msra.mxu0 0
        %683 = vmatprep.subr.bf16.mxu0 0
        %684 = vmatpush1.bf16.msra.mxu0 0
        %685 = vmatprep.subr.bf16.mxu0 0
        %686 = vmatpush1.bf16.msra.mxu0 0
        %687 = vmatprep.subr.bf16.mxu0 0
        %688 = vmatpush1.bf16.msra.mxu0 0
        %689 = vmatprep.subr.bf16.mxu0 0
        %690 = vmatpush1.bf16.msra.mxu0 0
        %691 = vmatprep.subr.bf16.mxu0 0
        %692 = vmatpush1.bf16.msra.mxu0 0
        %693 = vmatprep.subr.bf16.mxu0 0
        %694 = vmatpush1.bf16.msra.mxu0 0
        %695 = vmatprep.subr.bf16.mxu0 0
        %696 = vmatpush1.bf16.msra.mxu0 0
        %697 = vmatprep.subr.bf16.mxu0 0
        %698 = vmatpush1.bf16.msra.mxu0 0
        %699 = vmatprep.subr.bf16.mxu0 0
        %700 = vmatpush1.bf16.msra.mxu0 0
        %701 = vmatprep.subr.bf16.mxu0 0
        %702 = vmatpush1.bf16.msra.mxu0 0
        %703 = vmatprep.subr.bf16.mxu0 0
        %704 = vmatpush1.bf16.msra.mxu0 0
        %705 = vmatprep.subr.bf16.mxu0 0
        %706 = vmatpush1.bf16.msra.mxu0 0
        %707 = vmatprep.subr.bf16.mxu0 0
        %708 = vmatpush1.bf16.msra.mxu0 0
        %709 = vmatprep.mubr.bf16.mxu0 0
        %710 = vmatmul.mubr.bf16.gmra.mrb[0].mxu0 %v653
        %v711 = vpop.f32.mrb[0].mxu0
        %v712 = vadd.f32 %v604, %v711
        %v713 = vpop.f32.mrb[0].mxu0
        %v714 = vadd.f32 %v608, %v713
        %v715 = vpop.f32.mrb[0].mxu0
        %v716 = vadd.f32 %v604, %v715
        %v717 = vpop.f32.mrb[0].mxu0
        %v718 = vadd.f32 %v608, %v717
        %719 = vmatprep.mubr.bf16.mxu0 0
        %720 = vmatmul.mubr.bf16.gmra.mrb[0].mxu0 %v656
        %v721 = vpop.f32.mrb[0].mxu0
        %v722 = vadd.f32 %v604, %v721
        %v723 = vpop.f32.mrb[0].mxu0
        %v724 = vadd.f32 %v608, %v723
        %v725 = vpop.f32.mrb[0].mxu0
        %v726 = vadd.f32 %v604, %v725
        %v727 = vpop.f32.mrb[0].mxu0
        %v728 = vadd.f32 %v608, %v727
        %729 = vmatprep.mubr.bf16.mxu0 0
        %730 = vmatmul.mubr.bf16.gmra.mrb[0].mxu0 %v659
        %v731 = vpop.f32.mrb[0].mxu0
        %v732 = vadd.f32 %v604, %v731
        %v733 = vpop.f32.mrb[0].mxu0
        %v734 = vadd.f32 %v608, %v733
        %v735 = vpop.f32.mrb[0].mxu0
        %v736 = vadd.f32 %v604, %v735
        %v737 = vpop.f32.mrb[0].mxu0
        %v738 = vadd.f32 %v608, %v737
        %739 = vmatprep.mubr.bf16.mxu0 0
        %740 = vmatmul.mubr.bf16.gmra.mrb[0].mxu0 %v662
        %v741 = vpop.f32.mrb[0].mxu0
        %v742 = vadd.f32 %v604, %v741
        %v743 = vpop.f32.mrb[0].mxu0
        %v744 = vadd.f32 %v608, %v743
        %v745 = vpop.f32.mrb[0].mxu0
        %v746 = vadd.f32 %v604, %v745
        %v747 = vpop.f32.mrb[0].mxu0
        %v748 = vadd.f32 %v608, %v747
        %749 = vdwg.mxu0
        %750 = vmatprep.subr.bf16.mxu0 %v675
        %751 = vmatpush1.bf16.msra.mxu0 %v672
        %752 = vmatprep.subr.bf16.mxu0 0
        %753 = vmatpush1.bf16.msra.mxu0 0
        %754 = vmatprep.subr.bf16.mxu0 0
        %755 = vmatpush1.bf16.msra.mxu0 0
        %756 = vmatprep.subr.bf16.mxu0 0
        %757 = vmatpush1.bf16.msra.mxu0 0
        %758 = vmatprep.subr.bf16.mxu0 0
        %759 = vmatpush1.bf16.msra.mxu0 0
        %760 = vmatprep.subr.bf16.mxu0 0
        %761 = vmatpush1.bf16.msra.mxu0 0
        %762 = vmatprep.subr.bf16.mxu0 0
        %763 = vmatpush1.bf16.msra.mxu0 0
        %764 = vmatprep.subr.bf16.mxu0 0
        %765 = vmatpush1.bf16.msra.mxu0 0
        %766 = vmatprep.subr.bf16.mxu0 0
        %767 = vmatpush1.bf16.msra.mxu0 0
        %768 = vmatprep.subr.bf16.mxu0 0
        %769 = vmatpush1.bf16.msra.mxu0 0
        %770 = vmatprep.subr.bf16.mxu0 0
        %771 = vmatpush1.bf16.msra.mxu0 0
        %772 = vmatprep.subr.bf16.mxu0 0
        %773 = vmatpush1.bf16.msra.mxu0 0
        %774 = vmatprep.subr.bf16.mxu0 0
        %775 = vmatpush1.bf16.msra.mxu0 0
        %776 = vmatprep.subr.bf16.mxu0 0
        %777 = vmatpush1.bf16.msra.mxu0 0
        %778 = vmatprep.subr.bf16.mxu0 0
        %779 = vmatpush1.bf16.msra.mxu0 0
        %780 = vmatprep.subr.bf16.mxu0 0
        %781 = vmatpush1.bf16.msra.mxu0 0
        %782 = vmatprep.mubr.bf16.mxu0 0
        %783 = vmatmul.mubr.bf16.gmra.mrb[0].mxu0 %v653
        %v784 = vpop.f32.mrb[0].mxu0
        %v785 = vadd.f32 %v612, %v784
        %v786 = vpop.f32.mrb[0].mxu0
        %v787 = vadd.f32 %v616, %v786
        %v788 = vpop.f32.mrb[0].mxu0
        %v789 = vadd.f32 %v612, %v788
        %v790 = vpop.f32.mrb[0].mxu0
        %v791 = vadd.f32 %v616, %v790
        %792 = vmatprep.mubr.bf16.mxu0 0
        %793 = vmatmul.mubr.bf16.gmra.mrb[0].mxu0 %v656
        %v794 = vpop.f32.mrb[0].mxu0
        %v795 = vadd.f32 %v612, %v794
        %v796 = vpop.f32.mrb[0].mxu0
        %v797 = vadd.f32 %v616, %v796
        %v798 = vpop.f32.mrb[0].mxu0
        %v799 = vadd.f32 %v612, %v798
        %v800 = vpop.f32.mrb[0].mxu0
        %v801 = vadd.f32 %v616, %v800
        %802 = vmatprep.mubr.bf16.mxu0 0
        %803 = vmatmul.mubr.bf16.gmra.mrb[0].mxu0 %v659
        %v804 = vpop.f32.mrb[0].mxu0
        %v805 = vadd.f32 %v612, %v804
        %v806 = vpop.f32.mrb[0].mxu0
        %v807 = vadd.f32 %v616, %v806
        %v808 = vpop.f32.mrb[0].mxu0
        %v809 = vadd.f32 %v612, %v808
        %v810 = vpop.f32.mrb[0].mxu0
        %v811 = vadd.f32 %v616, %v810
        %812 = vmatprep.mubr.bf16.mxu0 0
        %813 = vmatmul.mubr.bf16.gmra.mrb[0].mxu0 %v662
        %v814 = vpop.f32.mrb[0].mxu0
        %v815 = vadd.f32 %v612, %v814
        %v816 = vpop.f32.mrb[0].mxu0
        %v817 = vadd.f32 %v616, %v816
        %v818 = vpop.f32.mrb[0].mxu0
        %v819 = vadd.f32 %v612, %v818
        %v820 = vpop.f32.mrb[0].mxu0
        %v821 = vadd.f32 %v616, %v820
        %822 = vdwg.mxu0
        %v823 = vpack.c.bf16 %v716, %v712
        %v824 = vpack.c.bf16 %v718, %v714
        %v825 = vpack.c.bf16 %v789, %v785
        %v826 = vpack.c.bf16 %v791, %v787
        %v827 = vpack.c.bf16 %v726, %v722
        %v828 = vpack.c.bf16 %v728, %v724
        %v829 = vpack.c.bf16 %v799, %v795
        %v830 = vpack.c.bf16 %v801, %v797
        %v831 = vpack.c.bf16 %v736, %v732
        %v832 = vpack.c.bf16 %v738, %v734
        %v833 = vpack.c.bf16 %v809, %v805
        %v834 = vpack.c.bf16 %v811, %v807
        %v835 = vpack.c.bf16 %v746, %v742
        %v836 = vpack.c.bf16 %v748, %v744
        %v837 = vpack.c.bf16 %v819, %v815
        %v838 = vpack.c.bf16 %v821, %v817
        %v855 = vunpack.c.l.b16 %v823
        %v856 = vunpack.c.l.b16 %v824
        %v857 = vunpack.c.l.b16 %v825
        %v858 = vunpack.c.l.b16 %v826
        %v859 = vunpack.c.h.b16 %v823
        %v860 = vunpack.c.h.b16 %v824
        %v861 = vunpack.c.h.b16 %v825
        %v862 = vunpack.c.h.b16 %v826
        %v863 = vunpack.c.l.b16 %v827
        %v864 = vunpack.c.l.b16 %v828
        %v865 = vunpack.c.l.b16 %v829
        %v866 = vunpack.c.l.b16 %v830
        %v867 = vunpack.c.h.b16 %v827
        %v868 = vunpack.c.h.b16 %v828
        %v869 = vunpack.c.h.b16 %v829
        %v870 = vunpack.c.h.b16 %v830
        %v871 = vunpack.c.l.b16 %v831
        %v872 = vunpack.c.l.b16 %v832
        %v873 = vunpack.c.l.b16 %v833
        %v874 = vunpack.c.l.b16 %v834
        %v875 = vunpack.c.h.b16 %v831
        %v876 = vunpack.c.h.b16 %v832
        %v877 = vunpack.c.h.b16 %v833
        %v878 = vunpack.c.h.b16 %v834
        %v879 = vunpack.c.l.b16 %v835
        %v880 = vunpack.c.l.b16 %v836
        %v881 = vunpack.c.l.b16 %v837
        %v882 = vunpack.c.l.b16 %v838
        %v883 = vunpack.c.h.b16 %v835
        %v884 = vunpack.c.h.b16 %v836
        %v885 = vunpack.c.h.b16 %v837
        %v886 = vunpack.c.h.b16 %v838
        %v887 = vpack.c.b16 %v856, %v855
        %v888 = vpack.c.b16 %v858, %v857
        %v889 = vpack.c.b16 %v860, %v859
        %v890 = vpack.c.b16 %v862, %v861
        %v891 = vpack.c.b16 %v864, %v863
        %v892 = vpack.c.b16 %v866, %v865
        %v893 = vpack.c.b16 %v868, %v867
        %v894 = vpack.c.b16 %v870, %v869
        %v895 = vpack.c.b16 %v872, %v871
        %v896 = vpack.c.b16 %v874, %v873
        %v897 = vpack.c.b16 %v876, %v875
        %v898 = vpack.c.b16 %v878, %v877
        %v899 = vpack.c.b16 %v880, %v879
        %v900 = vpack.c.b16 %v882, %v881
        %v901 = vpack.c.b16 %v884, %v883
        %v902 = vpack.c.b16 %v886, %v885
        %919 = vst [vmem:[#allocation3] sm:$0xff] %v887
        %920 = vst [vmem:[#allocation3 + $0x8] sm:$0xff] %v888
        %921 = vst [vmem:[#allocation3 + $0x10] sm:$0xff] %v889
        %922 = vst [vmem:[#allocation3 + $0x18] sm:$0xff] %v890
        %923 = vst [vmem:[#allocation3 + $0x20] sm:$0xff] %v891
        %924 = vst [vmem:[#allocation3 + $0x28] sm:$0xff] %v892
        %925 = vst [vmem:[#allocation3 + $0x30] sm:$0xff] %v893
        %926 = vst [vmem:[#allocation3 + $0x38] sm:$0xff] %v894
        %927 = vst [vmem:[#allocation3 + $0x40] sm:$0xff] %v895
        %928 = vst [vmem:[#allocation3 + $0x48] sm:$0xff] %v896
        %929 = vst [vmem:[#allocation3 + $0x50] sm:$0xff] %v897
        %930 = vst [vmem:[#allocation3 + $0x58] sm:$0xff] %v898
        %931 = vst [vmem:[#allocation3 + $0x60] sm:$0xff] %v899
        %932 = vst [vmem:[#allocation3 + $0x68] sm:$0xff] %v900
        %933 = vst [vmem:[#allocation3 + $0x70] sm:$0xff] %v901
        %934 = vst [vmem:[#allocation3 + $0x78] sm:$0xff] %v902
        %v935 = vld [vmem:[#allocation3] sm:$0xff]
        %v936 = vld [vmem:[#allocation3 + $0x8] sm:$0xff]
        %v969 = vunpack.c.l.b16 %v559
        %v970 = vunpack.c.h.b16 %v559
        %v971 = vunpack.c.l.b16 %v560
        %v972 = vunpack.c.h.b16 %v560
        %v973 = vunpack.c.l.b16 %v561
        %v974 = vunpack.c.h.b16 %v561
        %v975 = vunpack.c.l.b16 %v562
        %v976 = vunpack.c.h.b16 %v562
        %v977 = vunpack.c.l.b16 %v563
        %v978 = vunpack.c.h.b16 %v563
        %v979 = vunpack.c.l.b16 %v564
        %v980 = vunpack.c.h.b16 %v564
        %v981 = vunpack.c.l.b16 %v565
        %v982 = vunpack.c.h.b16 %v565
        %v983 = vunpack.c.l.b16 %v566
        %v984 = vunpack.c.h.b16 %v566
        %v985 = vunpack.c.l.b16 %v567
        %v986 = vunpack.c.h.b16 %v567
        %v987 = vunpack.c.l.b16 %v568
        %v988 = vunpack.c.h.b16 %v568
        %v989 = vunpack.c.l.b16 %v569
        %v990 = vunpack.c.h.b16 %v569
        %v991 = vunpack.c.l.b16 %v570
        %v992 = vunpack.c.h.b16 %v570
        %v993 = vunpack.c.l.b16 %v571
        %v994 = vunpack.c.h.b16 %v571
        %v995 = vunpack.c.l.b16 %v572
        %v996 = vunpack.c.h.b16 %v572
        %v997 = vunpack.c.l.b16 %v573
        %v998 = vunpack.c.h.b16 %v573
        %v999 = vunpack.c.l.b16 %v574
        %v1000 = vunpack.c.h.b16 %v574
        %v1001 = vunpack.c.l.b16 %v575
        %v1002 = vunpack.c.h.b16 %v575
        %v1003 = vunpack.c.l.b16 %v576
        %v1004 = vunpack.c.h.b16 %v576
        %v1005 = vunpack.c.l.b16 %v577
        %v1006 = vunpack.c.h.b16 %v577
        %v1007 = vunpack.c.l.b16 %v578
        %v1008 = vunpack.c.h.b16 %v578
        %v1009 = vunpack.c.l.b16 %v579
        %v1010 = vunpack.c.h.b16 %v579
        %v1011 = vunpack.c.l.b16 %v580
        %v1012 = vunpack.c.h.b16 %v580
        %v1013 = vunpack.c.l.b16 %v581
        %v1014 = vunpack.c.h.b16 %v581
        %v1015 = vunpack.c.l.b16 %v582
        %v1016 = vunpack.c.h.b16 %v582
        %v1017 = vunpack.c.l.b16 %v583
        %v1018 = vunpack.c.h.b16 %v583
        %v1019 = vunpack.c.l.b16 %v584
        %v1020 = vunpack.c.h.b16 %v584
        %v1021 = vunpack.c.l.b16 %v585
        %v1022 = vunpack.c.h.b16 %v585
        %v1023 = vunpack.c.l.b16 %v586
        %v1024 = vunpack.c.h.b16 %v586
        %v1025 = vunpack.c.l.b16 %v587
        %v1026 = vunpack.c.h.b16 %v587
        %v1027 = vunpack.c.l.b16 %v588
        %v1028 = vunpack.c.h.b16 %v588
        %v1029 = vunpack.c.l.b16 %v589
        %v1030 = vunpack.c.h.b16 %v589
        %v1031 = vunpack.c.l.b16 %v590
        %v1032 = vunpack.c.h.b16 %v590
        %v1033 = vpack.c.b16 %v973, %v969
        %v1034 = vpack.c.b16 %v974, %v970
        %v1035 = vpack.c.b16 %v975, %v971
        %v1036 = vpack.c.b16 %v976, %v972
        %v1037 = vpack.c.b16 %v981, %v977
        %v1038 = vpack.c.b16 %v982, %v978
        %v1039 = vpack.c.b16 %v983, %v979
        %v1040 = vpack.c.b16 %v984, %v980
        %v1041 = vpack.c.b16 %v989, %v985
        %v1042 = vpack.c.b16 %v990, %v986
        %v1043 = vpack.c.b16 %v991, %v987
        %v1044 = vpack.c.b16 %v992, %v988
        %v1045 = vpack.c.b16 %v997, %v993
        %v1046 = vpack.c.b16 %v998, %v994
        %v1047 = vpack.c.b16 %v999, %v995
        %v1048 = vpack.c.b16 %v1000, %v996
        %v1049 = vpack.c.b16 %v1005, %v1001
        %v1050 = vpack.c.b16 %v1006, %v1002
        %v1051 = vpack.c.b16 %v1007, %v1003
        %v1052 = vpack.c.b16 %v1008, %v1004
        %v1053 = vpack.c.b16 %v1013, %v1009
        %v1054 = vpack.c.b16 %v1014, %v1010
        %v1055 = vpack.c.b16 %v1015, %v1011
        %v1056 = vpack.c.b16 %v1016, %v1012
        %v1057 = vpack.c.b16 %v1021, %v1017
        %v1058 = vpack.c.b16 %v1022, %v1018
        %v1059 = vpack.c.b16 %v1023, %v1019
        %v1060 = vpack.c.b16 %v1024, %v1020
        %v1061 = vpack.c.b16 %v1029, %v1025
        %v1062 = vpack.c.b16 %v1030, %v1026
        %v1063 = vpack.c.b16 %v1031, %v1027
        %v1064 = vpack.c.b16 %v1032, %v1028
        %1097 = vmatprep.subr.bf16.mxu0 %v1034
        %1098 = vmatpush1.bf16.msra.mxu0 %v1033
        %1099 = vmatprep.subr.bf16.mxu0 %v1038
        %1100 = vmatpush1.bf16.msra.mxu0 %v1037
        %1101 = vmatprep.subr.bf16.mxu0 %v1042
        %1102 = vmatpush1.bf16.msra.mxu0 %v1041
        %1103 = vmatprep.subr.bf16.mxu0 %v1046
        %1104 = vmatpush1.bf16.msra.mxu0 %v1045
        %1105 = vmatprep.subr.bf16.mxu0 %v1050
        %1106 = vmatpush1.bf16.msra.mxu0 %v1049
        %1107 = vmatprep.subr.bf16.mxu0 %v1054
        %1108 = vmatpush1.bf16.msra.mxu0 %v1053
        %1109 = vmatprep.subr.bf16.mxu0 %v1058
        %1110 = vmatpush1.bf16.msra.mxu0 %v1057
        %1111 = vmatprep.subr.bf16.mxu0 %v1062
        %1112 = vmatpush1.bf16.msra.mxu0 %v1061
        %1113 = vmatprep.subr.bf16.mxu0 0
        %1114 = vmatpush1.bf16.msra.mxu0 0
        %1115 = vmatprep.subr.bf16.mxu0 0
        %1116 = vmatpush1.bf16.msra.mxu0 0
        %1117 = vmatprep.subr.bf16.mxu0 0
        %1118 = vmatpush1.bf16.msra.mxu0 0
        %1119 = vmatprep.subr.bf16.mxu0 0
        %1120 = vmatpush1.bf16.msra.mxu0 0
        %1121 = vmatprep.subr.bf16.mxu0 0
        %1122 = vmatpush1.bf16.msra.mxu0 0
        %1123 = vmatprep.subr.bf16.mxu0 0
        %1124 = vmatpush1.bf16.msra.mxu0 0
        %1125 = vmatprep.subr.bf16.mxu0 0
        %1126 = vmatpush1.bf16.msra.mxu0 0
        %1127 = vmatprep.subr.bf16.mxu0 0
        %1128 = vmatpush1.bf16.msra.mxu0 0
        %1129 = vmatprep.mubr.bf16.mxu0 0
        %1130 = vmatmul.mubr.bf16.gmra.mrb[0].mxu0 0
        %v1131 = vpop.f32.mrb[0].mxu0
        %v1132 = vadd.f32 0.0, %v1131
        %v1133 = vpop.f32.mrb[0].mxu0
        %v1134 = vadd.f32 0.0, %v1133
        %v1135 = vpop.f32.mrb[0].mxu0
        %v1136 = vpop.f32.mrb[0].mxu0
        %1137 = vdwg.mxu0
        %1138 = vmatprep.subr.bf16.mxu0 %v1036
        %1139 = vmatpush1.bf16.msra.mxu0 %v1035
        %1140 = vmatprep.subr.bf16.mxu0 %v1040
        %1141 = vmatpush1.bf16.msra.mxu0 %v1039
        %1142 = vmatprep.subr.bf16.mxu0 %v1044
        %1143 = vmatpush1.bf16.msra.mxu0 %v1043
        %1144 = vmatprep.subr.bf16.mxu0 %v1048
        %1145 = vmatpush1.bf16.msra.mxu0 %v1047
        %1146 = vmatprep.subr.bf16.mxu0 %v1052
        %1147 = vmatpush1.bf16.msra.mxu0 %v1051
        %1148 = vmatprep.subr.bf16.mxu0 %v1056
        %1149 = vmatpush1.bf16.msra.mxu0 %v1055
        %1150 = vmatprep.subr.bf16.mxu0 %v1060
        %1151 = vmatpush1.bf16.msra.mxu0 %v1059
        %1152 = vmatprep.subr.bf16.mxu0 %v1064
        %1153 = vmatpush1.bf16.msra.mxu0 %v1063
        %1154 = vmatprep.subr.bf16.mxu0 0
        %1155 = vmatpush1.bf16.msra.mxu0 0
        %1156 = vmatprep.subr.bf16.mxu0 0
        %1157 = vmatpush1.bf16.msra.mxu0 0
        %1158 = vmatprep.subr.bf16.mxu0 0
        %1159 = vmatpush1.bf16.msra.mxu0 0
        %1160 = vmatprep.subr.bf16.mxu0 0
        %1161 = vmatpush1.bf16.msra.mxu0 0
        %1162 = vmatprep.subr.bf16.mxu0 0
        %1163 = vmatpush1.bf16.msra.mxu0 0
        %1164 = vmatprep.subr.bf16.mxu0 0
        %1165 = vmatpush1.bf16.msra.mxu0 0
        %1166 = vmatprep.subr.bf16.mxu0 0
        %1167 = vmatpush1.bf16.msra.mxu0 0
        %1168 = vmatprep.subr.bf16.mxu0 0
        %1169 = vmatpush1.bf16.msra.mxu0 0
        %1170 = vmatprep.mubr.bf16.mxu0 0
        %1171 = vmatmul.mubr.bf16.gmra.mrb[0].mxu0 0
        %v1172 = vpop.f32.mrb[0].mxu0
        %v1173 = vadd.f32 0.0, %v1172
        %v1174 = vpop.f32.mrb[0].mxu0
        %v1175 = vadd.f32 0.0, %v1174
        %v1176 = vpop.f32.mrb[0].mxu0
        %v1177 = vpop.f32.mrb[0].mxu0
        %1178 = vdwg.mxu0
        %v1179 = vunpack.c.l.bf16 %v935
        %v1180 = vunpack.c.h.bf16 %v935
        %v1181 = vunpack.c.l.bf16 %v936
        %v1182 = vunpack.c.h.bf16 %v936
        %v1183 = vadd.f32 %v1179, %v1132
        %v1184 = vadd.f32 %v1180, %v1134
        %v1185 = vadd.f32 %v1181, %v1173
        %v1186 = vadd.f32 %v1182, %v1175
        %v1187 = vxor.u32 %v1183, 2147483648
        %v1188 = vmul.f32 %v1187, 1.442695
        %v1189 = vpow.pop %v1188
        %v1190 = vadd.f32 %v1189, 1.0
        %v1191 = vrcp.pop %v1190
        %v1192 = vmul.f32 1.0, %v1191
        %v1193 = vxor.u32 %v1184, 2147483648
        %v1194 = vmul.f32 %v1193, 1.442695
        %v1195 = vpow.pop %v1194
        %v1196 = vadd.f32 %v1195, 1.0
        %v1197 = vrcp.pop %v1196
        %v1198 = vmul.f32 1.0, %v1197
        %v1199 = vtanh.pop %v1185
        %v1200 = vxor.u32 %v1186, 2147483648
        %v1201 = vmul.f32 %v1200, 1.442695
        %v1202 = vpow.pop %v1201
        %v1203 = vadd.f32 %v1202, 1.0
        %v1204 = vrcp.pop %v1203
        %v1205 = vmul.f32 1.0, %v1204
        %v1206 = vmul.f32 %v1198, 0.0
        %v1207 = vmul.f32 %v1192, %v1199
        %v1208 = vadd.f32 %v1206, %v1207
        %v1209 = vtanh.pop %v1208
        %v1210 = vmul.f32 %v1205, %v1209
        %v1211 = vpack.c.bf16 %v1210, %v1210
        %1212 = vst [vmem:[#allocation2] sm:$0xf] %v1211
        %s1213 = scalar_lea.vmem [#allocation3], 16
        %v1214 = vld [vmem:[%s1213] sm:$0xff]
        %v1215 = vld [vmem:[%s1213 + $0x8] sm:$0xff]
        %1216 = vmatprep.subr.bf16.mxu0 %v1034
        %1217 = vmatpush1.bf16.msra.mxu0 %v1033
        %1218 = vmatprep.subr.bf16.mxu0 %v1038
        %1219 = vmatpush1.bf16.msra.mxu0 %v1037
        %1220 = vmatprep.subr.bf16.mxu0 %v1042
        %1221 = vmatpush1.bf16.msra.mxu0 %v1041
        %1222 = vmatprep.subr.bf16.mxu0 %v1046
        %1223 = vmatpush1.bf16.msra.mxu0 %v1045
        %1224 = vmatprep.subr.bf16.mxu0 %v1050
        %1225 = vmatpush1.bf16.msra.mxu0 %v1049
        %1226 = vmatprep.subr.bf16.mxu0 %v1054
        %1227 = vmatpush1.bf16.msra.mxu0 %v1053
        %1228 = vmatprep.subr.bf16.mxu0 %v1058
        %1229 = vmatpush1.bf16.msra.mxu0 %v1057
        %1230 = vmatprep.subr.bf16.mxu0 %v1062
        %1231 = vmatpush1.bf16.msra.mxu0 %v1061
        %1232 = vmatprep.subr.bf16.mxu0 0
        %1233 = vmatpush1.bf16.msra.mxu0 0
        %1234 = vmatprep.subr.bf16.mxu0 0
        %1235 = vmatpush1.bf16.msra.mxu0 0
        %1236 = vmatprep.subr.bf16.mxu0 0
        %1237 = vmatpush1.bf16.msra.mxu0 0
        %1238 = vmatprep.subr.bf16.mxu0 0
        %1239 = vmatpush1.bf16.msra.mxu0 0
        %1240 = vmatprep.subr.bf16.mxu0 0
        %1241 = vmatpush1.bf16.msra.mxu0 0
        %1242 = vmatprep.subr.bf16.mxu0 0
        %1243 = vmatpush1.bf16.msra.mxu0 0
        %1244 = vmatprep.subr.bf16.mxu0 0
        %1245 = vmatpush1.bf16.msra.mxu0 0
        %1246 = vmatprep.subr.bf16.mxu0 0
        %1247 = vmatpush1.bf16.msra.mxu0 0
        %1248 = vmatprep.mubr.bf16.mxu0 0
        %1249 = vmatmul.mubr.bf16.gmra.mrb[0].mxu0 %v1211
        %v1250 = vpop.f32.mrb[0].mxu0
        %v1251 = vadd.f32 0.0, %v1250
        %v1252 = vpop.f32.mrb[0].mxu0
        %v1253 = vadd.f32 0.0, %v1252
        %v1254 = vpop.f32.mrb[0].mxu0
        %v1255 = vpop.f32.mrb[0].mxu0
        %1256 = vdwg.mxu0
        %1257 = vmatprep.subr.bf16.mxu0 %v1036
        %1258 = vmatpush1.bf16.msra.mxu0 %v1035
        %1259 = vmatprep.subr.bf16.mxu0 %v1040
        %1260 = vmatpush1.bf16.msra.mxu0 %v1039
        %1261 = vmatprep.subr.bf16.mxu0 %v1044
        %1262 = vmatpush1.bf16.msra.mxu0 %v1043
        %1263 = vmatprep.subr.bf16.mxu0 %v1048
        %1264 = vmatpush1.bf16.msra.mxu0 %v1047
        %1265 = vmatprep.subr.bf16.mxu0 %v1052
        %1266 = vmatpush1.bf16.msra.mxu0 %v1051
        %1267 = vmatprep.subr.bf16.mxu0 %v1056
        %1268 = vmatpush1.bf16.msra.mxu0 %v1055
        %1269 = vmatprep.subr.bf16.mxu0 %v1060
        %1270 = vmatpush1.bf16.msra.mxu0 %v1059
        %1271 = vmatprep.subr.bf16.mxu0 %v1064
        %1272 = vmatpush1.bf16.msra.mxu0 %v1063
        %1273 = vmatprep.subr.bf16.mxu0 0
        %1274 = vmatpush1.bf16.msra.mxu0 0
        %1275 = vmatprep.subr.bf16.mxu0 0
        %1276 = vmatpush1.bf16.msra.mxu0 0
        %1277 = vmatprep.subr.bf16.mxu0 0
        %1278 = vmatpush1.bf16.msra.mxu0 0
        %1279 = vmatprep.subr.bf16.mxu0 0
        %1280 = vmatpush1.bf16.msra.mxu0 0
        %1281 = vmatprep.subr.bf16.mxu0 0
        %1282 = vmatpush1.bf16.msra.mxu0 0
        %1283 = vmatprep.subr.bf16.mxu0 0
        %1284 = vmatpush1.bf16.msra.mxu0 0
        %1285 = vmatprep.subr.bf16.mxu0 0
        %1286 = vmatpush1.bf16.msra.mxu0 0
        %1287 = vmatprep.subr.bf16.mxu0 0
        %1288 = vmatpush1.bf16.msra.mxu0 0
        %1289 = vmatprep.mubr.bf16.mxu0 0
        %1290 = vmatmul.mubr.bf16.gmra.mrb[0].mxu0 %v1211
        %v1291 = vpop.f32.mrb[0].mxu0
        %v1292 = vadd.f32 0.0, %v1291
        %v1293 = vpop.f32.mrb[0].mxu0
        %v1294 = vadd.f32 0.0, %v1293
        %v1295 = vpop.f32.mrb[0].mxu0
        %v1296 = vpop.f32.mrb[0].mxu0
        %1297 = vdwg.mxu0
        %v1298 = vunpack.c.l.bf16 %v1214
        %v1299 = vunpack.c.h.bf16 %v1214
        %v1300 = vunpack.c.l.bf16 %v1215
        %v1301 = vunpack.c.h.bf16 %v1215
        %v1302 = vadd.f32 %v1298, %v1251
        %v1303 = vadd.f32 %v1299, %v1253
        %v1304 = vadd.f32 %v1300, %v1292
        %v1305 = vadd.f32 %v1301, %v1294
        %v1306 = vxor.u32 %v1302, 2147483648
        %v1307 = vmul.f32 %v1306, 1.442695
        %v1308 = vpow.pop %v1307
        %v1309 = vadd.f32 %v1308, 1.0
        %v1310 = vrcp.pop %v1309
        %v1311 = vmul.f32 1.0, %v1310
        %v1312 = vxor.u32 %v1303, 2147483648
        %v1313 = vmul.f32 %v1312, 1.442695
        %v1314 = vpow.pop %v1313
        %v1315 = vadd.f32 %v1314, 1.0
        %v1316 = vrcp.pop %v1315
        %v1317 = vmul.f32 1.0, %v1316
        %v1318 = vtanh.pop %v1304
        %v1319 = vxor.u32 %v1305, 2147483648
        %v1320 = vmul.f32 %v1319, 1.442695
        %v1321 = vpow.pop %v1320
        %v1322 = vadd.f32 %v1321, 1.0
        %v1323 = vrcp.pop %v1322
        %v1324 = vmul.f32 1.0, %v1323
        %v1325 = vmul.f32 %v1317, %v1208
        %v1326 = vmul.f32 %v1311, %v1318
        %v1327 = vadd.f32 %v1325, %v1326
        %v1328 = vtanh.pop %v1327
        %v1329 = vmul.f32 %v1324, %v1328
        %v1330 = vpack.c.bf16 %v1329, %v1329
        %s1331 = sadd.s32 0, 1
        %s1332 = smul.addr %s1331, 4
        %s1333 = scalar_lea.vmem [#allocation2], %s1332
        %1334 = vst [vmem:[%s1333] sm:$0xf] %v1330
        %s1335 = scalar_lea.vmem [#allocation3], 32
        %v1336 = vld [vmem:[%s1335] sm:$0xff]
        %v1337 = vld [vmem:[%s1335 + $0x8] sm:$0xff]
        %1338 = vmatprep.subr.bf16.mxu0 %v1034
        %1339 = vmatpush1.bf16.msra.mxu0 %v1033
        %1340 = vmatprep.subr.bf16.mxu0 %v1038
        %1341 = vmatpush1.bf16.msra.mxu0 %v1037
        %1342 = vmatprep.subr.bf16.mxu0 %v1042
        %1343 = vmatpush1.bf16.msra.mxu0 %v1041
        %1344 = vmatprep.subr.bf16.mxu0 %v1046
        %1345 = vmatpush1.bf16.msra.mxu0 %v1045
        %1346 = vmatprep.subr.bf16.mxu0 %v1050
        %1347 = vmatpush1.bf16.msra.mxu0 %v1049
        %1348 = vmatprep.subr.bf16.mxu0 %v1054
        %1349 = vmatpush1.bf16.msra.mxu0 %v1053
        %1350 = vmatprep.subr.bf16.mxu0 %v1058
        %1351 = vmatpush1.bf16.msra.mxu0 %v1057
        %1352 = vmatprep.subr.bf16.mxu0 %v1062
        %1353 = vmatpush1.bf16.msra.mxu0 %v1061
        %1354 = vmatprep.subr.bf16.mxu0 0
        %1355 = vmatpush1.bf16.msra.mxu0 0
        %1356 = vmatprep.subr.bf16.mxu0 0
        %1357 = vmatpush1.bf16.msra.mxu0 0
        %1358 = vmatprep.subr.bf16.mxu0 0
        %1359 = vmatpush1.bf16.msra.mxu0 0
        %1360 = vmatprep.subr.bf16.mxu0 0
        %1361 = vmatpush1.bf16.msra.mxu0 0
        %1362 = vmatprep.subr.bf16.mxu0 0
        %1363 = vmatpush1.bf16.msra.mxu0 0
        %1364 = vmatprep.subr.bf16.mxu0 0
        %1365 = vmatpush1.bf16.msra.mxu0 0
        %1366 = vmatprep.subr.bf16.mxu0 0
        %1367 = vmatpush1.bf16.msra.mxu0 0
        %1368 = vmatprep.subr.bf16.mxu0 0
        %1369 = vmatpush1.bf16.msra.mxu0 0
        %1370 = vmatprep.mubr.bf16.mxu0 0
        %1371 = vmatmul.mubr.bf16.gmra.mrb[0].mxu0 %v1330
        %v1372 = vpop.f32.mrb[0].mxu0
        %v1373 = vadd.f32 0.0, %v1372
        %v1374 = vpop.f32.mrb[0].mxu0
        %v1375 = vadd.f32 0.0, %v1374
        %v1376 = vpop.f32.mrb[0].mxu0
        %v1377 = vpop.f32.mrb[0].mxu0
        %1378 = vdwg.mxu0
        %1379 = vmatprep.subr.bf16.mxu0 %v1036
        %1380 = vmatpush1.bf16.msra.mxu0 %v1035
        %1381 = vmatprep.subr.bf16.mxu0 %v1040
        %1382 = vmatpush1.bf16.msra.mxu0 %v1039
        %1383 = vmatprep.subr.bf16.mxu0 %v1044
        %1384 = vmatpush1.bf16.msra.mxu0 %v1043
        %1385 = vmatprep.subr.bf16.mxu0 %v1048
        %1386 = vmatpush1.bf16.msra.mxu0 %v1047
        %1387 = vmatprep.subr.bf16.mxu0 %v1052
        %1388 = vmatpush1.bf16.msra.mxu0 %v1051
        %1389 = vmatprep.subr.bf16.mxu0 %v1056
        %1390 = vmatpush1.bf16.msra.mxu0 %v1055
        %1391 = vmatprep.subr.bf16.mxu0 %v1060
        %1392 = vmatpush1.bf16.msra.mxu0 %v1059
        %1393 = vmatprep.subr.bf16.mxu0 %v1064
        %1394 = vmatpush1.bf16.msra.mxu0 %v1063
        %1395 = vmatprep.subr.bf16.mxu0 0
        %1396 = vmatpush1.bf16.msra.mxu0 0
        %1397 = vmatprep.subr.bf16.mxu0 0
        %1398 = vmatpush1.bf16.msra.mxu0 0
        %1399 = vmatprep.subr.bf16.mxu0 0
        %1400 = vmatpush1.bf16.msra.mxu0 0
        %1401 = vmatprep.subr.bf16.mxu0 0
        %1402 = vmatpush1.bf16.msra.mxu0 0
        %1403 = vmatprep.subr.bf16.mxu0 0
        %1404 = vmatpush1.bf16.msra.mxu0 0
        %1405 = vmatprep.subr.bf16.mxu0 0
        %1406 = vmatpush1.bf16.msra.mxu0 0
        %1407 = vmatprep.subr.bf16.mxu0 0
        %1408 = vmatpush1.bf16.msra.mxu0 0
        %1409 = vmatprep.subr.bf16.mxu0 0
        %1410 = vmatpush1.bf16.msra.mxu0 0
        %1411 = vmatprep.mubr.bf16.mxu0 0
        %1412 = vmatmul.mubr.bf16.gmra.mrb[0].mxu0 %v1330
        %v1413 = vpop.f32.mrb[0].mxu0
        %v1414 = vadd.f32 0.0, %v1413
        %v1415 = vpop.f32.mrb[0].mxu0
        %v1416 = vadd.f32 0.0, %v1415
        %v1417 = vpop.f32.mrb[0].mxu0
        %v1418 = vpop.f32.mrb[0].mxu0
        %1419 = vdwg.mxu0
        %v1420 = vunpack.c.l.bf16 %v1336
        %v1421 = vunpack.c.h.bf16 %v1336
        %v1422 = vunpack.c.l.bf16 %v1337
        %v1423 = vunpack.c.h.bf16 %v1337
        %v1424 = vadd.f32 %v1420, %v1373
        %v1425 = vadd.f32 %v1421, %v1375
        %v1426 = vadd.f32 %v1422, %v1414
        %v1427 = vadd.f32 %v1423, %v1416
        %v1428 = vxor.u32 %v1424, 2147483648
        %v1429 = vmul.f32 %v1428, 1.442695
        %v1430 = vpow.pop %v1429
        %v1431 = vadd.f32 %v1430, 1.0
        %v1432 = vrcp.pop %v1431
        %v1433 = vmul.f32 1.0, %v1432
        %v1434 = vxor.u32 %v1425, 2147483648
        %v1435 = vmul.f32 %v1434, 1.442695
        %v1436 = vpow.pop %v1435
        %v1437 = vadd.f32 %v1436, 1.0
        %v1438 = vrcp.pop %v1437
        %v1439 = vmul.f32 1.0, %v1438
        %v1440 = vtanh.pop %v1426
        %v1441 = vxor.u32 %v1427, 2147483648
        %v1442 = vmul.f32 %v1441, 1.442695
        %v1443 = vpow.pop %v1442
        %v1444 = vadd.f32 %v1443, 1.0
        %v1445 = vrcp.pop %v1444
        %v1446 = vmul.f32 1.0, %v1445
        %v1447 = vmul.f32 %v1439, %v1327
        %v1448 = vmul.f32 %v1433, %v1440
        %v1449 = vadd.f32 %v1447, %v1448
        %v1450 = vtanh.pop %v1449
        %v1451 = vmul.f32 %v1446, %v1450
        %v1452 = vpack.c.bf16 %v1451, %v1451
        %s1453 = sadd.s32 0, 2
        %s1454 = smul.addr %s1453, 4
        %s1455 = scalar_lea.vmem [#allocation2], %s1454
        %1456 = vst [vmem:[%s1455] sm:$0xf] %v1452
        %s1457 = scalar_lea.vmem [#allocation3], 48
        %v1458 = vld [vmem:[%s1457] sm:$0xff]
        %v1459 = vld [vmem:[%s1457 + $0x8] sm:$0xff]
        %1460 = vmatprep.subr.bf16.mxu0 %v1034
        %1461 = vmatpush1.bf16.msra.mxu0 %v1033
        %1462 = vmatprep.subr.bf16.mxu0 %v1038
        %1463 = vmatpush1.bf16.msra.mxu0 %v1037
        %1464 = vmatprep.subr.bf16.mxu0 %v1042
        %1465 = vmatpush1.bf16.msra.mxu0 %v1041
        %1466 = vmatprep.subr.bf16.mxu0 %v1046
        %1467 = vmatpush1.bf16.msra.mxu0 %v1045
        %1468 = vmatprep.subr.bf16.mxu0 %v1050
        %1469 = vmatpush1.bf16.msra.mxu0 %v1049
        %1470 = vmatprep.subr.bf16.mxu0 %v1054
        %1471 = vmatpush1.bf16.msra.mxu0 %v1053
        %1472 = vmatprep.subr.bf16.mxu0 %v1058
        %1473 = vmatpush1.bf16.msra.mxu0 %v1057
        %1474 = vmatprep.subr.bf16.mxu0 %v1062
        %1475 = vmatpush1.bf16.msra.mxu0 %v1061
        %1476 = vmatprep.subr.bf16.mxu0 0
        %1477 = vmatpush1.bf16.msra.mxu0 0
        %1478 = vmatprep.subr.bf16.mxu0 0
        %1479 = vmatpush1.bf16.msra.mxu0 0
        %1480 = vmatprep.subr.bf16.mxu0 0
        %1481 = vmatpush1.bf16.msra.mxu0 0
        %1482 = vmatprep.subr.bf16.mxu0 0
        %1483 = vmatpush1.bf16.msra.mxu0 0
        %1484 = vmatprep.subr.bf16.mxu0 0
        %1485 = vmatpush1.bf16.msra.mxu0 0
        %1486 = vmatprep.subr.bf16.mxu0 0
        %1487 = vmatpush1.bf16.msra.mxu0 0
        %1488 = vmatprep.subr.bf16.mxu0 0
        %1489 = vmatpush1.bf16.msra.mxu0 0
        %1490 = vmatprep.subr.bf16.mxu0 0
        %1491 = vmatpush1.bf16.msra.mxu0 0
        %1492 = vmatprep.mubr.bf16.mxu0 0
        %1493 = vmatmul.mubr.bf16.gmra.mrb[0].mxu0 %v1452
        %v1494 = vpop.f32.mrb[0].mxu0
        %v1495 = vadd.f32 0.0, %v1494
        %v1496 = vpop.f32.mrb[0].mxu0
        %v1497 = vadd.f32 0.0, %v1496
        %v1498 = vpop.f32.mrb[0].mxu0
        %v1499 = vpop.f32.mrb[0].mxu0
        %1500 = vdwg.mxu0
        %1501 = vmatprep.subr.bf16.mxu0 %v1036
        %1502 = vmatpush1.bf16.msra.mxu0 %v1035
        %1503 = vmatprep.subr.bf16.mxu0 %v1040
        %1504 = vmatpush1.bf16.msra.mxu0 %v1039
        %1505 = vmatprep.subr.bf16.mxu0 %v1044
        %1506 = vmatpush1.bf16.msra.mxu0 %v1043
        %1507 = vmatprep.subr.bf16.mxu0 %v1048
        %1508 = vmatpush1.bf16.msra.mxu0 %v1047
        %1509 = vmatprep.subr.bf16.mxu0 %v1052
        %1510 = vmatpush1.bf16.msra.mxu0 %v1051
        %1511 = vmatprep.subr.bf16.mxu0 %v1056
        %1512 = vmatpush1.bf16.msra.mxu0 %v1055
        %1513 = vmatprep.subr.bf16.mxu0 %v1060
        %1514 = vmatpush1.bf16.msra.mxu0 %v1059
        %1515 = vmatprep.subr.bf16.mxu0 %v1064
        %1516 = vmatpush1.bf16.msra.mxu0 %v1063
        %1517 = vmatprep.subr.bf16.mxu0 0
        %1518 = vmatpush1.bf16.msra.mxu0 0
        %1519 = vmatprep.subr.bf16.mxu0 0
        %1520 = vmatpush1.bf16.msra.mxu0 0
        %1521 = vmatprep.subr.bf16.mxu0 0
        %1522 = vmatpush1.bf16.msra.mxu0 0
        %1523 = vmatprep.subr.bf16.mxu0 0
        %1524 = vmatpush1.bf16.msra.mxu0 0
        %1525 = vmatprep.subr.bf16.mxu0 0
        %1526 = vmatpush1.bf16.msra.mxu0 0
        %1527 = vmatprep.subr.bf16.mxu0 0
        %1528 = vmatpush1.bf16.msra.mxu0 0
        %1529 = vmatprep.subr.bf16.mxu0 0
        %1530 = vmatpush1.bf16.msra.mxu0 0
        %1531 = vmatprep.subr.bf16.mxu0 0
        %1532 = vmatpush1.bf16.msra.mxu0 0
        %1533 = vmatprep.mubr.bf16.mxu0 0
        %1534 = vmatmul.mubr.bf16.gmra.mrb[0].mxu0 %v1452
        %v1535 = vpop.f32.mrb[0].mxu0
        %v1536 = vadd.f32 0.0, %v1535
        %v1537 = vpop.f32.mrb[0].mxu0
        %v1538 = vadd.f32 0.0, %v1537
        %v1539 = vpop.f32.mrb[0].mxu0
        %v1540 = vpop.f32.mrb[0].mxu0
        %1541 = vdwg.mxu0
        %v1542 = vunpack.c.l.bf16 %v1458
        %v1543 = vunpack.c.h.bf16 %v1458
        %v1544 = vunpack.c.l.bf16 %v1459
        %v1545 = vunpack.c.h.bf16 %v1459
        %v1546 = vadd.f32 %v1542, %v1495
        %v1547 = vadd.f32 %v1543, %v1497
        %v1548 = vadd.f32 %v1544, %v1536
        %v1549 = vadd.f32 %v1545, %v1538
        %v1550 = vxor.u32 %v1546, 2147483648
        %v1551 = vmul.f32 %v1550, 1.442695
        %v1552 = vpow.pop %v1551
        %v1553 = vadd.f32 %v1552, 1.0
        %v1554 = vrcp.pop %v1553
        %v1555 = vmul.f32 1.0, %v1554
        %v1556 = vxor.u32 %v1547, 2147483648
        %v1557 = vmul.f32 %v1556, 1.442695
        %v1558 = vpow.pop %v1557
        %v1559 = vadd.f32 %v1558, 1.0
        %v1560 = vrcp.pop %v1559
        %v1561 = vmul.f32 1.0, %v1560
        %v1562 = vtanh.pop %v1548
        %v1563 = vxor.u32 %v1549, 2147483648
        %v1564 = vmul.f32 %v1563, 1.442695
        %v1565 = vpow.pop %v1564
        %v1566 = vadd.f32 %v1565, 1.0
        %v1567 = vrcp.pop %v1566
        %v1568 = vmul.f32 1.0, %v1567
        %v1569 = vmul.f32 %v1561, %v1449
        %v1570 = vmul.f32 %v1555, %v1562
        %v1571 = vadd.f32 %v1569, %v1570
        %v1572 = vtanh.pop %v1571
        %v1573 = vmul.f32 %v1568, %v1572
        %v1574 = vpack.c.bf16 %v1573, %v1573
        %s1575 = sadd.s32 0, 3
        %s1576 = smul.addr %s1575, 4
        %s1577 = scalar_lea.vmem [#allocation2], %s1576
        %1578 = vst [vmem:[%s1577] sm:$0xf] %v1574
        %s1579 = scalar_lea.vmem [#allocation3], 64
        %v1580 = vld [vmem:[%s1579] sm:$0xff]
        %v1581 = vld [vmem:[%s1579 + $0x8] sm:$0xff]
        %1582 = vmatprep.subr.bf16.mxu0 %v1034
        %1583 = vmatpush1.bf16.msra.mxu0 %v1033
        %1584 = vmatprep.subr.bf16.mxu0 %v1038
        %1585 = vmatpush1.bf16.msra.mxu0 %v1037
        %1586 = vmatprep.subr.bf16.mxu0 %v1042
        %1587 = vmatpush1.bf16.msra.mxu0 %v1041
        %1588 = vmatprep.subr.bf16.mxu0 %v1046
        %1589 = vmatpush1.bf16.msra.mxu0 %v1045
        %1590 = vmatprep.subr.bf16.mxu0 %v1050
        %1591 = vmatpush1.bf16.msra.mxu0 %v1049
        %1592 = vmatprep.subr.bf16.mxu0 %v1054
        %1593 = vmatpush1.bf16.msra.mxu0 %v1053
        %1594 = vmatprep.subr.bf16.mxu0 %v1058
        %1595 = vmatpush1.bf16.msra.mxu0 %v1057
        %1596 = vmatprep.subr.bf16.mxu0 %v1062
        %1597 = vmatpush1.bf16.msra.mxu0 %v1061
        %1598 = vmatprep.subr.bf16.mxu0 0
        %1599 = vmatpush1.bf16.msra.mxu0 0
        %1600 = vmatprep.subr.bf16.mxu0 0
        %1601 = vmatpush1.bf16.msra.mxu0 0
        %1602 = vmatprep.subr.bf16.mxu0 0
        %1603 = vmatpush1.bf16.msra.mxu0 0
        %1604 = vmatprep.subr.bf16.mxu0 0
        %1605 = vmatpush1.bf16.msra.mxu0 0
        %1606 = vmatprep.subr.bf16.mxu0 0
        %1607 = vmatpush1.bf16.msra.mxu0 0
        %1608 = vmatprep.subr.bf16.mxu0 0
        %1609 = vmatpush1.bf16.msra.mxu0 0
        %1610 = vmatprep.subr.bf16.mxu0 0
        %1611 = vmatpush1.bf16.msra.mxu0 0
        %1612 = vmatprep.subr.bf16.mxu0 0
        %1613 = vmatpush1.bf16.msra.mxu0 0
        %1614 = vmatprep.mubr.bf16.mxu0 0
        %1615 = vmatmul.mubr.bf16.gmra.mrb[0].mxu0 %v1574
        %v1616 = vpop.f32.mrb[0].mxu0
        %v1617 = vadd.f32 0.0, %v1616
        %v1618 = vpop.f32.mrb[0].mxu0
        %v1619 = vadd.f32 0.0, %v1618
        %v1620 = vpop.f32.mrb[0].mxu0
        %v1621 = vpop.f32.mrb[0].mxu0
        %1622 = vdwg.mxu0
        %1623 = vmatprep.subr.bf16.mxu0 %v1036
        %1624 = vmatpush1.bf16.msra.mxu0 %v1035
        %1625 = vmatprep.subr.bf16.mxu0 %v1040
        %1626 = vmatpush1.bf16.msra.mxu0 %v1039
        %1627 = vmatprep.subr.bf16.mxu0 %v1044
        %1628 = vmatpush1.bf16.msra.mxu0 %v1043
        %1629 = vmatprep.subr.bf16.mxu0 %v1048
        %1630 = vmatpush1.bf16.msra.mxu0 %v1047
        %1631 = vmatprep.subr.bf16.mxu0 %v1052
        %1632 = vmatpush1.bf16.msra.mxu0 %v1051
        %1633 = vmatprep.subr.bf16.mxu0 %v1056
        %1634 = vmatpush1.bf16.msra.mxu0 %v1055
        %1635 = vmatprep.subr.bf16.mxu0 %v1060
        %1636 = vmatpush1.bf16.msra.mxu0 %v1059
        %1637 = vmatprep.subr.bf16.mxu0 %v1064
        %1638 = vmatpush1.bf16.msra.mxu0 %v1063
        %1639 = vmatprep.subr.bf16.mxu0 0
        %1640 = vmatpush1.bf16.msra.mxu0 0
        %1641 = vmatprep.subr.bf16.mxu0 0
        %1642 = vmatpush1.bf16.msra.mxu0 0
        %1643 = vmatprep.subr.bf16.mxu0 0
        %1644 = vmatpush1.bf16.msra.mxu0 0
        %1645 = vmatprep.subr.bf16.mxu0 0
        %1646 = vmatpush1.bf16.msra.mxu0 0
        %1647 = vmatprep.subr.bf16.mxu0 0
        %1648 = vmatpush1.bf16.msra.mxu0 0
        %1649 = vmatprep.subr.bf16.mxu0 0
        %1650 = vmatpush1.bf16.msra.mxu0 0
        %1651 = vmatprep.subr.bf16.mxu0 0
        %1652 = vmatpush1.bf16.msra.mxu0 0
        %1653 = vmatprep.subr.bf16.mxu0 0
        %1654 = vmatpush1.bf16.msra.mxu0 0
        %1655 = vmatprep.mubr.bf16.mxu0 0
        %1656 = vmatmul.mubr.bf16.gmra.mrb[0].mxu0 %v1574
        %v1657 = vpop.f32.mrb[0].mxu0
        %v1658 = vadd.f32 0.0, %v1657
        %v1659 = vpop.f32.mrb[0].mxu0
        %v1660 = vadd.f32 0.0, %v1659
        %v1661 = vpop.f32.mrb[0].mxu0
        %v1662 = vpop.f32.mrb[0].mxu0
        %1663 = vdwg.mxu0
        %v1664 = vunpack.c.l.bf16 %v1580
        %v1665 = vunpack.c.h.bf16 %v1580
        %v1666 = vunpack.c.l.bf16 %v1581
        %v1667 = vunpack.c.h.bf16 %v1581
        %v1668 = vadd.f32 %v1664, %v1617
        %v1669 = vadd.f32 %v1665, %v1619
        %v1670 = vadd.f32 %v1666, %v1658
        %v1671 = vadd.f32 %v1667, %v1660
        %v1672 = vxor.u32 %v1668, 2147483648
        %v1673 = vmul.f32 %v1672, 1.442695
        %v1674 = vpow.pop %v1673
        %v1675 = vadd.f32 %v1674, 1.0
        %v1676 = vrcp.pop %v1675
        %v1677 = vmul.f32 1.0, %v1676
        %v1678 = vxor.u32 %v1669, 2147483648
        %v1679 = vmul.f32 %v1678, 1.442695
        %v1680 = vpow.pop %v1679
        %v1681 = vadd.f32 %v1680, 1.0
        %v1682 = vrcp.pop %v1681
        %v1683 = vmul.f32 1.0, %v1682
        %v1684 = vtanh.pop %v1670
        %v1685 = vxor.u32 %v1671, 2147483648
        %v1686 = vmul.f32 %v1685, 1.442695
        %v1687 = vpow.pop %v1686
        %v1688 = vadd.f32 %v1687, 1.0
        %v1689 = vrcp.pop %v1688
        %v1690 = vmul.f32 1.0, %v1689
        %v1691 = vmul.f32 %v1683, %v1571
        %v1692 = vmul.f32 %v1677, %v1684
        %v1693 = vadd.f32 %v1691, %v1692
        %v1694 = vtanh.pop %v1693
        %v1695 = vmul.f32 %v1690, %v1694
        %v1696 = vpack.c.bf16 %v1695, %v1695
        %s1697 = sadd.s32 0, 4
        %s1698 = smul.addr %s1697, 4
        %s1699 = scalar_lea.vmem [#allocation2], %s1698
        %1700 = vst [vmem:[%s1699] sm:$0xf] %v1696
        %s1701 = scalar_lea.vmem [#allocation3], 80
        %v1702 = vld [vmem:[%s1701] sm:$0xff]
        %v1703 = vld [vmem:[%s1701 + $0x8] sm:$0xff]
        %1704 = vmatprep.subr.bf16.mxu0 %v1034
        %1705 = vmatpush1.bf16.msra.mxu0 %v1033
        %1706 = vmatprep.subr.bf16.mxu0 %v1038
        %1707 = vmatpush1.bf16.msra.mxu0 %v1037
        %1708 = vmatprep.subr.bf16.mxu0 %v1042
        %1709 = vmatpush1.bf16.msra.mxu0 %v1041
        %1710 = vmatprep.subr.bf16.mxu0 %v1046
        %1711 = vmatpush1.bf16.msra.mxu0 %v1045
        %1712 = vmatprep.subr.bf16.mxu0 %v1050
        %1713 = vmatpush1.bf16.msra.mxu0 %v1049
        %1714 = vmatprep.subr.bf16.mxu0 %v1054
        %1715 = vmatpush1.bf16.msra.mxu0 %v1053
        %1716 = vmatprep.subr.bf16.mxu0 %v1058
        %1717 = vmatpush1.bf16.msra.mxu0 %v1057
        %1718 = vmatprep.subr.bf16.mxu0 %v1062
        %1719 = vmatpush1.bf16.msra.mxu0 %v1061
        %1720 = vmatprep.subr.bf16.mxu0 0
        %1721 = vmatpush1.bf16.msra.mxu0 0
        %1722 = vmatprep.subr.bf16.mxu0 0
        %1723 = vmatpush1.bf16.msra.mxu0 0
        %1724 = vmatprep.subr.bf16.mxu0 0
        %1725 = vmatpush1.bf16.msra.mxu0 0
        %1726 = vmatprep.subr.bf16.mxu0 0
        %1727 = vmatpush1.bf16.msra.mxu0 0
        %1728 = vmatprep.subr.bf16.mxu0 0
        %1729 = vmatpush1.bf16.msra.mxu0 0
        %1730 = vmatprep.subr.bf16.mxu0 0
        %1731 = vmatpush1.bf16.msra.mxu0 0
        %1732 = vmatprep.subr.bf16.mxu0 0
        %1733 = vmatpush1.bf16.msra.mxu0 0
        %1734 = vmatprep.subr.bf16.mxu0 0
        %1735 = vmatpush1.bf16.msra.mxu0 0
        %1736 = vmatprep.mubr.bf16.mxu0 0
        %1737 = vmatmul.mubr.bf16.gmra.mrb[0].mxu0 %v1696
        %v1738 = vpop.f32.mrb[0].mxu0
        %v1739 = vadd.f32 0.0, %v1738
        %v1740 = vpop.f32.mrb[0].mxu0
        %v1741 = vadd.f32 0.0, %v1740
        %v1742 = vpop.f32.mrb[0].mxu0
        %v1743 = vpop.f32.mrb[0].mxu0
        %1744 = vdwg.mxu0
        %1745 = vmatprep.subr.bf16.mxu0 %v1036
        %1746 = vmatpush1.bf16.msra.mxu0 %v1035
        %1747 = vmatprep.subr.bf16.mxu0 %v1040
        %1748 = vmatpush1.bf16.msra.mxu0 %v1039
        %1749 = vmatprep.subr.bf16.mxu0 %v1044
        %1750 = vmatpush1.bf16.msra.mxu0 %v1043
        %1751 = vmatprep.subr.bf16.mxu0 %v1048
        %1752 = vmatpush1.bf16.msra.mxu0 %v1047
        %1753 = vmatprep.subr.bf16.mxu0 %v1052
        %1754 = vmatpush1.bf16.msra.mxu0 %v1051
        %1755 = vmatprep.subr.bf16.mxu0 %v1056
        %1756 = vmatpush1.bf16.msra.mxu0 %v1055
        %1757 = vmatprep.subr.bf16.mxu0 %v1060
        %1758 = vmatpush1.bf16.msra.mxu0 %v1059
        %1759 = vmatprep.subr.bf16.mxu0 %v1064
        %1760 = vmatpush1.bf16.msra.mxu0 %v1063
        %1761 = vmatprep.subr.bf16.mxu0 0
        %1762 = vmatpush1.bf16.msra.mxu0 0
        %1763 = vmatprep.subr.bf16.mxu0 0
        %1764 = vmatpush1.bf16.msra.mxu0 0
        %1765 = vmatprep.subr.bf16.mxu0 0
        %1766 = vmatpush1.bf16.msra.mxu0 0
        %1767 = vmatprep.subr.bf16.mxu0 0
        %1768 = vmatpush1.bf16.msra.mxu0 0
        %1769 = vmatprep.subr.bf16.mxu0 0
        %1770 = vmatpush1.bf16.msra.mxu0 0
        %1771 = vmatprep.subr.bf16.mxu0 0
        %1772 = vmatpush1.bf16.msra.mxu0 0
        %1773 = vmatprep.subr.bf16.mxu0 0
        %1774 = vmatpush1.bf16.msra.mxu0 0
        %1775 = vmatprep.subr.bf16.mxu0 0
        %1776 = vmatpush1.bf16.msra.mxu0 0
        %1777 = vmatprep.mubr.bf16.mxu0 0
        %1778 = vmatmul.mubr.bf16.gmra.mrb[0].mxu0 %v1696
        %v1779 = vpop.f32.mrb[0].mxu0
        %v1780 = vadd.f32 0.0, %v1779
        %v1781 = vpop.f32.mrb[0].mxu0
        %v1782 = vadd.f32 0.0, %v1781
        %v1783 = vpop.f32.mrb[0].mxu0
        %v1784 = vpop.f32.mrb[0].mxu0
        %1785 = vdwg.mxu0
        %v1786 = vunpack.c.l.bf16 %v1702
        %v1787 = vunpack.c.h.bf16 %v1702
        %v1788 = vunpack.c.l.bf16 %v1703
        %v1789 = vunpack.c.h.bf16 %v1703
        %v1790 = vadd.f32 %v1786, %v1739
        %v1791 = vadd.f32 %v1787, %v1741
        %v1792 = vadd.f32 %v1788, %v1780
        %v1793 = vadd.f32 %v1789, %v1782
        %v1794 = vxor.u32 %v1790, 2147483648
        %v1795 = vmul.f32 %v1794, 1.442695
        %v1796 = vpow.pop %v1795
        %v1797 = vadd.f32 %v1796, 1.0
        %v1798 = vrcp.pop %v1797
        %v1799 = vmul.f32 1.0, %v1798
        %v1800 = vxor.u32 %v1791, 2147483648
        %v1801 = vmul.f32 %v1800, 1.442695
        %v1802 = vpow.pop %v1801
        %v1803 = vadd.f32 %v1802, 1.0
        %v1804 = vrcp.pop %v1803
        %v1805 = vmul.f32 1.0, %v1804
        %v1806 = vtanh.pop %v1792
        %v1807 = vxor.u32 %v1793, 2147483648
        %v1808 = vmul.f32 %v1807, 1.442695
        %v1809 = vpow.pop %v1808
        %v1810 = vadd.f32 %v1809, 1.0
        %v1811 = vrcp.pop %v1810
        %v1812 = vmul.f32 1.0, %v1811
        %v1813 = vmul.f32 %v1805, %v1693
        %v1814 = vmul.f32 %v1799, %v1806
        %v1815 = vadd.f32 %v1813, %v1814
        %v1816 = vtanh.pop %v1815
        %v1817 = vmul.f32 %v1812, %v1816
        %v1818 = vpack.c.bf16 %v1817, %v1817
        %s1819 = sadd.s32 0, 5
        %s1820 = smul.addr %s1819, 4
        %s1821 = scalar_lea.vmem [#allocation2], %s1820
        %1822 = vst [vmem:[%s1821] sm:$0xf] %v1818
        %s1823 = scalar_lea.vmem [#allocation3], 96
        %v1824 = vld [vmem:[%s1823] sm:$0xff]
        %v1825 = vld [vmem:[%s1823 + $0x8] sm:$0xff]
        %1826 = vmatprep.subr.bf16.mxu0 %v1034
        %1827 = vmatpush1.bf16.msra.mxu0 %v1033
        %1828 = vmatprep.subr.bf16.mxu0 %v1038
        %1829 = vmatpush1.bf16.msra.mxu0 %v1037
        %1830 = vmatprep.subr.bf16.mxu0 %v1042
        %1831 = vmatpush1.bf16.msra.mxu0 %v1041
        %1832 = vmatprep.subr.bf16.mxu0 %v1046
        %1833 = vmatpush1.bf16.msra.mxu0 %v1045
        %1834 = vmatprep.subr.bf16.mxu0 %v1050
        %1835 = vmatpush1.bf16.msra.mxu0 %v1049
        %1836 = vmatprep.subr.bf16.mxu0 %v1054
        %1837 = vmatpush1.bf16.msra.mxu0 %v1053
        %1838 = vmatprep.subr.bf16.mxu0 %v1058
        %1839 = vmatpush1.bf16.msra.mxu0 %v1057
        %1840 = vmatprep.subr.bf16.mxu0 %v1062
        %1841 = vmatpush1.bf16.msra.mxu0 %v1061
        %1842 = vmatprep.subr.bf16.mxu0 0
        %1843 = vmatpush1.bf16.msra.mxu0 0
        %1844 = vmatprep.subr.bf16.mxu0 0
        %1845 = vmatpush1.bf16.msra.mxu0 0
        %1846 = vmatprep.subr.bf16.mxu0 0
        %1847 = vmatpush1.bf16.msra.mxu0 0
        %1848 = vmatprep.subr.bf16.mxu0 0
        %1849 = vmatpush1.bf16.msra.mxu0 0
        %1850 = vmatprep.subr.bf16.mxu0 0
        %1851 = vmatpush1.bf16.msra.mxu0 0
        %1852 = vmatprep.subr.bf16.mxu0 0
        %1853 = vmatpush1.bf16.msra.mxu0 0
        %1854 = vmatprep.subr.bf16.mxu0 0
        %1855 = vmatpush1.bf16.msra.mxu0 0
        %1856 = vmatprep.subr.bf16.mxu0 0
        %1857 = vmatpush1.bf16.msra.mxu0 0
        %1858 = vmatprep.mubr.bf16.mxu0 0
        %1859 = vmatmul.mubr.bf16.gmra.mrb[0].mxu0 %v1818
        %v1860 = vpop.f32.mrb[0].mxu0
        %v1861 = vadd.f32 0.0, %v1860
        %v1862 = vpop.f32.mrb[0].mxu0
        %v1863 = vadd.f32 0.0, %v1862
        %v1864 = vpop.f32.mrb[0].mxu0
        %v1865 = vpop.f32.mrb[0].mxu0
        %1866 = vdwg.mxu0
        %1867 = vmatprep.subr.bf16.mxu0 %v1036
        %1868 = vmatpush1.bf16.msra.mxu0 %v1035
        %1869 = vmatprep.subr.bf16.mxu0 %v1040
        %1870 = vmatpush1.bf16.msra.mxu0 %v1039
        %1871 = vmatprep.subr.bf16.mxu0 %v1044
        %1872 = vmatpush1.bf16.msra.mxu0 %v1043
        %1873 = vmatprep.subr.bf16.mxu0 %v1048
        %1874 = vmatpush1.bf16.msra.mxu0 %v1047
        %1875 = vmatprep.subr.bf16.mxu0 %v1052
        %1876 = vmatpush1.bf16.msra.mxu0 %v1051
        %1877 = vmatprep.subr.bf16.mxu0 %v1056
        %1878 = vmatpush1.bf16.msra.mxu0 %v1055
        %1879 = vmatprep.subr.bf16.mxu0 %v1060
        %1880 = vmatpush1.bf16.msra.mxu0 %v1059
        %1881 = vmatprep.subr.bf16.mxu0 %v1064
        %1882 = vmatpush1.bf16.msra.mxu0 %v1063
        %1883 = vmatprep.subr.bf16.mxu0 0
        %1884 = vmatpush1.bf16.msra.mxu0 0
        %1885 = vmatprep.subr.bf16.mxu0 0
        %1886 = vmatpush1.bf16.msra.mxu0 0
        %1887 = vmatprep.subr.bf16.mxu0 0
        %1888 = vmatpush1.bf16.msra.mxu0 0
        %1889 = vmatprep.subr.bf16.mxu0 0
        %1890 = vmatpush1.bf16.msra.mxu0 0
        %1891 = vmatprep.subr.bf16.mxu0 0
        %1892 = vmatpush1.bf16.msra.mxu0 0
        %1893 = vmatprep.subr.bf16.mxu0 0
        %1894 = vmatpush1.bf16.msra.mxu0 0
        %1895 = vmatprep.subr.bf16.mxu0 0
        %1896 = vmatpush1.bf16.msra.mxu0 0
        %1897 = vmatprep.subr.bf16.mxu0 0
        %1898 = vmatpush1.bf16.msra.mxu0 0
        %1899 = vmatprep.mubr.bf16.mxu0 0
        %1900 = vmatmul.mubr.bf16.gmra.mrb[0].mxu0 %v1818
        %v1901 = vpop.f32.mrb[0].mxu0
        %v1902 = vadd.f32 0.0, %v1901
        %v1903 = vpop.f32.mrb[0].mxu0
        %v1904 = vadd.f32 0.0, %v1903
        %v1905 = vpop.f32.mrb[0].mxu0
        %v1906 = vpop.f32.mrb[0].mxu0
        %1907 = vdwg.mxu0
        %v1908 = vunpack.c.l.bf16 %v1824
        %v1909 = vunpack.c.h.bf16 %v1824
        %v1910 = vunpack.c.l.bf16 %v1825
        %v1911 = vunpack.c.h.bf16 %v1825
        %v1912 = vadd.f32 %v1908, %v1861
        %v1913 = vadd.f32 %v1909, %v1863
        %v1914 = vadd.f32 %v1910, %v1902
        %v1915 = vadd.f32 %v1911, %v1904
        %v1916 = vxor.u32 %v1912, 2147483648
        %v1917 = vmul.f32 %v1916, 1.442695
        %v1918 = vpow.pop %v1917
        %v1919 = vadd.f32 %v1918, 1.0
        %v1920 = vrcp.pop %v1919
        %v1921 = vmul.f32 1.0, %v1920
        %v1922 = vxor.u32 %v1913, 2147483648
        %v1923 = vmul.f32 %v1922, 1.442695
        %v1924 = vpow.pop %v1923
        %v1925 = vadd.f32 %v1924, 1.0
        %v1926 = vrcp.pop %v1925
        %v1927 = vmul.f32 1.0, %v1926
        %v1928 = vtanh.pop %v1914
        %v1929 = vxor.u32 %v1915, 2147483648
        %v1930 = vmul.f32 %v1929, 1.442695
        %v1931 = vpow.pop %v1930
        %v1932 = vadd.f32 %v1931, 1.0
        %v1933 = vrcp.pop %v1932
        %v1934 = vmul.f32 1.0, %v1933
        %v1935 = vmul.f32 %v1927, %v1815
        %v1936 = vmul.f32 %v1921, %v1928
        %v1937 = vadd.f32 %v1935, %v1936
        %v1938 = vtanh.pop %v1937
        %v1939 = vmul.f32 %v1934, %v1938
        %v1940 = vpack.c.bf16 %v1939, %v1939
        %s1941 = sadd.s32 0, 6
        %s1942 = smul.addr %s1941, 4
        %s1943 = scalar_lea.vmem [#allocation2], %s1942
        %1944 = vst [vmem:[%s1943] sm:$0xf] %v1940
        %s1945 = scalar_lea.vmem [#allocation3], 112
        %v1946 = vld [vmem:[%s1945] sm:$0xff]
        %v1947 = vld [vmem:[%s1945 + $0x8] sm:$0xff]
        %1948 = vmatprep.subr.bf16.mxu0 %v1034
        %1949 = vmatpush1.bf16.msra.mxu0 %v1033
        %1950 = vmatprep.subr.bf16.mxu0 %v1038
        %1951 = vmatpush1.bf16.msra.mxu0 %v1037
        %1952 = vmatprep.subr.bf16.mxu0 %v1042
        %1953 = vmatpush1.bf16.msra.mxu0 %v1041
        %1954 = vmatprep.subr.bf16.mxu0 %v1046
        %1955 = vmatpush1.bf16.msra.mxu0 %v1045
        %1956 = vmatprep.subr.bf16.mxu0 %v1050
        %1957 = vmatpush1.bf16.msra.mxu0 %v1049
        %1958 = vmatprep.subr.bf16.mxu0 %v1054
        %1959 = vmatpush1.bf16.msra.mxu0 %v1053
        %1960 = vmatprep.subr.bf16.mxu0 %v1058
        %1961 = vmatpush1.bf16.msra.mxu0 %v1057
        %1962 = vmatprep.subr.bf16.mxu0 %v1062
        %1963 = vmatpush1.bf16.msra.mxu0 %v1061
        %1964 = vmatprep.subr.bf16.mxu0 0
        %1965 = vmatpush1.bf16.msra.mxu0 0
        %1966 = vmatprep.subr.bf16.mxu0 0
        %1967 = vmatpush1.bf16.msra.mxu0 0
        %1968 = vmatprep.subr.bf16.mxu0 0
        %1969 = vmatpush1.bf16.msra.mxu0 0
        %1970 = vmatprep.subr.bf16.mxu0 0
        %1971 = vmatpush1.bf16.msra.mxu0 0
        %1972 = vmatprep.subr.bf16.mxu0 0
        %1973 = vmatpush1.bf16.msra.mxu0 0
        %1974 = vmatprep.subr.bf16.mxu0 0
        %1975 = vmatpush1.bf16.msra.mxu0 0
        %1976 = vmatprep.subr.bf16.mxu0 0
        %1977 = vmatpush1.bf16.msra.mxu0 0
        %1978 = vmatprep.subr.bf16.mxu0 0
        %1979 = vmatpush1.bf16.msra.mxu0 0
        %1980 = vmatprep.mubr.bf16.mxu0 0
        %1981 = vmatmul.mubr.bf16.gmra.mrb[0].mxu0 %v1940
        %v1982 = vpop.f32.mrb[0].mxu0
        %v1983 = vadd.f32 0.0, %v1982
        %v1984 = vpop.f32.mrb[0].mxu0
        %v1985 = vadd.f32 0.0, %v1984
        %v1986 = vpop.f32.mrb[0].mxu0
        %v1987 = vpop.f32.mrb[0].mxu0
        %1988 = vdwg.mxu0
        %1989 = vmatprep.subr.bf16.mxu0 %v1036
        %1990 = vmatpush1.bf16.msra.mxu0 %v1035
        %1991 = vmatprep.subr.bf16.mxu0 %v1040
        %1992 = vmatpush1.bf16.msra.mxu0 %v1039
        %1993 = vmatprep.subr.bf16.mxu0 %v1044
        %1994 = vmatpush1.bf16.msra.mxu0 %v1043
        %1995 = vmatprep.subr.bf16.mxu0 %v1048
        %1996 = vmatpush1.bf16.msra.mxu0 %v1047
        %1997 = vmatprep.subr.bf16.mxu0 %v1052
        %1998 = vmatpush1.bf16.msra.mxu0 %v1051
        %1999 = vmatprep.subr.bf16.mxu0 %v1056
        %2000 = vmatpush1.bf16.msra.mxu0 %v1055
        %2001 = vmatprep.subr.bf16.mxu0 %v1060
        %2002 = vmatpush1.bf16.msra.mxu0 %v1059
        %2003 = vmatprep.subr.bf16.mxu0 %v1064
        %2004 = vmatpush1.bf16.msra.mxu0 %v1063
        %2005 = vmatprep.subr.bf16.mxu0 0
        %2006 = vmatpush1.bf16.msra.mxu0 0
        %2007 = vmatprep.subr.bf16.mxu0 0
        %2008 = vmatpush1.bf16.msra.mxu0 0
        %2009 = vmatprep.subr.bf16.mxu0 0
        %2010 = vmatpush1.bf16.msra.mxu0 0
        %2011 = vmatprep.subr.bf16.mxu0 0
        %2012 = vmatpush1.bf16.msra.mxu0 0
        %2013 = vmatprep.subr.bf16.mxu0 0
        %2014 = vmatpush1.bf16.msra.mxu0 0
        %2015 = vmatprep.subr.bf16.mxu0 0
        %2016 = vmatpush1.bf16.msra.mxu0 0
        %2017 = vmatprep.subr.bf16.mxu0 0
        %2018 = vmatpush1.bf16.msra.mxu0 0
        %2019 = vmatprep.subr.bf16.mxu0 0
        %2020 = vmatpush1.bf16.msra.mxu0 0
        %2021 = vmatprep.mubr.bf16.mxu0 0
        %2022 = vmatmul.mubr.bf16.gmra.mrb[0].mxu0 %v1940
        %v2023 = vpop.f32.mrb[0].mxu0
        %v2024 = vadd.f32 0.0, %v2023
        %v2025 = vpop.f32.mrb[0].mxu0
        %v2026 = vadd.f32 0.0, %v2025
        %v2027 = vpop.f32.mrb[0].mxu0
        %v2028 = vpop.f32.mrb[0].mxu0
        %2029 = vdwg.mxu0
        %v2030 = vunpack.c.l.bf16 %v1946
        %v2031 = vunpack.c.h.bf16 %v1946
        %v2032 = vunpack.c.l.bf16 %v1947
        %v2033 = vunpack.c.h.bf16 %v1947
        %v2034 = vadd.f32 %v2030, %v1983
        %v2035 = vadd.f32 %v2031, %v1985
        %v2036 = vadd.f32 %v2032, %v2024
        %v2037 = vadd.f32 %v2033, %v2026
        %v2038 = vxor.u32 %v2034, 2147483648
        %v2039 = vmul.f32 %v2038, 1.442695
        %v2040 = vpow.pop %v2039
        %v2041 = vadd.f32 %v2040, 1.0
        %v2042 = vrcp.pop %v2041
        %v2043 = vmul.f32 1.0, %v2042
        %v2044 = vxor.u32 %v2035, 2147483648
        %v2045 = vmul.f32 %v2044, 1.442695
        %v2046 = vpow.pop %v2045
        %v2047 = vadd.f32 %v2046, 1.0
        %v2048 = vrcp.pop %v2047
        %v2049 = vmul.f32 1.0, %v2048
        %v2050 = vtanh.pop %v2036
        %v2051 = vxor.u32 %v2037, 2147483648
        %v2052 = vmul.f32 %v2051, 1.442695
        %v2053 = vpow.pop %v2052
        %v2054 = vadd.f32 %v2053, 1.0
        %v2055 = vrcp.pop %v2054
        %v2056 = vmul.f32 1.0, %v2055
        %v2057 = vmul.f32 %v2049, %v1937
        %v2058 = vmul.f32 %v2043, %v2050
        %v2059 = vadd.f32 %v2057, %v2058
        %v2060 = vtanh.pop %v2059
        %v2061 = vmul.f32 %v2056, %v2060
        %v2062 = vpack.c.bf16 %v2061, %v2061
        %s2063 = sadd.s32 0, 7
        %s2064 = smul.addr %s2063, 4
        %s2065 = scalar_lea.vmem [#allocation2], %s2064
        %2066 = vst [vmem:[%s2065] sm:$0xf] %v2062
        %v2067 = vld [vmem:[#allocation12] sm:$0xff]
        %v2068 = vld [vmem:[#allocation12 + $0x8] sm:$0xff]
        %v2069 = vld [vmem:[#allocation12 + $0x10] sm:$0xff]
        %v2070 = vld [vmem:[#allocation12 + $0x18] sm:$0xff]
        %v2071 = vld [vmem:[#allocation12 + $0x20] sm:$0xff]
        %v2072 = vld [vmem:[#allocation12 + $0x28] sm:$0xff]
        %v2073 = vld [vmem:[#allocation12 + $0x30] sm:$0xff]
        %v2074 = vld [vmem:[#allocation12 + $0x38] sm:$0xff]
        %v2075 = vld [vmem:[#allocation12 + $0x40] sm:$0xff]
        %v2076 = vld [vmem:[#allocation12 + $0x48] sm:$0xff]
        %v2077 = vld [vmem:[#allocation12 + $0x50] sm:$0xff]
        %v2078 = vld [vmem:[#allocation12 + $0x58] sm:$0xff]
        %v2079 = vld [vmem:[#allocation12 + $0x60] sm:$0xff]
        %v2080 = vld [vmem:[#allocation12 + $0x68] sm:$0xff]
        %v2081 = vld [vmem:[#allocation12 + $0x70] sm:$0xff]
        %v2082 = vld [vmem:[#allocation12 + $0x78] sm:$0xff]
        %v2083 = vld [vmem:[#allocation12 + $0x80] sm:$0xff]
        %v2084 = vld [vmem:[#allocation12 + $0x88] sm:$0xff]
        %v2085 = vld [vmem:[#allocation12 + $0x90] sm:$0xff]
        %v2086 = vld [vmem:[#allocation12 + $0x98] sm:$0xff]
        %v2087 = vld [vmem:[#allocation12 + $0xa0] sm:$0xff]
        %v2088 = vld [vmem:[#allocation12 + $0xa8] sm:$0xff]
        %v2089 = vld [vmem:[#allocation12 + $0xb0] sm:$0xff]
        %v2090 = vld [vmem:[#allocation12 + $0xb8] sm:$0xff]
        %v2091 = vld [vmem:[#allocation12 + $0xc0] sm:$0xff]
        %v2092 = vld [vmem:[#allocation12 + $0xc8] sm:$0xff]
        %v2093 = vld [vmem:[#allocation12 + $0xd0] sm:$0xff]
        %v2094 = vld [vmem:[#allocation12 + $0xd8] sm:$0xff]
        %v2095 = vld [vmem:[#allocation12 + $0xe0] sm:$0xff]
        %v2096 = vld [vmem:[#allocation12 + $0xe8] sm:$0xff]
        %v2097 = vld [vmem:[#allocation12 + $0xf0] sm:$0xff]
        %v2098 = vld [vmem:[#allocation12 + $0xf8] sm:$0xff]
        %v2099 = vld [vmem:[#allocation13] sm:$0xff]
        %v2100 = vld [vmem:[#allocation13 + $0x8] sm:$0xff]
        %v2101 = vld [vmem:[#allocation13 + $0x10] sm:$0xff]
        %v2102 = vld [vmem:[#allocation13 + $0x18] sm:$0xff]
        %v2103 = vld [vmem:[#allocation13 + $0x20] sm:$0xff]
        %v2104 = vld [vmem:[#allocation13 + $0x28] sm:$0xff]
        %v2105 = vld [vmem:[#allocation13 + $0x30] sm:$0xff]
        %v2106 = vld [vmem:[#allocation13 + $0x38] sm:$0xff]
        %v2107 = vld [vmem:[#allocation13 + $0x40] sm:$0xff]
        %v2108 = vld [vmem:[#allocation13 + $0x48] sm:$0xff]
        %v2109 = vld [vmem:[#allocation13 + $0x50] sm:$0xff]
        %v2110 = vld [vmem:[#allocation13 + $0x58] sm:$0xff]
        %v2111 = vld [vmem:[#allocation13 + $0x60] sm:$0xff]
        %v2112 = vld [vmem:[#allocation13 + $0x68] sm:$0xff]
        %v2113 = vld [vmem:[#allocation13 + $0x70] sm:$0xff]
        %v2114 = vld [vmem:[#allocation13 + $0x78] sm:$0xff]
        %v2115 = vld [vmem:[#allocation13 + $0x80] sm:$0xff]
        %v2116 = vld [vmem:[#allocation13 + $0x88] sm:$0xff]
        %v2117 = vld [vmem:[#allocation13 + $0x90] sm:$0xff]
        %v2118 = vld [vmem:[#allocation13 + $0x98] sm:$0xff]
        %v2119 = vld [vmem:[#allocation13 + $0xa0] sm:$0xff]
        %v2120 = vld [vmem:[#allocation13 + $0xa8] sm:$0xff]
        %v2121 = vld [vmem:[#allocation13 + $0xb0] sm:$0xff]
        %v2122 = vld [vmem:[#allocation13 + $0xb8] sm:$0xff]
        %v2123 = vld [vmem:[#allocation13 + $0xc0] sm:$0xff]
        %v2124 = vld [vmem:[#allocation13 + $0xc8] sm:$0xff]
        %v2125 = vld [vmem:[#allocation13 + $0xd0] sm:$0xff]
        %v2126 = vld [vmem:[#allocation13 + $0xd8] sm:$0xff]
        %v2127 = vld [vmem:[#allocation13 + $0xe0] sm:$0xff]
        %v2128 = vld [vmem:[#allocation13 + $0xe8] sm:$0xff]
        %v2129 = vld [vmem:[#allocation13 + $0xf0] sm:$0xff]
        %v2130 = vld [vmem:[#allocation13 + $0xf8] sm:$0xff]
        %v2131 = vld [vmem:[#allocation15] sm:$0xf]
        %v2132 = vld [vmem:[#allocation2] sm:$0xf]
        %v2133 = vld [vmem:[#allocation2 + $0x4] sm:$0xf]
        %v2134 = vld [vmem:[#allocation2 + $0x8] sm:$0xf]
        %v2135 = vld [vmem:[#allocation2 + $0xc] sm:$0xf]
        %v2136 = vld [vmem:[#allocation2 + $0x10] sm:$0xf]
        %v2137 = vld [vmem:[#allocation2 + $0x14] sm:$0xf]
        %v2138 = vld [vmem:[#allocation2 + $0x18] sm:$0xf]
        %v2139 = vld [vmem:[#allocation2 + $0x1c] sm:$0xf]
        %v2141 = vlaneseq
        %v2142 = vshrl.u32 %v2141, 7
        %v2143 = vsub.s32 0, %v2142
        %v2144 = vrot.slane %v2131, %v2143
        %v2145 = vlaneseq
        %v2146 = vshrl.u32 %v2145, 7
        %v2147 = vsub.s32 1, %v2146
        %v2148 = vrot.slane %v2131, %v2147
        %v2149 = vlaneseq
        %v2150 = vshrl.u32 %v2149, 7
        %v2151 = vsub.s32 2, %v2150
        %v2152 = vrot.slane %v2131, %v2151
        %v2153 = vlaneseq
        %v2154 = vshrl.u32 %v2153, 7
        %v2155 = vsub.s32 3, %v2154
        %v2156 = vrot.slane %v2131, %v2155
        %v2169 = vunpack.c.l.b16 %v2132
        %v2170 = vunpack.c.l.b16 %v2133
        %v2171 = vunpack.c.l.b16 %v2134
        %v2172 = vunpack.c.l.b16 %v2135
        %v2173 = vunpack.c.l.b16 %v2136
        %v2174 = vunpack.c.l.b16 %v2137
        %v2175 = vunpack.c.l.b16 %v2138
        %v2176 = vunpack.c.l.b16 %v2139
        %v2177 = vpack.c.b16 %v2170, %v2169
        %v2178 = vpack.c.b16 %v2172, %v2171
        %v2179 = vpack.c.b16 %v2174, %v2173
        %v2180 = vpack.c.b16 %v2176, %v2175
        %v2217 = vunpack.c.l.b16 %v2067
        %v2218 = vunpack.c.h.b16 %v2067
        %v2219 = vunpack.c.l.b16 %v2068
        %v2220 = vunpack.c.h.b16 %v2068
        %v2221 = vunpack.c.l.b16 %v2069
        %v2222 = vunpack.c.h.b16 %v2069
        %v2223 = vunpack.c.l.b16 %v2070
        %v2224 = vunpack.c.h.b16 %v2070
        %v2225 = vunpack.c.l.b16 %v2071
        %v2226 = vunpack.c.h.b16 %v2071
        %v2227 = vunpack.c.l.b16 %v2072
        %v2228 = vunpack.c.h.b16 %v2072
        %v2229 = vunpack.c.l.b16 %v2073
        %v2230 = vunpack.c.h.b16 %v2073
        %v2231 = vunpack.c.l.b16 %v2074
        %v2232 = vunpack.c.h.b16 %v2074
        %v2233 = vunpack.c.l.b16 %v2075
        %v2234 = vunpack.c.h.b16 %v2075
        %v2235 = vunpack.c.l.b16 %v2076
        %v2236 = vunpack.c.h.b16 %v2076
        %v2237 = vunpack.c.l.b16 %v2077
        %v2238 = vunpack.c.h.b16 %v2077
        %v2239 = vunpack.c.l.b16 %v2078
        %v2240 = vunpack.c.h.b16 %v2078
        %v2241 = vunpack.c.l.b16 %v2079
        %v2242 = vunpack.c.h.b16 %v2079
        %v2243 = vunpack.c.l.b16 %v2080
        %v2244 = vunpack.c.h.b16 %v2080
        %v2245 = vunpack.c.l.b16 %v2081
        %v2246 = vunpack.c.h.b16 %v2081
        %v2247 = vunpack.c.l.b16 %v2082
        %v2248 = vunpack.c.h.b16 %v2082
        %v2249 = vunpack.c.l.b16 %v2083
        %v2250 = vunpack.c.h.b16 %v2083
        %v2251 = vunpack.c.l.b16 %v2084
        %v2252 = vunpack.c.h.b16 %v2084
        %v2253 = vunpack.c.l.b16 %v2085
        %v2254 = vunpack.c.h.b16 %v2085
        %v2255 = vunpack.c.l.b16 %v2086
        %v2256 = vunpack.c.h.b16 %v2086
        %v2257 = vunpack.c.l.b16 %v2087
        %v2258 = vunpack.c.h.b16 %v2087
        %v2259 = vunpack.c.l.b16 %v2088
        %v2260 = vunpack.c.h.b16 %v2088
        %v2261 = vunpack.c.l.b16 %v2089
        %v2262 = vunpack.c.h.b16 %v2089
        %v2263 = vunpack.c.l.b16 %v2090
        %v2264 = vunpack.c.h.b16 %v2090
        %v2265 = vunpack.c.l.b16 %v2091
        %v2266 = vunpack.c.h.b16 %v2091
        %v2267 = vunpack.c.l.b16 %v2092
        %v2268 = vunpack.c.h.b16 %v2092
        %v2269 = vunpack.c.l.b16 %v2093
        %v2270 = vunpack.c.h.b16 %v2093
        %v2271 = vunpack.c.l.b16 %v2094
        %v2272 = vunpack.c.h.b16 %v2094
        %v2273 = vunpack.c.l.b16 %v2095
        %v2274 = vunpack.c.h.b16 %v2095
        %v2275 = vunpack.c.l.b16 %v2096
        %v2276 = vunpack.c.h.b16 %v2096
        %v2277 = vunpack.c.l.b16 %v2097
        %v2278 = vunpack.c.h.b16 %v2097
        %v2279 = vunpack.c.l.b16 %v2098
        %v2280 = vunpack.c.h.b16 %v2098
        %v2281 = vpack.c.b16 %v2221, %v2217
        %v2282 = vpack.c.b16 %v2222, %v2218
        %v2283 = vpack.c.b16 %v2223, %v2219
        %v2284 = vpack.c.b16 %v2224, %v2220
        %v2285 = vpack.c.b16 %v2229, %v2225
        %v2286 = vpack.c.b16 %v2230, %v2226
        %v2287 = vpack.c.b16 %v2231, %v2227
        %v2288 = vpack.c.b16 %v2232, %v2228
        %v2289 = vpack.c.b16 %v2237, %v2233
        %v2290 = vpack.c.b16 %v2238, %v2234
        %v2291 = vpack.c.b16 %v2239, %v2235
        %v2292 = vpack.c.b16 %v2240, %v2236
        %v2293 = vpack.c.b16 %v2245, %v2241
        %v2294 = vpack.c.b16 %v2246, %v2242
        %v2295 = vpack.c.b16 %v2247, %v2243
        %v2296 = vpack.c.b16 %v2248, %v2244
        %v2297 = vpack.c.b16 %v2253, %v2249
        %v2298 = vpack.c.b16 %v2254, %v2250
        %v2299 = vpack.c.b16 %v2255, %v2251
        %v2300 = vpack.c.b16 %v2256, %v2252
        %v2301 = vpack.c.b16 %v2261, %v2257
        %v2302 = vpack.c.b16 %v2262, %v2258
        %v2303 = vpack.c.b16 %v2263, %v2259
        %v2304 = vpack.c.b16 %v2264, %v2260
        %v2305 = vpack.c.b16 %v2269, %v2265
        %v2306 = vpack.c.b16 %v2270, %v2266
        %v2307 = vpack.c.b16 %v2271, %v2267
        %v2308 = vpack.c.b16 %v2272, %v2268
        %v2309 = vpack.c.b16 %v2277, %v2273
        %v2310 = vpack.c.b16 %v2278, %v2274
        %v2311 = vpack.c.b16 %v2279, %v2275
        %v2312 = vpack.c.b16 %v2280, %v2276
        %2345 = vmatprep.subr.bf16.mxu0 %v2282
        %2346 = vmatpush1.bf16.msra.mxu0 %v2281
        %2347 = vmatprep.subr.bf16.mxu0 %v2286
        %2348 = vmatpush1.bf16.msra.mxu0 %v2285
        %2349 = vmatprep.subr.bf16.mxu0 %v2290
        %2350 = vmatpush1.bf16.msra.mxu0 %v2289
        %2351 = vmatprep.subr.bf16.mxu0 %v2294
        %2352 = vmatpush1.bf16.msra.mxu0 %v2293
        %2353 = vmatprep.subr.bf16.mxu0 %v2298
        %2354 = vmatpush1.bf16.msra.mxu0 %v2297
        %2355 = vmatprep.subr.bf16.mxu0 %v2302
        %2356 = vmatpush1.bf16.msra.mxu0 %v2301
        %2357 = vmatprep.subr.bf16.mxu0 %v2306
        %2358 = vmatpush1.bf16.msra.mxu0 %v2305
        %2359 = vmatprep.subr.bf16.mxu0 %v2310
        %2360 = vmatpush1.bf16.msra.mxu0 %v2309
        %2361 = vmatprep.subr.bf16.mxu0 0
        %2362 = vmatpush1.bf16.msra.mxu0 0
        %2363 = vmatprep.subr.bf16.mxu0 0
        %2364 = vmatpush1.bf16.msra.mxu0 0
        %2365 = vmatprep.subr.bf16.mxu0 0
        %2366 = vmatpush1.bf16.msra.mxu0 0
        %2367 = vmatprep.subr.bf16.mxu0 0
        %2368 = vmatpush1.bf16.msra.mxu0 0
        %2369 = vmatprep.subr.bf16.mxu0 0
        %2370 = vmatpush1.bf16.msra.mxu0 0
        %2371 = vmatprep.subr.bf16.mxu0 0
        %2372 = vmatpush1.bf16.msra.mxu0 0
        %2373 = vmatprep.subr.bf16.mxu0 0
        %2374 = vmatpush1.bf16.msra.mxu0 0
        %2375 = vmatprep.subr.bf16.mxu0 0
        %2376 = vmatpush1.bf16.msra.mxu0 0
        %2377 = vmatprep.mubr.bf16.mxu0 0
        %2378 = vmatmul.mubr.bf16.gmra.mrb[0].mxu0 %v2177
        %v2379 = vpop.f32.mrb[0].mxu0
        %v2380 = vadd.f32 %v2144, %v2379
        %v2381 = vpop.f32.mrb[0].mxu0
        %v2382 = vadd.f32 %v2148, %v2381
        %v2383 = vpop.f32.mrb[0].mxu0
        %v2384 = vadd.f32 %v2144, %v2383
        %v2385 = vpop.f32.mrb[0].mxu0
        %v2386 = vadd.f32 %v2148, %v2385
        %2387 = vmatprep.mubr.bf16.mxu0 0
        %2388 = vmatmul.mubr.bf16.gmra.mrb[0].mxu0 %v2178
        %v2389 = vpop.f32.mrb[0].mxu0
        %v2390 = vadd.f32 %v2144, %v2389
        %v2391 = vpop.f32.mrb[0].mxu0
        %v2392 = vadd.f32 %v2148, %v2391
        %v2393 = vpop.f32.mrb[0].mxu0
        %v2394 = vadd.f32 %v2144, %v2393
        %v2395 = vpop.f32.mrb[0].mxu0
        %v2396 = vadd.f32 %v2148, %v2395
        %2397 = vmatprep.mubr.bf16.mxu0 0
        %2398 = vmatmul.mubr.bf16.gmra.mrb[0].mxu0 %v2179
        %v2399 = vpop.f32.mrb[0].mxu0
        %v2400 = vadd.f32 %v2144, %v2399
        %v2401 = vpop.f32.mrb[0].mxu0
        %v2402 = vadd.f32 %v2148, %v2401
        %v2403 = vpop.f32.mrb[0].mxu0
        %v2404 = vadd.f32 %v2144, %v2403
        %v2405 = vpop.f32.mrb[0].mxu0
        %v2406 = vadd.f32 %v2148, %v2405
        %2407 = vmatprep.mubr.bf16.mxu0 0
        %2408 = vmatmul.mubr.bf16.gmra.mrb[0].mxu0 %v2180
        %v2409 = vpop.f32.mrb[0].mxu0
        %v2410 = vadd.f32 %v2144, %v2409
        %v2411 = vpop.f32.mrb[0].mxu0
        %v2412 = vadd.f32 %v2148, %v2411
        %v2413 = vpop.f32.mrb[0].mxu0
        %v2414 = vadd.f32 %v2144, %v2413
        %v2415 = vpop.f32.mrb[0].mxu0
        %v2416 = vadd.f32 %v2148, %v2415
        %2417 = vdwg.mxu0
        %2418 = vmatprep.subr.bf16.mxu0 %v2284
        %2419 = vmatpush1.bf16.msra.mxu0 %v2283
        %2420 = vmatprep.subr.bf16.mxu0 %v2288
        %2421 = vmatpush1.bf16.msra.mxu0 %v2287
        %2422 = vmatprep.subr.bf16.mxu0 %v2292
        %2423 = vmatpush1.bf16.msra.mxu0 %v2291
        %2424 = vmatprep.subr.bf16.mxu0 %v2296
        %2425 = vmatpush1.bf16.msra.mxu0 %v2295
        %2426 = vmatprep.subr.bf16.mxu0 %v2300
        %2427 = vmatpush1.bf16.msra.mxu0 %v2299
        %2428 = vmatprep.subr.bf16.mxu0 %v2304
        %2429 = vmatpush1.bf16.msra.mxu0 %v2303
        %2430 = vmatprep.subr.bf16.mxu0 %v2308
        %2431 = vmatpush1.bf16.msra.mxu0 %v2307
        %2432 = vmatprep.subr.bf16.mxu0 %v2312
        %2433 = vmatpush1.bf16.msra.mxu0 %v2311
        %2434 = vmatprep.subr.bf16.mxu0 0
        %2435 = vmatpush1.bf16.msra.mxu0 0
        %2436 = vmatprep.subr.bf16.mxu0 0
        %2437 = vmatpush1.bf16.msra.mxu0 0
        %2438 = vmatprep.subr.bf16.mxu0 0
        %2439 = vmatpush1.bf16.msra.mxu0 0
        %2440 = vmatprep.subr.bf16.mxu0 0
        %2441 = vmatpush1.bf16.msra.mxu0 0
        %2442 = vmatprep.subr.bf16.mxu0 0
        %2443 = vmatpush1.bf16.msra.mxu0 0
        %2444 = vmatprep.subr.bf16.mxu0 0
        %2445 = vmatpush1.bf16.msra.mxu0 0
        %2446 = vmatprep.subr.bf16.mxu0 0
        %2447 = vmatpush1.bf16.msra.mxu0 0
        %2448 = vmatprep.subr.bf16.mxu0 0
        %2449 = vmatpush1.bf16.msra.mxu0 0
        %2450 = vmatprep.mubr.bf16.mxu0 0
        %2451 = vmatmul.mubr.bf16.gmra.mrb[0].mxu0 %v2177
        %v2452 = vpop.f32.mrb[0].mxu0
        %v2453 = vadd.f32 %v2152, %v2452
        %v2454 = vpop.f32.mrb[0].mxu0
        %v2455 = vadd.f32 %v2156, %v2454
        %v2456 = vpop.f32.mrb[0].mxu0
        %v2457 = vadd.f32 %v2152, %v2456
        %v2458 = vpop.f32.mrb[0].mxu0
        %v2459 = vadd.f32 %v2156, %v2458
        %2460 = vmatprep.mubr.bf16.mxu0 0
        %2461 = vmatmul.mubr.bf16.gmra.mrb[0].mxu0 %v2178
        %v2462 = vpop.f32.mrb[0].mxu0
        %v2463 = vadd.f32 %v2152, %v2462
        %v2464 = vpop.f32.mrb[0].mxu0
        %v2465 = vadd.f32 %v2156, %v2464
        %v2466 = vpop.f32.mrb[0].mxu0
        %v2467 = vadd.f32 %v2152, %v2466
        %v2468 = vpop.f32.mrb[0].mxu0
        %v2469 = vadd.f32 %v2156, %v2468
        %2470 = vmatprep.mubr.bf16.mxu0 0
        %2471 = vmatmul.mubr.bf16.gmra.mrb[0].mxu0 %v2179
        %v2472 = vpop.f32.mrb[0].mxu0
        %v2473 = vadd.f32 %v2152, %v2472
        %v2474 = vpop.f32.mrb[0].mxu0
        %v2475 = vadd.f32 %v2156, %v2474
        %v2476 = vpop.f32.mrb[0].mxu0
        %v2477 = vadd.f32 %v2152, %v2476
        %v2478 = vpop.f32.mrb[0].mxu0
        %v2479 = vadd.f32 %v2156, %v2478
        %2480 = vmatprep.mubr.bf16.mxu0 0
        %2481 = vmatmul.mubr.bf16.gmra.mrb[0].mxu0 %v2180
        %v2482 = vpop.f32.mrb[0].mxu0
        %v2483 = vadd.f32 %v2152, %v2482
        %v2484 = vpop.f32.mrb[0].mxu0
        %v2485 = vadd.f32 %v2156, %v2484
        %v2486 = vpop.f32.mrb[0].mxu0
        %v2487 = vadd.f32 %v2152, %v2486
        %v2488 = vpop.f32.mrb[0].mxu0
        %v2489 = vadd.f32 %v2156, %v2488
        %2490 = vdwg.mxu0
        %v2491 = vpack.c.bf16 %v2384, %v2380
        %v2492 = vpack.c.bf16 %v2386, %v2382
        %v2493 = vpack.c.bf16 %v2457, %v2453
        %v2494 = vpack.c.bf16 %v2459, %v2455
        %v2495 = vpack.c.bf16 %v2394, %v2390
        %v2496 = vpack.c.bf16 %v2396, %v2392
        %v2497 = vpack.c.bf16 %v2467, %v2463
        %v2498 = vpack.c.bf16 %v2469, %v2465
        %v2499 = vpack.c.bf16 %v2404, %v2400
        %v2500 = vpack.c.bf16 %v2406, %v2402
        %v2501 = vpack.c.bf16 %v2477, %v2473
        %v2502 = vpack.c.bf16 %v2479, %v2475
        %v2503 = vpack.c.bf16 %v2414, %v2410
        %v2504 = vpack.c.bf16 %v2416, %v2412
        %v2505 = vpack.c.bf16 %v2487, %v2483
        %v2506 = vpack.c.bf16 %v2489, %v2485
        %v2523 = vunpack.c.l.b16 %v2491
        %v2524 = vunpack.c.l.b16 %v2492
        %v2525 = vunpack.c.l.b16 %v2493
        %v2526 = vunpack.c.l.b16 %v2494
        %v2527 = vunpack.c.h.b16 %v2491
        %v2528 = vunpack.c.h.b16 %v2492
        %v2529 = vunpack.c.h.b16 %v2493
        %v2530 = vunpack.c.h.b16 %v2494
        %v2531 = vunpack.c.l.b16 %v2495
        %v2532 = vunpack.c.l.b16 %v2496
        %v2533 = vunpack.c.l.b16 %v2497
        %v2534 = vunpack.c.l.b16 %v2498
        %v2535 = vunpack.c.h.b16 %v2495
        %v2536 = vunpack.c.h.b16 %v2496
        %v2537 = vunpack.c.h.b16 %v2497
        %v2538 = vunpack.c.h.b16 %v2498
        %v2539 = vunpack.c.l.b16 %v2499
        %v2540 = vunpack.c.l.b16 %v2500
        %v2541 = vunpack.c.l.b16 %v2501
        %v2542 = vunpack.c.l.b16 %v2502
        %v2543 = vunpack.c.h.b16 %v2499
        %v2544 = vunpack.c.h.b16 %v2500
        %v2545 = vunpack.c.h.b16 %v2501
        %v2546 = vunpack.c.h.b16 %v2502
        %v2547 = vunpack.c.l.b16 %v2503
        %v2548 = vunpack.c.l.b16 %v2504
        %v2549 = vunpack.c.l.b16 %v2505
        %v2550 = vunpack.c.l.b16 %v2506
        %v2551 = vunpack.c.h.b16 %v2503
        %v2552 = vunpack.c.h.b16 %v2504
        %v2553 = vunpack.c.h.b16 %v2505
        %v2554 = vunpack.c.h.b16 %v2506
        %v2555 = vpack.c.b16 %v2524, %v2523
        %v2556 = vpack.c.b16 %v2526, %v2525
        %v2557 = vpack.c.b16 %v2528, %v2527
        %v2558 = vpack.c.b16 %v2530, %v2529
        %v2559 = vpack.c.b16 %v2532, %v2531
        %v2560 = vpack.c.b16 %v2534, %v2533
        %v2561 = vpack.c.b16 %v2536, %v2535
        %v2562 = vpack.c.b16 %v2538, %v2537
        %v2563 = vpack.c.b16 %v2540, %v2539
        %v2564 = vpack.c.b16 %v2542, %v2541
        %v2565 = vpack.c.b16 %v2544, %v2543
        %v2566 = vpack.c.b16 %v2546, %v2545
        %v2567 = vpack.c.b16 %v2548, %v2547
        %v2568 = vpack.c.b16 %v2550, %v2549
        %v2569 = vpack.c.b16 %v2552, %v2551
        %v2570 = vpack.c.b16 %v2554, %v2553
        %2587 = vst [vmem:[#allocation3] sm:$0xff] %v2555
        %2588 = vst [vmem:[#allocation3 + $0x8] sm:$0xff] %v2556
        %2589 = vst [vmem:[#allocation3 + $0x10] sm:$0xff] %v2557
        %2590 = vst [vmem:[#allocation3 + $0x18] sm:$0xff] %v2558
        %2591 = vst [vmem:[#allocation3 + $0x20] sm:$0xff] %v2559
        %2592 = vst [vmem:[#allocation3 + $0x28] sm:$0xff] %v2560
        %2593 = vst [vmem:[#allocation3 + $0x30] sm:$0xff] %v2561
        %2594 = vst [vmem:[#allocation3 + $0x38] sm:$0xff] %v2562
        %2595 = vst [vmem:[#allocation3 + $0x40] sm:$0xff] %v2563
        %2596 = vst [vmem:[#allocation3 + $0x48] sm:$0xff] %v2564
        %2597 = vst [vmem:[#allocation3 + $0x50] sm:$0xff] %v2565
        %2598 = vst [vmem:[#allocation3 + $0x58] sm:$0xff] %v2566
        %2599 = vst [vmem:[#allocation3 + $0x60] sm:$0xff] %v2567
        %2600 = vst [vmem:[#allocation3 + $0x68] sm:$0xff] %v2568
        %2601 = vst [vmem:[#allocation3 + $0x70] sm:$0xff] %v2569
        %2602 = vst [vmem:[#allocation3 + $0x78] sm:$0xff] %v2570
        %v2603 = vld [vmem:[#allocation3] sm:$0xff]
        %v2604 = vld [vmem:[#allocation3 + $0x8] sm:$0xff]
        %v2637 = vunpack.c.l.b16 %v2099
        %v2638 = vunpack.c.h.b16 %v2099
        %v2639 = vunpack.c.l.b16 %v2100
        %v2640 = vunpack.c.h.b16 %v2100
        %v2641 = vunpack.c.l.b16 %v2101
        %v2642 = vunpack.c.h.b16 %v2101
        %v2643 = vunpack.c.l.b16 %v2102
        %v2644 = vunpack.c.h.b16 %v2102
        %v2645 = vunpack.c.l.b16 %v2103
        %v2646 = vunpack.c.h.b16 %v2103
        %v2647 = vunpack.c.l.b16 %v2104
        %v2648 = vunpack.c.h.b16 %v2104
        %v2649 = vunpack.c.l.b16 %v2105
        %v2650 = vunpack.c.h.b16 %v2105
        %v2651 = vunpack.c.l.b16 %v2106
        %v2652 = vunpack.c.h.b16 %v2106
        %v2653 = vunpack.c.l.b16 %v2107
        %v2654 = vunpack.c.h.b16 %v2107
        %v2655 = vunpack.c.l.b16 %v2108
        %v2656 = vunpack.c.h.b16 %v2108
        %v2657 = vunpack.c.l.b16 %v2109
        %v2658 = vunpack.c.h.b16 %v2109
        %v2659 = vunpack.c.l.b16 %v2110
        %v2660 = vunpack.c.h.b16 %v2110
        %v2661 = vunpack.c.l.b16 %v2111
        %v2662 = vunpack.c.h.b16 %v2111
        %v2663 = vunpack.c.l.b16 %v2112
        %v2664 = vunpack.c.h.b16 %v2112
        %v2665 = vunpack.c.l.b16 %v2113
        %v2666 = vunpack.c.h.b16 %v2113
        %v2667 = vunpack.c.l.b16 %v2114
        %v2668 = vunpack.c.h.b16 %v2114
        %v2669 = vunpack.c.l.b16 %v2115
        %v2670 = vunpack.c.h.b16 %v2115
        %v2671 = vunpack.c.l.b16 %v2116
        %v2672 = vunpack.c.h.b16 %v2116
        %v2673 = vunpack.c.l.b16 %v2117
        %v2674 = vunpack.c.h.b16 %v2117
        %v2675 = vunpack.c.l.b16 %v2118
        %v2676 = vunpack.c.h.b16 %v2118
        %v2677 = vunpack.c.l.b16 %v2119
        %v2678 = vunpack.c.h.b16 %v2119
        %v2679 = vunpack.c.l.b16 %v2120
        %v2680 = vunpack.c.h.b16 %v2120
        %v2681 = vunpack.c.l.b16 %v2121
        %v2682 = vunpack.c.h.b16 %v2121
        %v2683 = vunpack.c.l.b16 %v2122
        %v2684 = vunpack.c.h.b16 %v2122
        %v2685 = vunpack.c.l.b16 %v2123
        %v2686 = vunpack.c.h.b16 %v2123
        %v2687 = vunpack.c.l.b16 %v2124
        %v2688 = vunpack.c.h.b16 %v2124
        %v2689 = vunpack.c.l.b16 %v2125
        %v2690 = vunpack.c.h.b16 %v2125
        %v2691 = vunpack.c.l.b16 %v2126
        %v2692 = vunpack.c.h.b16 %v2126
        %v2693 = vunpack.c.l.b16 %v2127
        %v2694 = vunpack.c.h.b16 %v2127
        %v2695 = vunpack.c.l.b16 %v2128
        %v2696 = vunpack.c.h.b16 %v2128
        %v2697 = vunpack.c.l.b16 %v2129
        %v2698 = vunpack.c.h.b16 %v2129
        %v2699 = vunpack.c.l.b16 %v2130
        %v2700 = vunpack.c.h.b16 %v2130
        %v2701 = vpack.c.b16 %v2641, %v2637
        %v2702 = vpack.c.b16 %v2642, %v2638
        %v2703 = vpack.c.b16 %v2643, %v2639
        %v2704 = vpack.c.b16 %v2644, %v2640
        %v2705 = vpack.c.b16 %v2649, %v2645
        %v2706 = vpack.c.b16 %v2650, %v2646
        %v2707 = vpack.c.b16 %v2651, %v2647
        %v2708 = vpack.c.b16 %v2652, %v2648
        %v2709 = vpack.c.b16 %v2657, %v2653
        %v2710 = vpack.c.b16 %v2658, %v2654
        %v2711 = vpack.c.b16 %v2659, %v2655
        %v2712 = vpack.c.b16 %v2660, %v2656
        %v2713 = vpack.c.b16 %v2665, %v2661
        %v2714 = vpack.c.b16 %v2666, %v2662
        %v2715 = vpack.c.b16 %v2667, %v2663
        %v2716 = vpack.c.b16 %v2668, %v2664
        %v2717 = vpack.c.b16 %v2673, %v2669
        %v2718 = vpack.c.b16 %v2674, %v2670
        %v2719 = vpack.c.b16 %v2675, %v2671
        %v2720 = vpack.c.b16 %v2676, %v2672
        %v2721 = vpack.c.b16 %v2681, %v2677
        %v2722 = vpack.c.b16 %v2682, %v2678
        %v2723 = vpack.c.b16 %v2683, %v2679
        %v2724 = vpack.c.b16 %v2684, %v2680
        %v2725 = vpack.c.b16 %v2689, %v2685
        %v2726 = vpack.c.b16 %v2690, %v2686
        %v2727 = vpack.c.b16 %v2691, %v2687
        %v2728 = vpack.c.b16 %v2692, %v2688
        %v2729 = vpack.c.b16 %v2697, %v2693
        %v2730 = vpack.c.b16 %v2698, %v2694
        %v2731 = vpack.c.b16 %v2699, %v2695
        %v2732 = vpack.c.b16 %v2700, %v2696
        %2765 = vmatprep.subr.bf16.mxu0 %v2702
        %2766 = vmatpush1.bf16.msra.mxu0 %v2701
        %2767 = vmatprep.subr.bf16.mxu0 %v2706
        %2768 = vmatpush1.bf16.msra.mxu0 %v2705
        %2769 = vmatprep.subr.bf16.mxu0 %v2710
        %2770 = vmatpush1.bf16.msra.mxu0 %v2709
        %2771 = vmatprep.subr.bf16.mxu0 %v2714
        %2772 = vmatpush1.bf16.msra.mxu0 %v2713
        %2773 = vmatprep.subr.bf16.mxu0 %v2718
        %2774 = vmatpush1.bf16.msra.mxu0 %v2717
        %2775 = vmatprep.subr.bf16.mxu0 %v2722
        %2776 = vmatpush1.bf16.msra.mxu0 %v2721
        %2777 = vmatprep.subr.bf16.mxu0 %v2726
        %2778 = vmatpush1.bf16.msra.mxu0 %v2725
        %2779 = vmatprep.subr.bf16.mxu0 %v2730
        %2780 = vmatpush1.bf16.msra.mxu0 %v2729
        %2781 = vmatprep.subr.bf16.mxu0 0
        %2782 = vmatpush1.bf16.msra.mxu0 0
        %2783 = vmatprep.subr.bf16.mxu0 0
        %2784 = vmatpush1.bf16.msra.mxu0 0
        %2785 = vmatprep.subr.bf16.mxu0 0
        %2786 = vmatpush1.bf16.msra.mxu0 0
        %2787 = vmatprep.subr.bf16.mxu0 0
        %2788 = vmatpush1.bf16.msra.mxu0 0
        %2789 = vmatprep.subr.bf16.mxu0 0
        %2790 = vmatpush1.bf16.msra.mxu0 0
        %2791 = vmatprep.subr.bf16.mxu0 0
        %2792 = vmatpush1.bf16.msra.mxu0 0
        %2793 = vmatprep.subr.bf16.mxu0 0
        %2794 = vmatpush1.bf16.msra.mxu0 0
        %2795 = vmatprep.subr.bf16.mxu0 0
        %2796 = vmatpush1.bf16.msra.mxu0 0
        %2797 = vmatprep.mubr.bf16.mxu0 0
        %2798 = vmatmul.mubr.bf16.gmra.mrb[0].mxu0 0
        %v2799 = vpop.f32.mrb[0].mxu0
        %v2800 = vadd.f32 0.0, %v2799
        %v2801 = vpop.f32.mrb[0].mxu0
        %v2802 = vadd.f32 0.0, %v2801
        %v2803 = vpop.f32.mrb[0].mxu0
        %v2804 = vpop.f32.mrb[0].mxu0
        %2805 = vdwg.mxu0
        %2806 = vmatprep.subr.bf16.mxu0 %v2704
        %2807 = vmatpush1.bf16.msra.mxu0 %v2703
        %2808 = vmatprep.subr.bf16.mxu0 %v2708
        %2809 = vmatpush1.bf16.msra.mxu0 %v2707
        %2810 = vmatprep.subr.bf16.mxu0 %v2712
        %2811 = vmatpush1.bf16.msra.mxu0 %v2711
        %2812 = vmatprep.subr.bf16.mxu0 %v2716
        %2813 = vmatpush1.bf16.msra.mxu0 %v2715
        %2814 = vmatprep.subr.bf16.mxu0 %v2720
        %2815 = vmatpush1.bf16.msra.mxu0 %v2719
        %2816 = vmatprep.subr.bf16.mxu0 %v2724
        %2817 = vmatpush1.bf16.msra.mxu0 %v2723
        %2818 = vmatprep.subr.bf16.mxu0 %v2728
        %2819 = vmatpush1.bf16.msra.mxu0 %v2727
        %2820 = vmatprep.subr.bf16.mxu0 %v2732
        %2821 = vmatpush1.bf16.msra.mxu0 %v2731
        %2822 = vmatprep.subr.bf16.mxu0 0
        %2823 = vmatpush1.bf16.msra.mxu0 0
        %2824 = vmatprep.subr.bf16.mxu0 0
        %2825 = vmatpush1.bf16.msra.mxu0 0
        %2826 = vmatprep.subr.bf16.mxu0 0
        %2827 = vmatpush1.bf16.msra.mxu0 0
        %2828 = vmatprep.subr.bf16.mxu0 0
        %2829 = vmatpush1.bf16.msra.mxu0 0
        %2830 = vmatprep.subr.bf16.mxu0 0
        %2831 = vmatpush1.bf16.msra.mxu0 0
        %2832 = vmatprep.subr.bf16.mxu0 0
        %2833 = vmatpush1.bf16.msra.mxu0 0
        %2834 = vmatprep.subr.bf16.mxu0 0
        %2835 = vmatpush1.bf16.msra.mxu0 0
        %2836 = vmatprep.subr.bf16.mxu0 0
        %2837 = vmatpush1.bf16.msra.mxu0 0
        %2838 = vmatprep.mubr.bf16.mxu0 0
        %2839 = vmatmul.mubr.bf16.gmra.mrb[0].mxu0 0
        %v2840 = vpop.f32.mrb[0].mxu0
        %v2841 = vadd.f32 0.0, %v2840
        %v2842 = vpop.f32.mrb[0].mxu0
        %v2843 = vadd.f32 0.0, %v2842
        %v2844 = vpop.f32.mrb[0].mxu0
        %v2845 = vpop.f32.mrb[0].mxu0
        %2846 = vdwg.mxu0
        %v2847 = vunpack.c.l.bf16 %v2603
        %v2848 = vunpack.c.h.bf16 %v2603
        %v2849 = vunpack.c.l.bf16 %v2604
        %v2850 = vunpack.c.h.bf16 %v2604
        %v2851 = vadd.f32 %v2847, %v2800
        %v2852 = vadd.f32 %v2848, %v2802
        %v2853 = vadd.f32 %v2849, %v2841
        %v2854 = vadd.f32 %v2850, %v2843
        %v2855 = vxor.u32 %v2851, 2147483648
        %v2856 = vmul.f32 %v2855, 1.442695
        %v2857 = vpow.pop %v2856
        %v2858 = vadd.f32 %v2857, 1.0
        %v2859 = vrcp.pop %v2858
        %v2860 = vmul.f32 1.0, %v2859
        %v2861 = vxor.u32 %v2852, 2147483648
        %v2862 = vmul.f32 %v2861, 1.442695
        %v2863 = vpow.pop %v2862
        %v2864 = vadd.f32 %v2863, 1.0
        %v2865 = vrcp.pop %v2864
        %v2866 = vmul.f32 1.0, %v2865
        %v2867 = vtanh.pop %v2853
        %v2868 = vxor.u32 %v2854, 2147483648
        %v2869 = vmul.f32 %v2868, 1.442695
        %v2870 = vpow.pop %v2869
        %v2871 = vadd.f32 %v2870, 1.0
        %v2872 = vrcp.pop %v2871
        %v2873 = vmul.f32 1.0, %v2872
        %v2874 = vmul.f32 %v2866, 0.0
        %v2875 = vmul.f32 %v2860, %v2867
        %v2876 = vadd.f32 %v2874, %v2875
        %v2877 = vtanh.pop %v2876
        %v2878 = vmul.f32 %v2873, %v2877
        %v2879 = vpack.c.bf16 %v2878, %v2878
        %2880 = vst [vmem:[#allocation2] sm:$0xf] %v2879
        %v2881 = vld [vmem:[%s1213] sm:$0xff]
        %v2882 = vld [vmem:[%s1213 + $0x8] sm:$0xff]
        %2883 = vmatprep.subr.bf16.mxu0 %v2702
        %2884 = vmatpush1.bf16.msra.mxu0 %v2701
        %2885 = vmatprep.subr.bf16.mxu0 %v2706
        %2886 = vmatpush1.bf16.msra.mxu0 %v2705
        %2887 = vmatprep.subr.bf16.mxu0 %v2710
        %2888 = vmatpush1.bf16.msra.mxu0 %v2709
        %2889 = vmatprep.subr.bf16.mxu0 %v2714
        %2890 = vmatpush1.bf16.msra.mxu0 %v2713
        %2891 = vmatprep.subr.bf16.mxu0 %v2718
        %2892 = vmatpush1.bf16.msra.mxu0 %v2717
        %2893 = vmatprep.subr.bf16.mxu0 %v2722
        %2894 = vmatpush1.bf16.msra.mxu0 %v2721
        %2895 = vmatprep.subr.bf16.mxu0 %v2726
        %2896 = vmatpush1.bf16.msra.mxu0 %v2725
        %2897 = vmatprep.subr.bf16.mxu0 %v2730
        %2898 = vmatpush1.bf16.msra.mxu0 %v2729
        %2899 = vmatprep.subr.bf16.mxu0 0
        %2900 = vmatpush1.bf16.msra.mxu0 0
        %2901 = vmatprep.subr.bf16.mxu0 0
        %2902 = vmatpush1.bf16.msra.mxu0 0
        %2903 = vmatprep.subr.bf16.mxu0 0
        %2904 = vmatpush1.bf16.msra.mxu0 0
        %2905 = vmatprep.subr.bf16.mxu0 0
        %2906 = vmatpush1.bf16.msra.mxu0 0
        %2907 = vmatprep.subr.bf16.mxu0 0
        %2908 = vmatpush1.bf16.msra.mxu0 0
        %2909 = vmatprep.subr.bf16.mxu0 0
        %2910 = vmatpush1.bf16.msra.mxu0 0
        %2911 = vmatprep.subr.bf16.mxu0 0
        %2912 = vmatpush1.bf16.msra.mxu0 0
        %2913 = vmatprep.subr.bf16.mxu0 0
        %2914 = vmatpush1.bf16.msra.mxu0 0
        %2915 = vmatprep.mubr.bf16.mxu0 0
        %2916 = vmatmul.mubr.bf16.gmra.mrb[0].mxu0 %v2879
        %v2917 = vpop.f32.mrb[0].mxu0
        %v2918 = vadd.f32 0.0, %v2917
        %v2919 = vpop.f32.mrb[0].mxu0
        %v2920 = vadd.f32 0.0, %v2919
        %v2921 = vpop.f32.mrb[0].mxu0
        %v2922 = vpop.f32.mrb[0].mxu0
        %2923 = vdwg.mxu0
        %2924 = vmatprep.subr.bf16.mxu0 %v2704
        %2925 = vmatpush1.bf16.msra.mxu0 %v2703
        %2926 = vmatprep.subr.bf16.mxu0 %v2708
        %2927 = vmatpush1.bf16.msra.mxu0 %v2707
        %2928 = vmatprep.subr.bf16.mxu0 %v2712
        %2929 = vmatpush1.bf16.msra.mxu0 %v2711
        %2930 = vmatprep.subr.bf16.mxu0 %v2716
        %2931 = vmatpush1.bf16.msra.mxu0 %v2715
        %2932 = vmatprep.subr.bf16.mxu0 %v2720
        %2933 = vmatpush1.bf16.msra.mxu0 %v2719
        %2934 = vmatprep.subr.bf16.mxu0 %v2724
        %2935 = vmatpush1.bf16.msra.mxu0 %v2723
        %2936 = vmatprep.subr.bf16.mxu0 %v2728
        %2937 = vmatpush1.bf16.msra.mxu0 %v2727
        %2938 = vmatprep.subr.bf16.mxu0 %v2732
        %2939 = vmatpush1.bf16.msra.mxu0 %v2731
        %2940 = vmatprep.subr.bf16.mxu0 0
        %2941 = vmatpush1.bf16.msra.mxu0 0
        %2942 = vmatprep.subr.bf16.mxu0 0
        %2943 = vmatpush1.bf16.msra.mxu0 0
        %2944 = vmatprep.subr.bf16.mxu0 0
        %2945 = vmatpush1.bf16.msra.mxu0 0
        %2946 = vmatprep.subr.bf16.mxu0 0
        %2947 = vmatpush1.bf16.msra.mxu0 0
        %2948 = vmatprep.subr.bf16.mxu0 0
        %2949 = vmatpush1.bf16.msra.mxu0 0
        %2950 = vmatprep.subr.bf16.mxu0 0
        %2951 = vmatpush1.bf16.msra.mxu0 0
        %2952 = vmatprep.subr.bf16.mxu0 0
        %2953 = vmatpush1.bf16.msra.mxu0 0
        %2954 = vmatprep.subr.bf16.mxu0 0
        %2955 = vmatpush1.bf16.msra.mxu0 0
        %2956 = vmatprep.mubr.bf16.mxu0 0
        %2957 = vmatmul.mubr.bf16.gmra.mrb[0].mxu0 %v2879
        %v2958 = vpop.f32.mrb[0].mxu0
        %v2959 = vadd.f32 0.0, %v2958
        %v2960 = vpop.f32.mrb[0].mxu0
        %v2961 = vadd.f32 0.0, %v2960
        %v2962 = vpop.f32.mrb[0].mxu0
        %v2963 = vpop.f32.mrb[0].mxu0
        %2964 = vdwg.mxu0
        %v2965 = vunpack.c.l.bf16 %v2881
        %v2966 = vunpack.c.h.bf16 %v2881
        %v2967 = vunpack.c.l.bf16 %v2882
        %v2968 = vunpack.c.h.bf16 %v2882
        %v2969 = vadd.f32 %v2965, %v2918
        %v2970 = vadd.f32 %v2966, %v2920
        %v2971 = vadd.f32 %v2967, %v2959
        %v2972 = vadd.f32 %v2968, %v2961
        %v2973 = vxor.u32 %v2969, 2147483648
        %v2974 = vmul.f32 %v2973, 1.442695
        %v2975 = vpow.pop %v2974
        %v2976 = vadd.f32 %v2975, 1.0
        %v2977 = vrcp.pop %v2976
        %v2978 = vmul.f32 1.0, %v2977
        %v2979 = vxor.u32 %v2970, 2147483648
        %v2980 = vmul.f32 %v2979, 1.442695
        %v2981 = vpow.pop %v2980
        %v2982 = vadd.f32 %v2981, 1.0
        %v2983 = vrcp.pop %v2982
        %v2984 = vmul.f32 1.0, %v2983
        %v2985 = vtanh.pop %v2971
        %v2986 = vxor.u32 %v2972, 2147483648
        %v2987 = vmul.f32 %v2986, 1.442695
        %v2988 = vpow.pop %v2987
        %v2989 = vadd.f32 %v2988, 1.0
        %v2990 = vrcp.pop %v2989
        %v2991 = vmul.f32 1.0, %v2990
        %v2992 = vmul.f32 %v2984, %v2876
        %v2993 = vmul.f32 %v2978, %v2985
        %v2994 = vadd.f32 %v2992, %v2993
        %v2995 = vtanh.pop %v2994
        %v2996 = vmul.f32 %v2991, %v2995
        %v2997 = vpack.c.bf16 %v2996, %v2996
        %2998 = vst [vmem:[%s1333] sm:$0xf] %v2997
        %v2999 = vld [vmem:[%s1335] sm:$0xff]
        %v3000 = vld [vmem:[%s1335 + $0x8] sm:$0xff]
        %3001 = vmatprep.subr.bf16.mxu0 %v2702
        %3002 = vmatpush1.bf16.msra.mxu0 %v2701
        %3003 = vmatprep.subr.bf16.mxu0 %v2706
        %3004 = vmatpush1.bf16.msra.mxu0 %v2705
        %3005 = vmatprep.subr.bf16.mxu0 %v2710
        %3006 = vmatpush1.bf16.msra.mxu0 %v2709
        %3007 = vmatprep.subr.bf16.mxu0 %v2714
        %3008 = vmatpush1.bf16.msra.mxu0 %v2713
        %3009 = vmatprep.subr.bf16.mxu0 %v2718
        %3010 = vmatpush1.bf16.msra.mxu0 %v2717
        %3011 = vmatprep.subr.bf16.mxu0 %v2722
        %3012 = vmatpush1.bf16.msra.mxu0 %v2721
        %3013 = vmatprep.subr.bf16.mxu0 %v2726
        %3014 = vmatpush1.bf16.msra.mxu0 %v2725
        %3015 = vmatprep.subr.bf16.mxu0 %v2730
        %3016 = vmatpush1.bf16.msra.mxu0 %v2729
        %3017 = vmatprep.subr.bf16.mxu0 0
        %3018 = vmatpush1.bf16.msra.mxu0 0
        %3019 = vmatprep.subr.bf16.mxu0 0
        %3020 = vmatpush1.bf16.msra.mxu0 0
        %3021 = vmatprep.subr.bf16.mxu0 0
        %3022 = vmatpush1.bf16.msra.mxu0 0
        %3023 = vmatprep.subr.bf16.mxu0 0
        %3024 = vmatpush1.bf16.msra.mxu0 0
        %3025 = vmatprep.subr.bf16.mxu0 0
        %3026 = vmatpush1.bf16.msra.mxu0 0
        %3027 = vmatprep.subr.bf16.mxu0 0
        %3028 = vmatpush1.bf16.msra.mxu0 0
        %3029 = vmatprep.subr.bf16.mxu0 0
        %3030 = vmatpush1.bf16.msra.mxu0 0
        %3031 = vmatprep.subr.bf16.mxu0 0
        %3032 = vmatpush1.bf16.msra.mxu0 0
        %3033 = vmatprep.mubr.bf16.mxu0 0
        %3034 = vmatmul.mubr.bf16.gmra.mrb[0].mxu0 %v2997
        %v3035 = vpop.f32.mrb[0].mxu0
        %v3036 = vadd.f32 0.0, %v3035
        %v3037 = vpop.f32.mrb[0].mxu0
        %v3038 = vadd.f32 0.0, %v3037
        %v3039 = vpop.f32.mrb[0].mxu0
        %v3040 = vpop.f32.mrb[0].mxu0
        %3041 = vdwg.mxu0
        %3042 = vmatprep.subr.bf16.mxu0 %v2704
        %3043 = vmatpush1.bf16.msra.mxu0 %v2703
        %3044 = vmatprep.subr.bf16.mxu0 %v2708
        %3045 = vmatpush1.bf16.msra.mxu0 %v2707
        %3046 = vmatprep.subr.bf16.mxu0 %v2712
        %3047 = vmatpush1.bf16.msra.mxu0 %v2711
        %3048 = vmatprep.subr.bf16.mxu0 %v2716
        %3049 = vmatpush1.bf16.msra.mxu0 %v2715
        %3050 = vmatprep.subr.bf16.mxu0 %v2720
        %3051 = vmatpush1.bf16.msra.mxu0 %v2719
        %3052 = vmatprep.subr.bf16.mxu0 %v2724
        %3053 = vmatpush1.bf16.msra.mxu0 %v2723
        %3054 = vmatprep.subr.bf16.mxu0 %v2728
        %3055 = vmatpush1.bf16.msra.mxu0 %v2727
        %3056 = vmatprep.subr.bf16.mxu0 %v2732
        %3057 = vmatpush1.bf16.msra.mxu0 %v2731
        %3058 = vmatprep.subr.bf16.mxu0 0
        %3059 = vmatpush1.bf16.msra.mxu0 0
        %3060 = vmatprep.subr.bf16.mxu0 0
        %3061 = vmatpush1.bf16.msra.mxu0 0
        %3062 = vmatprep.subr.bf16.mxu0 0
        %3063 = vmatpush1.bf16.msra.mxu0 0
        %3064 = vmatprep.subr.bf16.mxu0 0
        %3065 = vmatpush1.bf16.msra.mxu0 0
        %3066 = vmatprep.subr.bf16.mxu0 0
        %3067 = vmatpush1.bf16.msra.mxu0 0
        %3068 = vmatprep.subr.bf16.mxu0 0
        %3069 = vmatpush1.bf16.msra.mxu0 0
        %3070 = vmatprep.subr.bf16.mxu0 0
        %3071 = vmatpush1.bf16.msra.mxu0 0
        %3072 = vmatprep.subr.bf16.mxu0 0
        %3073 = vmatpush1.bf16.msra.mxu0 0
        %3074 = vmatprep.mubr.bf16.mxu0 0
        %3075 = vmatmul.mubr.bf16.gmra.mrb[0].mxu0 %v2997
        %v3076 = vpop.f32.mrb[0].mxu0
        %v3077 = vadd.f32 0.0, %v3076
        %v3078 = vpop.f32.mrb[0].mxu0
        %v3079 = vadd.f32 0.0, %v3078
        %v3080 = vpop.f32.mrb[0].mxu0
        %v3081 = vpop.f32.mrb[0].mxu0
        %3082 = vdwg.mxu0
        %v3083 = vunpack.c.l.bf16 %v2999
        %v3084 = vunpack.c.h.bf16 %v2999
        %v3085 = vunpack.c.l.bf16 %v3000
        %v3086 = vunpack.c.h.bf16 %v3000
        %v3087 = vadd.f32 %v3083, %v3036
        %v3088 = vadd.f32 %v3084, %v3038
        %v3089 = vadd.f32 %v3085, %v3077
        %v3090 = vadd.f32 %v3086, %v3079
        %v3091 = vxor.u32 %v3087, 2147483648
        %v3092 = vmul.f32 %v3091, 1.442695
        %v3093 = vpow.pop %v3092
        %v3094 = vadd.f32 %v3093, 1.0
        %v3095 = vrcp.pop %v3094
        %v3096 = vmul.f32 1.0, %v3095
        %v3097 = vxor.u32 %v3088, 2147483648
        %v3098 = vmul.f32 %v3097, 1.442695
        %v3099 = vpow.pop %v3098
        %v3100 = vadd.f32 %v3099, 1.0
        %v3101 = vrcp.pop %v3100
        %v3102 = vmul.f32 1.0, %v3101
        %v3103 = vtanh.pop %v3089
        %v3104 = vxor.u32 %v3090, 2147483648
        %v3105 = vmul.f32 %v3104, 1.442695
        %v3106 = vpow.pop %v3105
        %v3107 = vadd.f32 %v3106, 1.0
        %v3108 = vrcp.pop %v3107
        %v3109 = vmul.f32 1.0, %v3108
        %v3110 = vmul.f32 %v3102, %v2994
        %v3111 = vmul.f32 %v3096, %v3103
        %v3112 = vadd.f32 %v3110, %v3111
        %v3113 = vtanh.pop %v3112
        %v3114 = vmul.f32 %v3109, %v3113
        %v3115 = vpack.c.bf16 %v3114, %v3114
        %3116 = vst [vmem:[%s1455] sm:$0xf] %v3115
        %v3117 = vld [vmem:[%s1457] sm:$0xff]
        %v3118 = vld [vmem:[%s1457 + $0x8] sm:$0xff]
        %3119 = vmatprep.subr.bf16.mxu0 %v2702
        %3120 = vmatpush1.bf16.msra.mxu0 %v2701
        %3121 = vmatprep.subr.bf16.mxu0 %v2706
        %3122 = vmatpush1.bf16.msra.mxu0 %v2705
        %3123 = vmatprep.subr.bf16.mxu0 %v2710
        %3124 = vmatpush1.bf16.msra.mxu0 %v2709
        %3125 = vmatprep.subr.bf16.mxu0 %v2714
        %3126 = vmatpush1.bf16.msra.mxu0 %v2713
        %3127 = vmatprep.subr.bf16.mxu0 %v2718
        %3128 = vmatpush1.bf16.msra.mxu0 %v2717
        %3129 = vmatprep.subr.bf16.mxu0 %v2722
        %3130 = vmatpush1.bf16.msra.mxu0 %v2721
        %3131 = vmatprep.subr.bf16.mxu0 %v2726
        %3132 = vmatpush1.bf16.msra.mxu0 %v2725
        %3133 = vmatprep.subr.bf16.mxu0 %v2730
        %3134 = vmatpush1.bf16.msra.mxu0 %v2729
        %3135 = vmatprep.subr.bf16.mxu0 0
        %3136 = vmatpush1.bf16.msra.mxu0 0
        %3137 = vmatprep.subr.bf16.mxu0 0
        %3138 = vmatpush1.bf16.msra.mxu0 0
        %3139 = vmatprep.subr.bf16.mxu0 0
        %3140 = vmatpush1.bf16.msra.mxu0 0
        %3141 = vmatprep.subr.bf16.mxu0 0
        %3142 = vmatpush1.bf16.msra.mxu0 0
        %3143 = vmatprep.subr.bf16.mxu0 0
        %3144 = vmatpush1.bf16.msra.mxu0 0
        %3145 = vmatprep.subr.bf16.mxu0 0
        %3146 = vmatpush1.bf16.msra.mxu0 0
        %3147 = vmatprep.subr.bf16.mxu0 0
        %3148 = vmatpush1.bf16.msra.mxu0 0
        %3149 = vmatprep.subr.bf16.mxu0 0
        %3150 = vmatpush1.bf16.msra.mxu0 0
        %3151 = vmatprep.mubr.bf16.mxu0 0
        %3152 = vmatmul.mubr.bf16.gmra.mrb[0].mxu0 %v3115
        %v3153 = vpop.f32.mrb[0].mxu0
        %v3154 = vadd.f32 0.0, %v3153
        %v3155 = vpop.f32.mrb[0].mxu0
        %v3156 = vadd.f32 0.0, %v3155
        %v3157 = vpop.f32.mrb[0].mxu0
        %v3158 = vpop.f32.mrb[0].mxu0
        %3159 = vdwg.mxu0
        %3160 = vmatprep.subr.bf16.mxu0 %v2704
        %3161 = vmatpush1.bf16.msra.mxu0 %v2703
        %3162 = vmatprep.subr.bf16.mxu0 %v2708
        %3163 = vmatpush1.bf16.msra.mxu0 %v2707
        %3164 = vmatprep.subr.bf16.mxu0 %v2712
        %3165 = vmatpush1.bf16.msra.mxu0 %v2711
        %3166 = vmatprep.subr.bf16.mxu0 %v2716
        %3167 = vmatpush1.bf16.msra.mxu0 %v2715
        %3168 = vmatprep.subr.bf16.mxu0 %v2720
        %3169 = vmatpush1.bf16.msra.mxu0 %v2719
        %3170 = vmatprep.subr.bf16.mxu0 %v2724
        %3171 = vmatpush1.bf16.msra.mxu0 %v2723
        %3172 = vmatprep.subr.bf16.mxu0 %v2728
        %3173 = vmatpush1.bf16.msra.mxu0 %v2727
        %3174 = vmatprep.subr.bf16.mxu0 %v2732
        %3175 = vmatpush1.bf16.msra.mxu0 %v2731
        %3176 = vmatprep.subr.bf16.mxu0 0
        %3177 = vmatpush1.bf16.msra.mxu0 0
        %3178 = vmatprep.subr.bf16.mxu0 0
        %3179 = vmatpush1.bf16.msra.mxu0 0
        %3180 = vmatprep.subr.bf16.mxu0 0
        %3181 = vmatpush1.bf16.msra.mxu0 0
        %3182 = vmatprep.subr.bf16.mxu0 0
        %3183 = vmatpush1.bf16.msra.mxu0 0
        %3184 = vmatprep.subr.bf16.mxu0 0
        %3185 = vmatpush1.bf16.msra.mxu0 0
        %3186 = vmatprep.subr.bf16.mxu0 0
        %3187 = vmatpush1.bf16.msra.mxu0 0
        %3188 = vmatprep.subr.bf16.mxu0 0
        %3189 = vmatpush1.bf16.msra.mxu0 0
        %3190 = vmatprep.subr.bf16.mxu0 0
        %3191 = vmatpush1.bf16.msra.mxu0 0
        %3192 = vmatprep.mubr.bf16.mxu0 0
        %3193 = vmatmul.mubr.bf16.gmra.mrb[0].mxu0 %v3115
        %v3194 = vpop.f32.mrb[0].mxu0
        %v3195 = vadd.f32 0.0, %v3194
        %v3196 = vpop.f32.mrb[0].mxu0
        %v3197 = vadd.f32 0.0, %v3196
        %v3198 = vpop.f32.mrb[0].mxu0
        %v3199 = vpop.f32.mrb[0].mxu0
        %3200 = vdwg.mxu0
        %v3201 = vunpack.c.l.bf16 %v3117
        %v3202 = vunpack.c.h.bf16 %v3117
        %v3203 = vunpack.c.l.bf16 %v3118
        %v3204 = vunpack.c.h.bf16 %v3118
        %v3205 = vadd.f32 %v3201, %v3154
        %v3206 = vadd.f32 %v3202, %v3156
        %v3207 = vadd.f32 %v3203, %v3195
        %v3208 = vadd.f32 %v3204, %v3197
        %v3209 = vxor.u32 %v3205, 2147483648
        %v3210 = vmul.f32 %v3209, 1.442695
        %v3211 = vpow.pop %v3210
        %v3212 = vadd.f32 %v3211, 1.0
        %v3213 = vrcp.pop %v3212
        %v3214 = vmul.f32 1.0, %v3213
        %v3215 = vxor.u32 %v3206, 2147483648
        %v3216 = vmul.f32 %v3215, 1.442695
        %v3217 = vpow.pop %v3216
        %v3218 = vadd.f32 %v3217, 1.0
        %v3219 = vrcp.pop %v3218
        %v3220 = vmul.f32 1.0, %v3219
        %v3221 = vtanh.pop %v3207
        %v3222 = vxor.u32 %v3208, 2147483648
        %v3223 = vmul.f32 %v3222, 1.442695
        %v3224 = vpow.pop %v3223
        %v3225 = vadd.f32 %v3224, 1.0
        %v3226 = vrcp.pop %v3225
        %v3227 = vmul.f32 1.0, %v3226
        %v3228 = vmul.f32 %v3220, %v3112
        %v3229 = vmul.f32 %v3214, %v3221
        %v3230 = vadd.f32 %v3228, %v3229
        %v3231 = vtanh.pop %v3230
        %v3232 = vmul.f32 %v3227, %v3231
        %v3233 = vpack.c.bf16 %v3232, %v3232
        %3234 = vst [vmem:[%s1577] sm:$0xf] %v3233
        %v3235 = vld [vmem:[%s1579] sm:$0xff]
        %v3236 = vld [vmem:[%s1579 + $0x8] sm:$0xff]
        %3237 = vmatprep.subr.bf16.mxu0 %v2702
        %3238 = vmatpush1.bf16.msra.mxu0 %v2701
        %3239 = vmatprep.subr.bf16.mxu0 %v2706
        %3240 = vmatpush1.bf16.msra.mxu0 %v2705
        %3241 = vmatprep.subr.bf16.mxu0 %v2710
        %3242 = vmatpush1.bf16.msra.mxu0 %v2709
        %3243 = vmatprep.subr.bf16.mxu0 %v2714
        %3244 = vmatpush1.bf16.msra.mxu0 %v2713
        %3245 = vmatprep.subr.bf16.mxu0 %v2718
        %3246 = vmatpush1.bf16.msra.mxu0 %v2717
        %3247 = vmatprep.subr.bf16.mxu0 %v2722
        %3248 = vmatpush1.bf16.msra.mxu0 %v2721
        %3249 = vmatprep.subr.bf16.mxu0 %v2726
        %3250 = vmatpush1.bf16.msra.mxu0 %v2725
        %3251 = vmatprep.subr.bf16.mxu0 %v2730
        %3252 = vmatpush1.bf16.msra.mxu0 %v2729
        %3253 = vmatprep.subr.bf16.mxu0 0
        %3254 = vmatpush1.bf16.msra.mxu0 0
        %3255 = vmatprep.subr.bf16.mxu0 0
        %3256 = vmatpush1.bf16.msra.mxu0 0
        %3257 = vmatprep.subr.bf16.mxu0 0
        %3258 = vmatpush1.bf16.msra.mxu0 0
        %3259 = vmatprep.subr.bf16.mxu0 0
        %3260 = vmatpush1.bf16.msra.mxu0 0
        %3261 = vmatprep.subr.bf16.mxu0 0
        %3262 = vmatpush1.bf16.msra.mxu0 0
        %3263 = vmatprep.subr.bf16.mxu0 0
        %3264 = vmatpush1.bf16.msra.mxu0 0
        %3265 = vmatprep.subr.bf16.mxu0 0
        %3266 = vmatpush1.bf16.msra.mxu0 0
        %3267 = vmatprep.subr.bf16.mxu0 0
        %3268 = vmatpush1.bf16.msra.mxu0 0
        %3269 = vmatprep.mubr.bf16.mxu0 0
        %3270 = vmatmul.mubr.bf16.gmra.mrb[0].mxu0 %v3233
        %v3271 = vpop.f32.mrb[0].mxu0
        %v3272 = vadd.f32 0.0, %v3271
        %v3273 = vpop.f32.mrb[0].mxu0
        %v3274 = vadd.f32 0.0, %v3273
        %v3275 = vpop.f32.mrb[0].mxu0
        %v3276 = vpop.f32.mrb[0].mxu0
        %3277 = vdwg.mxu0
        %3278 = vmatprep.subr.bf16.mxu0 %v2704
        %3279 = vmatpush1.bf16.msra.mxu0 %v2703
        %3280 = vmatprep.subr.bf16.mxu0 %v2708
        %3281 = vmatpush1.bf16.msra.mxu0 %v2707
        %3282 = vmatprep.subr.bf16.mxu0 %v2712
        %3283 = vmatpush1.bf16.msra.mxu0 %v2711
        %3284 = vmatprep.subr.bf16.mxu0 %v2716
        %3285 = vmatpush1.bf16.msra.mxu0 %v2715
        %3286 = vmatprep.subr.bf16.mxu0 %v2720
        %3287 = vmatpush1.bf16.msra.mxu0 %v2719
        %3288 = vmatprep.subr.bf16.mxu0 %v2724
        %3289 = vmatpush1.bf16.msra.mxu0 %v2723
        %3290 = vmatprep.subr.bf16.mxu0 %v2728
        %3291 = vmatpush1.bf16.msra.mxu0 %v2727
        %3292 = vmatprep.subr.bf16.mxu0 %v2732
        %3293 = vmatpush1.bf16.msra.mxu0 %v2731
        %3294 = vmatprep.subr.bf16.mxu0 0
        %3295 = vmatpush1.bf16.msra.mxu0 0
        %3296 = vmatprep.subr.bf16.mxu0 0
        %3297 = vmatpush1.bf16.msra.mxu0 0
        %3298 = vmatprep.subr.bf16.mxu0 0
        %3299 = vmatpush1.bf16.msra.mxu0 0
        %3300 = vmatprep.subr.bf16.mxu0 0
        %3301 = vmatpush1.bf16.msra.mxu0 0
        %3302 = vmatprep.subr.bf16.mxu0 0
        %3303 = vmatpush1.bf16.msra.mxu0 0
        %3304 = vmatprep.subr.bf16.mxu0 0
        %3305 = vmatpush1.bf16.msra.mxu0 0
        %3306 = vmatprep.subr.bf16.mxu0 0
        %3307 = vmatpush1.bf16.msra.mxu0 0
        %3308 = vmatprep.subr.bf16.mxu0 0
        %3309 = vmatpush1.bf16.msra.mxu0 0
        %3310 = vmatprep.mubr.bf16.mxu0 0
        %3311 = vmatmul.mubr.bf16.gmra.mrb[0].mxu0 %v3233
        %v3312 = vpop.f32.mrb[0].mxu0
        %v3313 = vadd.f32 0.0, %v3312
        %v3314 = vpop.f32.mrb[0].mxu0
        %v3315 = vadd.f32 0.0, %v3314
        %v3316 = vpop.f32.mrb[0].mxu0
        %v3317 = vpop.f32.mrb[0].mxu0
        %3318 = vdwg.mxu0
        %v3319 = vunpack.c.l.bf16 %v3235
        %v3320 = vunpack.c.h.bf16 %v3235
        %v3321 = vunpack.c.l.bf16 %v3236
        %v3322 = vunpack.c.h.bf16 %v3236
        %v3323 = vadd.f32 %v3319, %v3272
        %v3324 = vadd.f32 %v3320, %v3274
        %v3325 = vadd.f32 %v3321, %v3313
        %v3326 = vadd.f32 %v3322, %v3315
        %v3327 = vxor.u32 %v3323, 2147483648
        %v3328 = vmul.f32 %v3327, 1.442695
        %v3329 = vpow.pop %v3328
        %v3330 = vadd.f32 %v3329, 1.0
        %v3331 = vrcp.pop %v3330
        %v3332 = vmul.f32 1.0, %v3331
        %v3333 = vxor.u32 %v3324, 2147483648
        %v3334 = vmul.f32 %v3333, 1.442695
        %v3335 = vpow.pop %v3334
        %v3336 = vadd.f32 %v3335, 1.0
        %v3337 = vrcp.pop %v3336
        %v3338 = vmul.f32 1.0, %v3337
        %v3339 = vtanh.pop %v3325
        %v3340 = vxor.u32 %v3326, 2147483648
        %v3341 = vmul.f32 %v3340, 1.442695
        %v3342 = vpow.pop %v3341
        %v3343 = vadd.f32 %v3342, 1.0
        %v3344 = vrcp.pop %v3343
        %v3345 = vmul.f32 1.0, %v3344
        %v3346 = vmul.f32 %v3338, %v3230
        %v3347 = vmul.f32 %v3332, %v3339
        %v3348 = vadd.f32 %v3346, %v3347
        %v3349 = vtanh.pop %v3348
        %v3350 = vmul.f32 %v3345, %v3349
        %v3351 = vpack.c.bf16 %v3350, %v3350
        %3352 = vst [vmem:[%s1699] sm:$0xf] %v3351
        %v3353 = vld [vmem:[%s1701] sm:$0xff]
        %v3354 = vld [vmem:[%s1701 + $0x8] sm:$0xff]
        %3355 = vmatprep.subr.bf16.mxu0 %v2702
        %3356 = vmatpush1.bf16.msra.mxu0 %v2701
        %3357 = vmatprep.subr.bf16.mxu0 %v2706
        %3358 = vmatpush1.bf16.msra.mxu0 %v2705
        %3359 = vmatprep.subr.bf16.mxu0 %v2710
        %3360 = vmatpush1.bf16.msra.mxu0 %v2709
        %3361 = vmatprep.subr.bf16.mxu0 %v2714
        %3362 = vmatpush1.bf16.msra.mxu0 %v2713
        %3363 = vmatprep.subr.bf16.mxu0 %v2718
        %3364 = vmatpush1.bf16.msra.mxu0 %v2717
        %3365 = vmatprep.subr.bf16.mxu0 %v2722
        %3366 = vmatpush1.bf16.msra.mxu0 %v2721
        %3367 = vmatprep.subr.bf16.mxu0 %v2726
        %3368 = vmatpush1.bf16.msra.mxu0 %v2725
        %3369 = vmatprep.subr.bf16.mxu0 %v2730
        %3370 = vmatpush1.bf16.msra.mxu0 %v2729
        %3371 = vmatprep.subr.bf16.mxu0 0
        %3372 = vmatpush1.bf16.msra.mxu0 0
        %3373 = vmatprep.subr.bf16.mxu0 0
        %3374 = vmatpush1.bf16.msra.mxu0 0
        %3375 = vmatprep.subr.bf16.mxu0 0
        %3376 = vmatpush1.bf16.msra.mxu0 0
        %3377 = vmatprep.subr.bf16.mxu0 0
        %3378 = vmatpush1.bf16.msra.mxu0 0
        %3379 = vmatprep.subr.bf16.mxu0 0
        %3380 = vmatpush1.bf16.msra.mxu0 0
        %3381 = vmatprep.subr.bf16.mxu0 0
        %3382 = vmatpush1.bf16.msra.mxu0 0
        %3383 = vmatprep.subr.bf16.mxu0 0
        %3384 = vmatpush1.bf16.msra.mxu0 0
        %3385 = vmatprep.subr.bf16.mxu0 0
        %3386 = vmatpush1.bf16.msra.mxu0 0
        %3387 = vmatprep.mubr.bf16.mxu0 0
        %3388 = vmatmul.mubr.bf16.gmra.mrb[0].mxu0 %v3351
        %v3389 = vpop.f32.mrb[0].mxu0
        %v3390 = vadd.f32 0.0, %v3389
        %v3391 = vpop.f32.mrb[0].mxu0
        %v3392 = vadd.f32 0.0, %v3391
        %v3393 = vpop.f32.mrb[0].mxu0
        %v3394 = vpop.f32.mrb[0].mxu0
        %3395 = vdwg.mxu0
        %3396 = vmatprep.subr.bf16.mxu0 %v2704
        %3397 = vmatpush1.bf16.msra.mxu0 %v2703
        %3398 = vmatprep.subr.bf16.mxu0 %v2708
        %3399 = vmatpush1.bf16.msra.mxu0 %v2707
        %3400 = vmatprep.subr.bf16.mxu0 %v2712
        %3401 = vmatpush1.bf16.msra.mxu0 %v2711
        %3402 = vmatprep.subr.bf16.mxu0 %v2716
        %3403 = vmatpush1.bf16.msra.mxu0 %v2715
        %3404 = vmatprep.subr.bf16.mxu0 %v2720
        %3405 = vmatpush1.bf16.msra.mxu0 %v2719
        %3406 = vmatprep.subr.bf16.mxu0 %v2724
        %3407 = vmatpush1.bf16.msra.mxu0 %v2723
        %3408 = vmatprep.subr.bf16.mxu0 %v2728
        %3409 = vmatpush1.bf16.msra.mxu0 %v2727
        %3410 = vmatprep.subr.bf16.mxu0 %v2732
        %3411 = vmatpush1.bf16.msra.mxu0 %v2731
        %3412 = vmatprep.subr.bf16.mxu0 0
        %3413 = vmatpush1.bf16.msra.mxu0 0
        %3414 = vmatprep.subr.bf16.mxu0 0
        %3415 = vmatpush1.bf16.msra.mxu0 0
        %3416 = vmatprep.subr.bf16.mxu0 0
        %3417 = vmatpush1.bf16.msra.mxu0 0
        %3418 = vmatprep.subr.bf16.mxu0 0
        %3419 = vmatpush1.bf16.msra.mxu0 0
        %3420 = vmatprep.subr.bf16.mxu0 0
        %3421 = vmatpush1.bf16.msra.mxu0 0
        %3422 = vmatprep.subr.bf16.mxu0 0
        %3423 = vmatpush1.bf16.msra.mxu0 0
        %3424 = vmatprep.subr.bf16.mxu0 0
        %3425 = vmatpush1.bf16.msra.mxu0 0
        %3426 = vmatprep.subr.bf16.mxu0 0
        %3427 = vmatpush1.bf16.msra.mxu0 0
        %3428 = vmatprep.mubr.bf16.mxu0 0
        %3429 = vmatmul.mubr.bf16.gmra.mrb[0].mxu0 %v3351
        %v3430 = vpop.f32.mrb[0].mxu0
        %v3431 = vadd.f32 0.0, %v3430
        %v3432 = vpop.f32.mrb[0].mxu0
        %v3433 = vadd.f32 0.0, %v3432
        %v3434 = vpop.f32.mrb[0].mxu0
        %v3435 = vpop.f32.mrb[0].mxu0
        %3436 = vdwg.mxu0
        %v3437 = vunpack.c.l.bf16 %v3353
        %v3438 = vunpack.c.h.bf16 %v3353
        %v3439 = vunpack.c.l.bf16 %v3354
        %v3440 = vunpack.c.h.bf16 %v3354
        %v3441 = vadd.f32 %v3437, %v3390
        %v3442 = vadd.f32 %v3438, %v3392
        %v3443 = vadd.f32 %v3439, %v3431
        %v3444 = vadd.f32 %v3440, %v3433
        %v3445 = vxor.u32 %v3441, 2147483648
        %v3446 = vmul.f32 %v3445, 1.442695
        %v3447 = vpow.pop %v3446
        %v3448 = vadd.f32 %v3447, 1.0
        %v3449 = vrcp.pop %v3448
        %v3450 = vmul.f32 1.0, %v3449
        %v3451 = vxor.u32 %v3442, 2147483648
        %v3452 = vmul.f32 %v3451, 1.442695
        %v3453 = vpow.pop %v3452
        %v3454 = vadd.f32 %v3453, 1.0
        %v3455 = vrcp.pop %v3454
        %v3456 = vmul.f32 1.0, %v3455
        %v3457 = vtanh.pop %v3443
        %v3458 = vxor.u32 %v3444, 2147483648
        %v3459 = vmul.f32 %v3458, 1.442695
        %v3460 = vpow.pop %v3459
        %v3461 = vadd.f32 %v3460, 1.0
        %v3462 = vrcp.pop %v3461
        %v3463 = vmul.f32 1.0, %v3462
        %v3464 = vmul.f32 %v3456, %v3348
        %v3465 = vmul.f32 %v3450, %v3457
        %v3466 = vadd.f32 %v3464, %v3465
        %v3467 = vtanh.pop %v3466
        %v3468 = vmul.f32 %v3463, %v3467
        %v3469 = vpack.c.bf16 %v3468, %v3468
        %3470 = vst [vmem:[%s1821] sm:$0xf] %v3469
        %v3471 = vld [vmem:[%s1823] sm:$0xff]
        %v3472 = vld [vmem:[%s1823 + $0x8] sm:$0xff]
        %3473 = vmatprep.subr.bf16.mxu0 %v2702
        %3474 = vmatpush1.bf16.msra.mxu0 %v2701
        %3475 = vmatprep.subr.bf16.mxu0 %v2706
        %3476 = vmatpush1.bf16.msra.mxu0 %v2705
        %3477 = vmatprep.subr.bf16.mxu0 %v2710
        %3478 = vmatpush1.bf16.msra.mxu0 %v2709
        %3479 = vmatprep.subr.bf16.mxu0 %v2714
        %3480 = vmatpush1.bf16.msra.mxu0 %v2713
        %3481 = vmatprep.subr.bf16.mxu0 %v2718
        %3482 = vmatpush1.bf16.msra.mxu0 %v2717
        %3483 = vmatprep.subr.bf16.mxu0 %v2722
        %3484 = vmatpush1.bf16.msra.mxu0 %v2721
        %3485 = vmatprep.subr.bf16.mxu0 %v2726
        %3486 = vmatpush1.bf16.msra.mxu0 %v2725
        %3487 = vmatprep.subr.bf16.mxu0 %v2730
        %3488 = vmatpush1.bf16.msra.mxu0 %v2729
        %3489 = vmatprep.subr.bf16.mxu0 0
        %3490 = vmatpush1.bf16.msra.mxu0 0
        %3491 = vmatprep.subr.bf16.mxu0 0
        %3492 = vmatpush1.bf16.msra.mxu0 0
        %3493 = vmatprep.subr.bf16.mxu0 0
        %3494 = vmatpush1.bf16.msra.mxu0 0
        %3495 = vmatprep.subr.bf16.mxu0 0
        %3496 = vmatpush1.bf16.msra.mxu0 0
        %3497 = vmatprep.subr.bf16.mxu0 0
        %3498 = vmatpush1.bf16.msra.mxu0 0
        %3499 = vmatprep.subr.bf16.mxu0 0
        %3500 = vmatpush1.bf16.msra.mxu0 0
        %3501 = vmatprep.subr.bf16.mxu0 0
        %3502 = vmatpush1.bf16.msra.mxu0 0
        %3503 = vmatprep.subr.bf16.mxu0 0
        %3504 = vmatpush1.bf16.msra.mxu0 0
        %3505 = vmatprep.mubr.bf16.mxu0 0
        %3506 = vmatmul.mubr.bf16.gmra.mrb[0].mxu0 %v3469
        %v3507 = vpop.f32.mrb[0].mxu0
        %v3508 = vadd.f32 0.0, %v3507
        %v3509 = vpop.f32.mrb[0].mxu0
        %v3510 = vadd.f32 0.0, %v3509
        %v3511 = vpop.f32.mrb[0].mxu0
        %v3512 = vpop.f32.mrb[0].mxu0
        %3513 = vdwg.mxu0
        %3514 = vmatprep.subr.bf16.mxu0 %v2704
        %3515 = vmatpush1.bf16.msra.mxu0 %v2703
        %3516 = vmatprep.subr.bf16.mxu0 %v2708
        %3517 = vmatpush1.bf16.msra.mxu0 %v2707
        %3518 = vmatprep.subr.bf16.mxu0 %v2712
        %3519 = vmatpush1.bf16.msra.mxu0 %v2711
        %3520 = vmatprep.subr.bf16.mxu0 %v2716
        %3521 = vmatpush1.bf16.msra.mxu0 %v2715
        %3522 = vmatprep.subr.bf16.mxu0 %v2720
        %3523 = vmatpush1.bf16.msra.mxu0 %v2719
        %3524 = vmatprep.subr.bf16.mxu0 %v2724
        %3525 = vmatpush1.bf16.msra.mxu0 %v2723
        %3526 = vmatprep.subr.bf16.mxu0 %v2728
        %3527 = vmatpush1.bf16.msra.mxu0 %v2727
        %3528 = vmatprep.subr.bf16.mxu0 %v2732
        %3529 = vmatpush1.bf16.msra.mxu0 %v2731
        %3530 = vmatprep.subr.bf16.mxu0 0
        %3531 = vmatpush1.bf16.msra.mxu0 0
        %3532 = vmatprep.subr.bf16.mxu0 0
        %3533 = vmatpush1.bf16.msra.mxu0 0
        %3534 = vmatprep.subr.bf16.mxu0 0
        %3535 = vmatpush1.bf16.msra.mxu0 0
        %3536 = vmatprep.subr.bf16.mxu0 0
        %3537 = vmatpush1.bf16.msra.mxu0 0
        %3538 = vmatprep.subr.bf16.mxu0 0
        %3539 = vmatpush1.bf16.msra.mxu0 0
        %3540 = vmatprep.subr.bf16.mxu0 0
        %3541 = vmatpush1.bf16.msra.mxu0 0
        %3542 = vmatprep.subr.bf16.mxu0 0
        %3543 = vmatpush1.bf16.msra.mxu0 0
        %3544 = vmatprep.subr.bf16.mxu0 0
        %3545 = vmatpush1.bf16.msra.mxu0 0
        %3546 = vmatprep.mubr.bf16.mxu0 0
        %3547 = vmatmul.mubr.bf16.gmra.mrb[0].mxu0 %v3469
        %v3548 = vpop.f32.mrb[0].mxu0
        %v3549 = vadd.f32 0.0, %v3548
        %v3550 = vpop.f32.mrb[0].mxu0
        %v3551 = vadd.f32 0.0, %v3550
        %v3552 = vpop.f32.mrb[0].mxu0
        %v3553 = vpop.f32.mrb[0].mxu0
        %3554 = vdwg.mxu0
        %v3555 = vunpack.c.l.bf16 %v3471
        %v3556 = vunpack.c.h.bf16 %v3471
        %v3557 = vunpack.c.l.bf16 %v3472
        %v3558 = vunpack.c.h.bf16 %v3472
        %v3559 = vadd.f32 %v3555, %v3508
        %v3560 = vadd.f32 %v3556, %v3510
        %v3561 = vadd.f32 %v3557, %v3549
        %v3562 = vadd.f32 %v3558, %v3551
        %v3563 = vxor.u32 %v3559, 2147483648
        %v3564 = vmul.f32 %v3563, 1.442695
        %v3565 = vpow.pop %v3564
        %v3566 = vadd.f32 %v3565, 1.0
        %v3567 = vrcp.pop %v3566
        %v3568 = vmul.f32 1.0, %v3567
        %v3569 = vxor.u32 %v3560, 2147483648
        %v3570 = vmul.f32 %v3569, 1.442695
        %v3571 = vpow.pop %v3570
        %v3572 = vadd.f32 %v3571, 1.0
        %v3573 = vrcp.pop %v3572
        %v3574 = vmul.f32 1.0, %v3573
        %v3575 = vtanh.pop %v3561
        %v3576 = vxor.u32 %v3562, 2147483648
        %v3577 = vmul.f32 %v3576, 1.442695
        %v3578 = vpow.pop %v3577
        %v3579 = vadd.f32 %v3578, 1.0
        %v3580 = vrcp.pop %v3579
        %v3581 = vmul.f32 1.0, %v3580
        %v3582 = vmul.f32 %v3574, %v3466
        %v3583 = vmul.f32 %v3568, %v3575
        %v3584 = vadd.f32 %v3582, %v3583
        %v3585 = vtanh.pop %v3584
        %v3586 = vmul.f32 %v3581, %v3585
        %v3587 = vpack.c.bf16 %v3586, %v3586
        %3588 = vst [vmem:[%s1943] sm:$0xf] %v3587
        %v3589 = vld [vmem:[%s1945] sm:$0xff]
        %v3590 = vld [vmem:[%s1945 + $0x8] sm:$0xff]
        %3591 = vmatprep.subr.bf16.mxu0 %v2702
        %3592 = vmatpush1.bf16.msra.mxu0 %v2701
        %3593 = vmatprep.subr.bf16.mxu0 %v2706
        %3594 = vmatpush1.bf16.msra.mxu0 %v2705
        %3595 = vmatprep.subr.bf16.mxu0 %v2710
        %3596 = vmatpush1.bf16.msra.mxu0 %v2709
        %3597 = vmatprep.subr.bf16.mxu0 %v2714
        %3598 = vmatpush1.bf16.msra.mxu0 %v2713
        %3599 = vmatprep.subr.bf16.mxu0 %v2718
        %3600 = vmatpush1.bf16.msra.mxu0 %v2717
        %3601 = vmatprep.subr.bf16.mxu0 %v2722
        %3602 = vmatpush1.bf16.msra.mxu0 %v2721
        %3603 = vmatprep.subr.bf16.mxu0 %v2726
        %3604 = vmatpush1.bf16.msra.mxu0 %v2725
        %3605 = vmatprep.subr.bf16.mxu0 %v2730
        %3606 = vmatpush1.bf16.msra.mxu0 %v2729
        %3607 = vmatprep.subr.bf16.mxu0 0
        %3608 = vmatpush1.bf16.msra.mxu0 0
        %3609 = vmatprep.subr.bf16.mxu0 0
        %3610 = vmatpush1.bf16.msra.mxu0 0
        %3611 = vmatprep.subr.bf16.mxu0 0
        %3612 = vmatpush1.bf16.msra.mxu0 0
        %3613 = vmatprep.subr.bf16.mxu0 0
        %3614 = vmatpush1.bf16.msra.mxu0 0
        %3615 = vmatprep.subr.bf16.mxu0 0
        %3616 = vmatpush1.bf16.msra.mxu0 0
        %3617 = vmatprep.subr.bf16.mxu0 0
        %3618 = vmatpush1.bf16.msra.mxu0 0
        %3619 = vmatprep.subr.bf16.mxu0 0
        %3620 = vmatpush1.bf16.msra.mxu0 0
        %3621 = vmatprep.subr.bf16.mxu0 0
        %3622 = vmatpush1.bf16.msra.mxu0 0
        %3623 = vmatprep.mubr.bf16.mxu0 0
        %3624 = vmatmul.mubr.bf16.gmra.mrb[0].mxu0 %v3587
        %v3625 = vpop.f32.mrb[0].mxu0
        %v3626 = vadd.f32 0.0, %v3625
        %v3627 = vpop.f32.mrb[0].mxu0
        %v3628 = vadd.f32 0.0, %v3627
        %v3629 = vpop.f32.mrb[0].mxu0
        %v3630 = vpop.f32.mrb[0].mxu0
        %3631 = vdwg.mxu0
        %3632 = vmatprep.subr.bf16.mxu0 %v2704
        %3633 = vmatpush1.bf16.msra.mxu0 %v2703
        %3634 = vmatprep.subr.bf16.mxu0 %v2708
        %3635 = vmatpush1.bf16.msra.mxu0 %v2707
        %3636 = vmatprep.subr.bf16.mxu0 %v2712
        %3637 = vmatpush1.bf16.msra.mxu0 %v2711
        %3638 = vmatprep.subr.bf16.mxu0 %v2716
        %3639 = vmatpush1.bf16.msra.mxu0 %v2715
        %3640 = vmatprep.subr.bf16.mxu0 %v2720
        %3641 = vmatpush1.bf16.msra.mxu0 %v2719
        %3642 = vmatprep.subr.bf16.mxu0 %v2724
        %3643 = vmatpush1.bf16.msra.mxu0 %v2723
        %3644 = vmatprep.subr.bf16.mxu0 %v2728
        %3645 = vmatpush1.bf16.msra.mxu0 %v2727
        %3646 = vmatprep.subr.bf16.mxu0 %v2732
        %3647 = vmatpush1.bf16.msra.mxu0 %v2731
        %3648 = vmatprep.subr.bf16.mxu0 0
        %3649 = vmatpush1.bf16.msra.mxu0 0
        %3650 = vmatprep.subr.bf16.mxu0 0
        %3651 = vmatpush1.bf16.msra.mxu0 0
        %3652 = vmatprep.subr.bf16.mxu0 0
        %3653 = vmatpush1.bf16.msra.mxu0 0
        %3654 = vmatprep.subr.bf16.mxu0 0
        %3655 = vmatpush1.bf16.msra.mxu0 0
        %3656 = vmatprep.subr.bf16.mxu0 0
        %3657 = vmatpush1.bf16.msra.mxu0 0
        %3658 = vmatprep.subr.bf16.mxu0 0
        %3659 = vmatpush1.bf16.msra.mxu0 0
        %3660 = vmatprep.subr.bf16.mxu0 0
        %3661 = vmatpush1.bf16.msra.mxu0 0
        %3662 = vmatprep.subr.bf16.mxu0 0
        %3663 = vmatpush1.bf16.msra.mxu0 0
        %3664 = vmatprep.mubr.bf16.mxu0 0
        %3665 = vmatmul.mubr.bf16.gmra.mrb[0].mxu0 %v3587
        %v3666 = vpop.f32.mrb[0].mxu0
        %v3667 = vadd.f32 0.0, %v3666
        %v3668 = vpop.f32.mrb[0].mxu0
        %v3669 = vadd.f32 0.0, %v3668
        %v3670 = vpop.f32.mrb[0].mxu0
        %v3671 = vpop.f32.mrb[0].mxu0
        %3672 = vdwg.mxu0
        %v3673 = vunpack.c.l.bf16 %v3589
        %v3674 = vunpack.c.h.bf16 %v3589
        %v3675 = vunpack.c.l.bf16 %v3590
        %v3676 = vunpack.c.h.bf16 %v3590
        %v3677 = vadd.f32 %v3673, %v3626
        %v3678 = vadd.f32 %v3674, %v3628
        %v3679 = vadd.f32 %v3675, %v3667
        %v3680 = vadd.f32 %v3676, %v3669
        %v3681 = vxor.u32 %v3677, 2147483648
        %v3682 = vmul.f32 %v3681, 1.442695
        %v3683 = vpow.pop %v3682
        %v3684 = vadd.f32 %v3683, 1.0
        %v3685 = vrcp.pop %v3684
        %v3686 = vmul.f32 1.0, %v3685
        %v3687 = vxor.u32 %v3678, 2147483648
        %v3688 = vmul.f32 %v3687, 1.442695
        %v3689 = vpow.pop %v3688
        %v3690 = vadd.f32 %v3689, 1.0
        %v3691 = vrcp.pop %v3690
        %v3692 = vmul.f32 1.0, %v3691
        %v3693 = vtanh.pop %v3679
        %v3694 = vxor.u32 %v3680, 2147483648
        %v3695 = vmul.f32 %v3694, 1.442695
        %v3696 = vpow.pop %v3695
        %v3697 = vadd.f32 %v3696, 1.0
        %v3698 = vrcp.pop %v3697
        %v3699 = vmul.f32 1.0, %v3698
        %v3700 = vmul.f32 %v3692, %v3584
        %v3701 = vmul.f32 %v3686, %v3693
        %v3702 = vadd.f32 %v3700, %v3701
        %v3703 = vtanh.pop %v3702
        %v3704 = vmul.f32 %v3699, %v3703
        %v3705 = vpack.c.bf16 %v3704, %v3704
        %3706 = vst [vmem:[%s2065] sm:$0xf] %v3705
        %v3707 = vld [vmem:[#allocation2] sm:$0xf]
        %v3708 = vld [vmem:[#allocation2 + $0x4] sm:$0xf]
        %v3709 = vld [vmem:[#allocation2 + $0x8] sm:$0xf]
        %v3710 = vld [vmem:[#allocation2 + $0xc] sm:$0xf]
        %v3711 = vld [vmem:[#allocation2 + $0x10] sm:$0xf]
        %v3712 = vld [vmem:[#allocation2 + $0x14] sm:$0xf]
        %v3713 = vld [vmem:[#allocation2 + $0x18] sm:$0xf]
        %v3714 = vld [vmem:[#allocation2 + $0x1c] sm:$0xf]
        %v3715 = vld [vmem:[#allocation16] sm:$0xf]
        %v3716 = vld [vmem:[#allocation16 + $0x4] sm:$0xf]
        %v3717 = vld [vmem:[#allocation16 + $0x8] sm:$0xf]
        %v3718 = vld [vmem:[#allocation16 + $0xc] sm:$0xf]
        %v3719 = vld [vmem:[#allocation16 + $0x10] sm:$0xf]
        %v3720 = vld [vmem:[#allocation16 + $0x14] sm:$0xf]
        %v3721 = vld [vmem:[#allocation16 + $0x18] sm:$0xf]
        %v3722 = vld [vmem:[#allocation16 + $0x1c] sm:$0xf]
        %v3723 = vld [vmem:[#allocation16 + $0x20] sm:$0xf]
        %v3724 = vld [vmem:[#allocation16 + $0x24] sm:$0xf]
        %v3725 = vld [vmem:[#allocation16 + $0x28] sm:$0xf]
        %v3726 = vld [vmem:[#allocation16 + $0x2c] sm:$0xf]
        %v3727 = vld [vmem:[#allocation16 + $0x30] sm:$0xf]
        %v3728 = vld [vmem:[#allocation16 + $0x34] sm:$0xf]
        %v3729 = vld [vmem:[#allocation16 + $0x38] sm:$0xf]
        %v3730 = vld [vmem:[#allocation16 + $0x3c] sm:$0xf]
        %v3731 = vld [vmem:[#allocation18] sm:$0x1]
        %v3733 = vlaneseq
        %v3734 = vshrl.u32 %v3733, 7
        %v3735 = vsub.s32 0, %v3734
        %v3736 = vrot.slane %v3731, %v3735
        %v3746 = vunpack.c.l.b16 %v3707
        %v3747 = vunpack.c.l.b16 %v3708
        %v3748 = vunpack.c.l.b16 %v3709
        %v3749 = vunpack.c.l.b16 %v3710
        %v3750 = vunpack.c.l.b16 %v3711
        %v3751 = vunpack.c.l.b16 %v3712
        %v3752 = vunpack.c.l.b16 %v3713
        %v3753 = vunpack.c.l.b16 %v3714
        %v3754 = vpack.c.b16 %v3747, %v3746
        %v3755 = vpack.c.b16 %v3749, %v3748
        %v3756 = vpack.c.b16 %v3751, %v3750
        %v3757 = vpack.c.b16 %v3753, %v3752
        %v3778 = vunpack.c.l.b16 %v3715
        %v3779 = vunpack.c.l.b16 %v3716
        %v3780 = vunpack.c.l.b16 %v3717
        %v3781 = vunpack.c.l.b16 %v3718
        %v3782 = vunpack.c.l.b16 %v3719
        %v3783 = vunpack.c.l.b16 %v3720
        %v3784 = vunpack.c.l.b16 %v3721
        %v3785 = vunpack.c.l.b16 %v3722
        %v3786 = vunpack.c.l.b16 %v3723
        %v3787 = vunpack.c.l.b16 %v3724
        %v3788 = vunpack.c.l.b16 %v3725
        %v3789 = vunpack.c.l.b16 %v3726
        %v3790 = vunpack.c.l.b16 %v3727
        %v3791 = vunpack.c.l.b16 %v3728
        %v3792 = vunpack.c.l.b16 %v3729
        %v3793 = vunpack.c.l.b16 %v3730
        %v3794 = vpack.c.b16 %v3779, %v3778
        %v3795 = vpack.c.b16 %v3781, %v3780
        %v3796 = vpack.c.b16 %v3783, %v3782
        %v3797 = vpack.c.b16 %v3785, %v3784
        %v3798 = vpack.c.b16 %v3787, %v3786
        %v3799 = vpack.c.b16 %v3789, %v3788
        %v3800 = vpack.c.b16 %v3791, %v3790
        %v3801 = vpack.c.b16 %v3793, %v3792
        %3810 = vmatprep.subr.bf16.mxu0 0
        %3811 = vmatpush1.bf16.msra.mxu0 %v3794
        %3812 = vmatprep.subr.bf16.mxu0 0
        %3813 = vmatpush1.bf16.msra.mxu0 %v3795
        %3814 = vmatprep.subr.bf16.mxu0 0
        %3815 = vmatpush1.bf16.msra.mxu0 %v3796
        %3816 = vmatprep.subr.bf16.mxu0 0
        %3817 = vmatpush1.bf16.msra.mxu0 %v3797
        %3818 = vmatprep.subr.bf16.mxu0 0
        %3819 = vmatpush1.bf16.msra.mxu0 %v3798
        %3820 = vmatprep.subr.bf16.mxu0 0
        %3821 = vmatpush1.bf16.msra.mxu0 %v3799
        %3822 = vmatprep.subr.bf16.mxu0 0
        %3823 = vmatpush1.bf16.msra.mxu0 %v3800
        %3824 = vmatprep.subr.bf16.mxu0 0
        %3825 = vmatpush1.bf16.msra.mxu0 %v3801
        %3826 = vmatprep.subr.bf16.mxu0 0
        %3827 = vmatpush1.bf16.msra.mxu0 0
        %3828 = vmatprep.subr.bf16.mxu0 0
        %3829 = vmatpush1.bf16.msra.mxu0 0
        %3830 = vmatprep.subr.bf16.mxu0 0
        %3831 = vmatpush1.bf16.msra.mxu0 0
        %3832 = vmatprep.subr.bf16.mxu0 0
        %3833 = vmatpush1.bf16.msra.mxu0 0
        %3834 = vmatprep.subr.bf16.mxu0 0
        %3835 = vmatpush1.bf16.msra.mxu0 0
        %3836 = vmatprep.subr.bf16.mxu0 0
        %3837 = vmatpush1.bf16.msra.mxu0 0
        %3838 = vmatprep.subr.bf16.mxu0 0
        %3839 = vmatpush1.bf16.msra.mxu0 0
        %3840 = vmatprep.subr.bf16.mxu0 0
        %3841 = vmatpush1.bf16.msra.mxu0 0
        %3842 = vmatprep.mubr.bf16.mxu0 0
        %3843 = vmatmul.mubr.bf16.gmra.mrb[0].mxu0 %v3754
        %v3844 = vpop.f32.mrb[0].mxu0
        %v3845 = vadd.f32 %v3736, %v3844
        %v3846 = vpop.f32.mrb[0].mxu0
        %v3847 = vpop.f32.mrb[0].mxu0
        %v3848 = vadd.f32 %v3736, %v3847
        %v3849 = vpop.f32.mrb[0].mxu0
        %3850 = vmatprep.mubr.bf16.mxu0 0
        %3851 = vmatmul.mubr.bf16.gmra.mrb[0].mxu0 %v3755
        %v3852 = vpop.f32.mrb[0].mxu0
        %v3853 = vadd.f32 %v3736, %v3852
        %v3854 = vpop.f32.mrb[0].mxu0
        %v3855 = vpop.f32.mrb[0].mxu0
        %v3856 = vadd.f32 %v3736, %v3855
        %v3857 = vpop.f32.mrb[0].mxu0
        %3858 = vmatprep.mubr.bf16.mxu0 0
        %3859 = vmatmul.mubr.bf16.gmra.mrb[0].mxu0 %v3756
        %v3860 = vpop.f32.mrb[0].mxu0
        %v3861 = vadd.f32 %v3736, %v3860
        %v3862 = vpop.f32.mrb[0].mxu0
        %v3863 = vpop.f32.mrb[0].mxu0
        %v3864 = vadd.f32 %v3736, %v3863
        %v3865 = vpop.f32.mrb[0].mxu0
        %3866 = vmatprep.mubr.bf16.mxu0 0
        %3867 = vmatmul.mubr.bf16.gmra.mrb[0].mxu0 %v3757
        %v3868 = vpop.f32.mrb[0].mxu0
        %v3869 = vadd.f32 %v3736, %v3868
        %v3870 = vpop.f32.mrb[0].mxu0
        %v3871 = vpop.f32.mrb[0].mxu0
        %v3872 = vadd.f32 %v3736, %v3871
        %v3873 = vpop.f32.mrb[0].mxu0
        %3874 = vdwg.mxu0
        %v3875 = vtanh.pop %v3845
        %v3876 = vtanh.pop %v3848
        %v3877 = vtanh.pop %v3853
        %v3878 = vtanh.pop %v3856
        %v3879 = vtanh.pop %v3861
        %v3880 = vtanh.pop %v3864
        %v3881 = vtanh.pop %v3869
        %v3882 = vtanh.pop %v3872
        %v3883 = vld [vmem:[#allocation19] sm:$0x1]
        %v3885 = vlaneseq
        %v3886 = vshrl.u32 %v3885, 7
        %v3887 = vsub.s32 0, %v3886
        %v3888 = vrot.slane %v3883, %v3887
        %v3890 = vmul.f32 %v3875, %v3888
        %v3891 = vmul.f32 %v3876, %v3888
        %v3892 = vmul.f32 %v3877, %v3888
        %v3893 = vmul.f32 %v3878, %v3888
        %v3894 = vmul.f32 %v3879, %v3888
        %v3895 = vmul.f32 %v3880, %v3888
        %v3896 = vmul.f32 %v3881, %v3888
        %v3897 = vmul.f32 %v3882, %v3888
        %3898 = vadd.xlane.f32.xlu0 %v3890
        %v3899 = vpop.xlane.xlu0 %3898
        %3900 = vadd.xlane.f32.xlu0 %v3891
        %v3901 = vpop.xlane.xlu0 %3900
        %3902 = vadd.xlane.f32.xlu0 %v3892
        %v3903 = vpop.xlane.xlu0 %3902
        %3904 = vadd.xlane.f32.xlu0 %v3893
        %v3905 = vpop.xlane.xlu0 %3904
        %3906 = vadd.xlane.f32.xlu0 %v3894
        %v3907 = vpop.xlane.xlu0 %3906
        %3908 = vadd.xlane.f32.xlu0 %v3895
        %v3909 = vpop.xlane.xlu0 %3908
        %3910 = vadd.xlane.f32.xlu0 %v3896
        %v3911 = vpop.xlane.xlu0 %3910
        %3912 = vadd.xlane.f32.xlu0 %v3897
        %v3913 = vpop.xlane.xlu0 %3912
        %v3914 = vlaneseq
        %v3915 = vshrl.u32 %v3914, 7
        %v3916 = vld [vmem:[%s513] sm:$0x1]
        %v3917 = vlaneseq
        %v3918 = vshrl.u32 %v3917, 7
        %v3919 = vsub.s32 0, %v3918
        %v3920 = vrot.slane %v3916, %v3919
        %vm3921 = vcmp.lt.s32.totalorder %v3915, %v3920
        %v3930 = vlaneseq
        %v3931 = vand.u32 %v3930, 127
        %v3932 = vlaneseq
        %v3933 = vshrl.u32 %v3932, 7
        %v3934 = vsub.s32 %v3931, %v3933
        %v3935 = vrot.slane %v3899, %v3934
        %v3936 = vlaneseq
        %v3937 = vshrl.u32 %v3936, 7
        %v3938 = vsub.s32 %v3931, %v3937
        %v3939 = vrot.slane %v3901, %v3938
        %v3940 = vlaneseq
        %v3941 = vshrl.u32 %v3940, 7
        %v3942 = vsub.s32 %v3931, %v3941
        %v3943 = vrot.slane %v3903, %v3942
        %v3944 = vlaneseq
        %v3945 = vshrl.u32 %v3944, 7
        %v3946 = vsub.s32 %v3931, %v3945
        %v3947 = vrot.slane %v3905, %v3946
        %v3948 = vlaneseq
        %v3949 = vshrl.u32 %v3948, 7
        %v3950 = vsub.s32 %v3931, %v3949
        %v3951 = vrot.slane %v3907, %v3950
        %v3952 = vlaneseq
        %v3953 = vshrl.u32 %v3952, 7
        %v3954 = vsub.s32 %v3931, %v3953
        %v3955 = vrot.slane %v3909, %v3954
        %v3956 = vlaneseq
        %v3957 = vshrl.u32 %v3956, 7
        %v3958 = vsub.s32 %v3931, %v3957
        %v3959 = vrot.slane %v3911, %v3958
        %v3960 = vlaneseq
        %v3961 = vshrl.u32 %v3960, 7
        %v3962 = vsub.s32 %v3931, %v3961
        %v3963 = vrot.slane %v3913, %v3962
        %vm3964 = vcmask 1041409
        %v3965 = vsel %vm3964, %v3939, %v3935
        %vm3966 = vcmask 1042434
        %v3967 = vsel %vm3966, %v3943, %v3965
        %vm3968 = vcmask 1043459
        %v3969 = vsel %vm3968, %v3947, %v3967
        %vm3970 = vcmask 1044484
        %v3971 = vsel %vm3970, %v3951, %v3969
        %vm3972 = vcmask 1045509
        %v3973 = vsel %vm3972, %v3955, %v3971
        %vm3974 = vcmask 1046534
        %v3975 = vsel %vm3974, %v3959, %v3973
        %vm3976 = vcmask 1047559
        %v3977 = vsel %vm3976, %v3963, %v3975
        %v3979 = vsel %vm3921, %v3977, -inf
        %v3980 = vsel %vm651, %v3979, -inf
        %v3981 = vrot.slane %v3980, 4
        %v3982 = vmax.f32 %v3980, %v3981
        %v3983 = vrot.slane %v3982, 2
        %v3984 = vmax.f32 %v3982, %v3983
        %v3985 = vrot.slane %v3984, 1
        %v3986 = vmax.f32 %v3984, %v3985
        %v3987 = vmax.f32 %v3986, -1e+30
        %v3988 = vsub.f32 %v3979, %v3987
        %v3989 = vmul.f32 %v3988, 1.442695
        %v3990 = vpow.pop %v3989
        %v3991 = vsel %vm3921, %v3990, 0.0
        %v3992 = vsel %vm651, %v3991, 0.0
        %v3993 = vrot.slane %v3992, 4
        %v3994 = vadd.f32 %v3992, %v3993
        %v3995 = vrot.slane %v3994, 2
        %v3996 = vadd.f32 %v3994, %v3995
        %v3997 = vrot.slane %v3996, 1
        %v3998 = vadd.f32 %v3996, %v3997
        %v3999 = vmax.f32 %v3998, 1e-20
        %v4000 = vrcp.pop %v3999
        %v4001 = vmul.f32 %v3991, %v4000
        %v4002 = vunpack.c.l.bf16 %v3707
        %v4003 = vunpack.c.l.bf16 %v3708
        %v4004 = vunpack.c.l.bf16 %v3709
        %v4005 = vunpack.c.l.bf16 %v3710
        %v4006 = vunpack.c.l.bf16 %v3711
        %v4007 = vunpack.c.l.bf16 %v3712
        %v4008 = vunpack.c.l.bf16 %v3713
        %v4009 = vunpack.c.l.bf16 %v3714
        %v4010 = vlaneseq
        %v4011 = vshrl.u32 %v4010, 7
        %v4012 = vsub.s32 0, %v4011
        %v4013 = vrot.slane %v4001, %v4012
        %4015 = vbcast.lane.b32.xlu0 %v4013, 256
        %v4016 = vpop.permute.xlu0 %4015
        %v4017 = vlaneseq
        %v4018 = vshrl.u32 %v4017, 7
        %v4019 = vsub.s32 1, %v4018
        %v4020 = vrot.slane %v4001, %v4019
        %4022 = vbcast.lane.b32.xlu0 %v4020, 256
        %v4023 = vpop.permute.xlu0 %4022
        %v4024 = vlaneseq
        %v4025 = vshrl.u32 %v4024, 7
        %v4026 = vsub.s32 2, %v4025
        %v4027 = vrot.slane %v4001, %v4026
        %4029 = vbcast.lane.b32.xlu0 %v4027, 256
        %v4030 = vpop.permute.xlu0 %4029
        %v4031 = vlaneseq
        %v4032 = vshrl.u32 %v4031, 7
        %v4033 = vsub.s32 3, %v4032
        %v4034 = vrot.slane %v4001, %v4033
        %4036 = vbcast.lane.b32.xlu0 %v4034, 256
        %v4037 = vpop.permute.xlu0 %4036
        %v4038 = vlaneseq
        %v4039 = vshrl.u32 %v4038, 7
        %v4040 = vsub.s32 4, %v4039
        %v4041 = vrot.slane %v4001, %v4040
        %4043 = vbcast.lane.b32.xlu0 %v4041, 256
        %v4044 = vpop.permute.xlu0 %4043
        %v4045 = vlaneseq
        %v4046 = vshrl.u32 %v4045, 7
        %v4047 = vsub.s32 5, %v4046
        %v4048 = vrot.slane %v4001, %v4047
        %4050 = vbcast.lane.b32.xlu0 %v4048, 256
        %v4051 = vpop.permute.xlu0 %4050
        %v4052 = vlaneseq
        %v4053 = vshrl.u32 %v4052, 7
        %v4054 = vsub.s32 6, %v4053
        %v4055 = vrot.slane %v4001, %v4054
        %4057 = vbcast.lane.b32.xlu0 %v4055, 256
        %v4058 = vpop.permute.xlu0 %4057
        %v4059 = vlaneseq
        %v4060 = vshrl.u32 %v4059, 7
        %v4061 = vsub.s32 7, %v4060
        %v4062 = vrot.slane %v4001, %v4061
        %4064 = vbcast.lane.b32.xlu0 %v4062, 256
        %v4065 = vpop.permute.xlu0 %4064
        %v4066 = vmul.f32 %v4002, %v4016
        %v4067 = vmul.f32 %v4003, %v4023
        %v4068 = vmul.f32 %v4004, %v4030
        %v4069 = vmul.f32 %v4005, %v4037
        %v4070 = vmul.f32 %v4006, %v4044
        %v4071 = vmul.f32 %v4007, %v4051
        %v4072 = vmul.f32 %v4008, %v4058
        %v4073 = vmul.f32 %v4009, %v4065
        %v4074 = vadd.f32 %v4066, %v4067
        %v4075 = vadd.f32 %v4074, %v4068
        %v4076 = vadd.f32 %v4075, %v4069
        %v4077 = vadd.f32 %v4076, %v4070
        %v4078 = vadd.f32 %v4077, %v4071
        %v4079 = vadd.f32 %v4078, %v4072
        %v4080 = vadd.f32 %v4079, %v4073
        %4081 = vst [vmem:[%s555] sm:$0xff] %v4080
        %s4082 = sand.u32 %s282, 1
        %s4083 = scalar_lea.sflag [#allocation6], %s4082
        %s4084 = sand.u32 %s282, 1
        %s4085 = smul.addr %s4084, 8
        %s4086 = scalar_lea.vmem [#allocation22], %s4085
        // Predicated region
        $region109: #{tpu_custom_call.1} parent=63 // pred_check
          %p4087 = pneg %p292
        $region110: #{tpu_custom_call.1} parent=63 // pred_check_branch
          %4089 = sbr.rel (%p4087) target = $region112
        $region111: #{tpu_custom_call.1} parent=63 // pred_region
          %s4091 = ssub.s32 128, 128
          %4092 = vsyncadd %s4083, %s4091
          %s4093 = smul.addr %s33, 128
          %s4094 = scalar_lea.hbm %s11, %s4093
          %s4096 = sshll.u32 %s4086, 4
          %s4097 = int_to_ptr.vmem [resolvable:$true] %s4096
          %4099 = dma.vmem_to_hbm [thread:$0]  %s4097, 128, %s4094, %s4083
        $region112: #{tpu_custom_call.1} parent=63 // pred_fallthru
          _
      $region64: #{tpu_custom_call.1} parent=5 // pred_fallthru
        _
      %p4100 = scmp.le.s32.totalorder 2, %s28
      // Predicated region
      $region113: #{tpu_custom_call.1} parent=5 // pred_check
        %p4101 = pneg %p4100
      $region114: #{tpu_custom_call.1} parent=5 // pred_check_branch
        %4103 = sbr.rel (%p4101) target = $region116
      $region115: #{tpu_custom_call.1} parent=5 // pred_region
        %s4104 = ssub.s32 %s28, 2
        // Predicated region
        $region117: #{tpu_custom_call.1} parent=115 // pred_check
          %p4105 = pneg %p298
        $region118: #{tpu_custom_call.1} parent=115 // pred_check_branch
          %4107 = sbr.rel (%p4105) target = $region120
        $region119: #{tpu_custom_call.1} parent=115 // pred_region
          %s4108 = sand.u32 %s283, 1
          %s4109 = scalar_lea.sflag [#allocation6], %s4108
          %s4110 = sand.u32 %s283, 1
          %s4111 = smul.addr %s4110, 8
          %s4112 = scalar_lea.vmem [#allocation22], %s4111
          %4113 = dma.done %s4109, 128
        $region120: #{tpu_custom_call.1} parent=115 // pred_fallthru
          _
      $region116: #{tpu_custom_call.1} parent=5 // pred_fallthru
        _
    $region6: #{tpu_custom_call.1} parent=1 // loop_footer
      %s32 = sadd.s32 1, %s28
    $region7: #{tpu_custom_call.1} parent=1 // loop_footer_branch
      %27 = sbr.rel target = $region3
    $region8: #{tpu_custom_call.1} parent=1 // loop_exit
      _
    %4114 = vsyncpa [#allocation5], 1
    %s4115 = scalar_lea.sflag [#allocation5], 1
    %4116 = vsyncpa %s4115, 1
    %4117 = vsyncpa [#allocation8], 1
    %4118 = vsyncpa [#allocation11], 1
    %4119 = vsyncpa [#allocation14], 1
    %4120 = vsyncpa [#allocation17], 1
    %4121 = vsyncpa [#allocation20], 1
    %4122 = vsyncpa [#allocation6], 1
    %s4123 = scalar_lea.sflag [#allocation6], 1
    %4124 = vsyncpa %s4123, 1

</llo_original>
